<compile_context>
chip_gen: v5e
topology: v5e:2x2
jax: 0.10.0
libtpu: 0.0.40
codegen_flags: <defaults>
</compile_context>

<pallas_src>
import functools

import jax
import jax.numpy as jnp
from jax import lax
from jax.experimental import pallas as pl
from jax.experimental.pallas import tpu as pltpu


def _round_up(v, m):
    return ((v + m - 1) // m) * m


def attention_kernel(x_ref, wq_ref, wk_ref, wv_ref, wo_ref, o_ref, *,
                     actual_n, matmul_dtype, approx_reciprocal):
    # x_ref:  (Bb, Np, D)   padded input block (padded rows are zero)
    # wq_ref: (H, Dh, D)    per-head Q weight rows (torch layout), scale pre-folded, lane-dense in D
    # wk_ref: (H, Dh, D)
    # wv_ref: (H, Dh, D)
    # wo_ref: (H, Dh, D)    per-head slab of W_out^T, lane-dense in D
    # o_ref:  (Bb, Np, D)
    Bb, Np, D = x_ref.shape
    H, Dh, _ = wq_ref.shape

    # Weights are already stored in matmul_dtype (prepare_weights); astype is a no-op then.
    wq = wq_ref[...].astype(matmul_dtype)
    wk = wk_ref[...].astype(matmul_dtype)
    wv = wv_ref[...].astype(matmul_dtype)
    wo = wo_ref[...].astype(matmul_dtype)

    # Static unroll over the (small) batch block; every iteration is independent and ends
    # in a store to o_ref[bi], so live ranges stay bounded.
    for bi in range(Bb):
        x = x_ref[bi].astype(matmul_dtype)                      # (Np, D)
        xb = jnp.broadcast_to(x, (H, Np, D))                    # heads in the batch axis

        # Q/K/V projections: batched matmuls contracting the lane-dense D axis of the
        # (H, Dh, D) weights ('bqd,bkd->bqk' form). f32 accumulation on the MXU, operands
        # narrowed once for the downstream matmuls.
        q = jnp.einsum('hnd,hed->hne', xb, wq,
                       preferred_element_type=jnp.float32).astype(matmul_dtype)  # (H, Np, Dh)
        k = jnp.einsum('hnd,hed->hne', xb, wk,
                       preferred_element_type=jnp.float32).astype(matmul_dtype)
        v = jnp.einsum('hnd,hed->hne', xb, wv,
                       preferred_element_type=jnp.float32).astype(matmul_dtype)

        # Attention scores (1/sqrt(Dh) already folded into wq), f32 accumulation.
        dots = jnp.einsum('hne,hme->hnm', q, k,
                          preferred_element_type=jnp.float32)   # (H, Np, Np)

        # Mask padded key columns before the softmax (keeps the padded-lane math exact).
        if Np != actual_n:
            col = lax.broadcasted_iota(jnp.int32, dots.shape, 2)
            dots = jnp.where(col < actual_n, dots, jnp.float32(-1e30))

        # Numerically stable softmax with DEFERRED division (all f32 on VPU/EUP).
        m = jnp.max(dots, axis=-1, keepdims=True)
        p = jnp.exp(dots - m)                                   # (H, Np, Np) f32
        denom = jnp.sum(p, axis=-1, keepdims=True)              # (H, Np, 1)  f32

        # P @ V with narrow operands and f32 accumulation.
        out_h = jnp.einsum('hnm,hme->hne', p.astype(matmul_dtype), v,
                           preferred_element_type=jnp.float32)  # (H, Np, Dh) f32

        # Deferred softmax division on the small (H, Np, Dh) tensor instead of (H, Np, Np).
        out_h = out_h * pl.reciprocal(denom, approx=approx_reciprocal)

        # Output projection against per-head W_out slabs + head reduction.
        proj = jnp.einsum('hne,hed->hnd', out_h.astype(matmul_dtype), wo,
                          preferred_element_type=jnp.float32)   # (H, Np, D) f32
        o_ref[bi] = jnp.sum(proj, axis=0).astype(o_ref.dtype)   # (Np, D)


def prepare_weights(w_qkv, w_out, heads, dim_head, matmul_dtype=jnp.bfloat16):
    """One-time host-side weight prep (do NOT redo this per forward call).

    w_qkv: torch Linear layout (3*inner, D); w_out: torch Linear layout (D, inner).
    Returns lane-dense (H, Dh, D) slabs (D is the minor dim): wq (scale folded in),
    wk, wv, wo.
    """
    inner = heads * dim_head
    D = w_qkv.shape[1]
    scale = dim_head ** (-0.5)

    wq = w_qkv[0 * inner:1 * inner].reshape(heads, dim_head, D) * jnp.asarray(scale, w_qkv.dtype)
    wk = w_qkv[1 * inner:2 * inner].reshape(heads, dim_head, D)
    wv = w_qkv[2 * inner:3 * inner].reshape(heads, dim_head, D)
    wo = jnp.transpose(w_out).reshape(heads, dim_head, D)       # (inner, D) -> (H, Dh, D)

    cast = lambda w: w.astype(matmul_dtype)
    return cast(wq), cast(wk), cast(wv), cast(wo)


def attention_forward(x, wq, wk, wv, wo, *, matmul_dtype=jnp.bfloat16,
                      approx_reciprocal=True, block_b=1, seq_pad_multiple=128,
                      out_dtype=None, vmem_limit_bytes=None):
    """x: (B, N, D); wq/wk/wv/wo: (H, Dh, D). Returns (B, N, D) in out_dtype (default x.dtype)."""
    B, N, D = x.shape
    heads, dim_head, _ = wq.shape
    out_dtype = out_dtype if out_dtype is not None else x.dtype

    # Pad the sequence so the key/lane dimension of the scores is lane-dense (128-multiple),
    # and the batch so it divides the batch block. x is NOT cast here (cast happens in-VMEM;
    # feed bf16 x from upstream for production to halve the input DMA).
    Np = _round_up(N, seq_pad_multiple) if seq_pad_multiple else N
    Bb = max(1, min(block_b, B))
    B_pad = _round_up(B, Bb)
    if Np != N or B_pad != B:
        x = jnp.pad(x, ((0, B_pad - B), (0, Np - N), (0, 0)))

    kernel = functools.partial(attention_kernel, actual_n=N, matmul_dtype=matmul_dtype,
                               approx_reciprocal=approx_reciprocal)

    compiler_kwargs = dict(dimension_semantics=("parallel",))
    if vmem_limit_bytes is not None:
        compiler_kwargs["vmem_limit_bytes"] = int(vmem_limit_bytes)

    out = pl.pallas_call(
        kernel,
        out_shape=jax.ShapeDtypeStruct((B_pad, Np, D), out_dtype),
        grid_spec=pltpu.PrefetchScalarGridSpec(
            num_scalar_prefetch=0,
            grid=(B_pad // Bb,),
            in_specs=[
                pl.BlockSpec((Bb, Np, D), lambda b: (b, 0, 0)),
                pl.BlockSpec((heads, dim_head, D), lambda b: (0, 0, 0)),
                pl.BlockSpec((heads, dim_head, D), lambda b: (0, 0, 0)),
                pl.BlockSpec((heads, dim_head, D), lambda b: (0, 0, 0)),
                pl.BlockSpec((heads, dim_head, D), lambda b: (0, 0, 0)),
            ],
            out_specs=pl.BlockSpec((Bb, Np, D), lambda b: (b, 0, 0)),
        ),
        compiler_params=pltpu.CompilerParams(**compiler_kwargs),
    )(x, wq, wk, wv, wo)

    return out[:B, :N, :]


def attention_reference(x, w_qkv, w_out, heads, dim_head):
    """Pure-JAX reference mirroring the PyTorch forward (fixup/augmented off)."""
    B, N, D = x.shape
    inner = heads * dim_head
    scale = dim_head ** (-0.5)
    qkv = x @ w_qkv.T                                           # (B, N, 3*inner)
    q, k, v = jnp.split(qkv, 3, axis=-1)

    def to_heads(t):                                            # 'b n (h d) -> b h n d'
        return t.reshape(B, N, heads, dim_head).transpose(0, 2, 1, 3)

    q, k, v = map(to_heads, (q, k, v))
    dots = jnp.einsum('bhnd,bhmd->bhnm', q, k) * scale
    attn = jax.nn.softmax(dots, axis=-1)
    out = jnp.einsum('bhnm,bhmd->bhnd', attn, v)
    out = out.transpose(0, 2, 1, 3).reshape(B, N, inner)        # 'b h n d -> b n (h d)'
    return out @ w_out.T


if __name__ == "__main__":
    # Small shapes consistent with the module: dim=32, heads=4, dim_head=8.
    B, N, D = 2, 8, 32
    heads, dim_head = 4, 8
    inner = heads * dim_head

    key = jax.random.PRNGKey(0)
    kx, kq, ko = jax.random.split(key, 3)
    x = jax.random.normal(kx, (B, N, D), dtype=jnp.float32)
    # torch nn.Linear weight layout: (out_features, in_features)
    w_qkv = jax.random.normal(kq, (3 * inner, D), dtype=jnp.float32) * (D ** -0.5)
    w_out = jax.random.normal(ko, (D, inner), dtype=jnp.float32) * (inner ** -0.5)

    ref = attention_reference(x, w_qkv, w_out, heads, dim_head)

    # 1) Full-precision pass (exact reciprocal), one batch element per grid step
    #    (grid=(2,), "parallel") — strict correctness check, exercises N-padding + masking.
    wq32, wk32, wv32, wo32 = prepare_weights(w_qkv, w_out, heads, dim_head, jnp.float32)
    out_f32 = attention_forward(x, wq32, wk32, wv32, wo32,
                                matmul_dtype=jnp.float32, approx_reciprocal=False,
                                block_b=1)
    out_f32 = jax.block_until_ready(out_f32)
    assert out_f32.shape == (B, N, D)
    assert jnp.allclose(out_f32, ref, atol=1e-3, rtol=1e-3), "f32 mismatch vs reference"

    # 2) Production config (all generations): bf16 MXU operands, f32 accumulation +
    #    f32 softmax, deferred division, EUP approx reciprocal, batch block of 2.
    wq16, wk16, wv16, wo16 = prepare_weights(w_qkv, w_out, heads, dim_head, jnp.bfloat16)
    out_bf16 = attention_forward(x, wq16, wk16, wv16, wo16,
                                 matmul_dtype=jnp.bfloat16, approx_reciprocal=True,
                                 block_b=2)
    out_bf16 = jax.block_until_ready(out_bf16)
    assert out_bf16.shape == (B, N, D)
    assert jnp.allclose(out_bf16, ref, atol=1e-1, rtol=1e-1), "bf16 mismatch vs reference"

    print("KERNEL_OK")
</pallas_src>

<mosaic_0001>
module attributes {stable_mosaic.version = 11 : i64} {
  func.func @attention_kernel(%arg0: i32, %arg1: memref<1x128x32xf32, #tpu.memory_space<vmem>>, %arg2: memref<4x8x32xf32, #tpu.memory_space<vmem>>, %arg3: memref<4x8x32xf32, #tpu.memory_space<vmem>>, %arg4: memref<4x8x32xf32, #tpu.memory_space<vmem>>, %arg5: memref<4x8x32xf32, #tpu.memory_space<vmem>>, %arg6: memref<1x128x32xf32, #tpu.memory_space<vmem>>) attributes {dimension_semantics = [#tpu.dimension_semantics<parallel>], iteration_bounds = array<i64: 2>, scalar_prefetch = 0 : i64, scratch_operands = 0 : i64, tpu.core_type = #tpu.core_type<tc>, window_params = [{transform_indices = @transform_0, window_bounds = array<i64: 1, 128, 32>}, {pipeline_mode = #tpu.pipeline_mode<synchronous>, transform_indices = @transform_1, window_bounds = array<i64: 4, 8, 32>}, {pipeline_mode = #tpu.pipeline_mode<synchronous>, transform_indices = @transform_2, window_bounds = array<i64: 4, 8, 32>}, {pipeline_mode = #tpu.pipeline_mode<synchronous>, transform_indices = @transform_3, window_bounds = array<i64: 4, 8, 32>}, {pipeline_mode = #tpu.pipeline_mode<synchronous>, transform_indices = @transform_4, window_bounds = array<i64: 4, 8, 32>}, {transform_indices = @transform_5, window_bounds = array<i64: 1, 128, 32>}]} {
    %c0 = arith.constant 0 : index
    %c0_0 = arith.constant 0 : index
    %c0_1 = arith.constant 0 : index
    %0 = vector.load %arg2[%c0, %c0_0, %c0_1] : memref<4x8x32xf32, #tpu.memory_space<vmem>>, vector<4x8x32xf32>
    %c0_2 = arith.constant 0 : index
    %c0_3 = arith.constant 0 : index
    %c0_4 = arith.constant 0 : index
    %1 = vector.load %arg3[%c0_2, %c0_3, %c0_4] : memref<4x8x32xf32, #tpu.memory_space<vmem>>, vector<4x8x32xf32>
    %c0_5 = arith.constant 0 : index
    %c0_6 = arith.constant 0 : index
    %c0_7 = arith.constant 0 : index
    %2 = vector.load %arg4[%c0_5, %c0_6, %c0_7] : memref<4x8x32xf32, #tpu.memory_space<vmem>>, vector<4x8x32xf32>
    %c0_8 = arith.constant 0 : index
    %c0_9 = arith.constant 0 : index
    %c0_10 = arith.constant 0 : index
    %3 = vector.load %arg5[%c0_8, %c0_9, %c0_10] : memref<4x8x32xf32, #tpu.memory_space<vmem>>, vector<4x8x32xf32>
    %c0_11 = arith.constant 0 : index
    %c0_12 = arith.constant 0 : index
    %c0_13 = arith.constant 0 : index
    %4 = vector.load %arg1[%c0_11, %c0_12, %c0_13] : memref<1x128x32xf32, #tpu.memory_space<vmem>>, vector<1x128x32xf32>
    %5 = vector.shape_cast %4 : vector<1x128x32xf32> to vector<128x32xf32>
    %6 = vector.shape_cast %5 : vector<128x32xf32> to vector<1x128x32xf32>
    %7 = vector.broadcast %6 : vector<1x128x32xf32> to vector<4x128x32xf32>
    "tpu.trace_start"() <{level = 10 : i32, message = "hnd,hed->hne"}> : () -> ()
    %cst = arith.constant dense<0.000000e+00> : vector<4x128x8xf32>
    %8 = tpu.matmul %7, %0, %cst {dimension_numbers = #tpu.dot_dimension_numbers<[2], [2], [1], [1], [0, 0, 0, 1, 1, 1], [0], [0]>} : vector<4x128x32xf32>, vector<4x8x32xf32>, vector<4x128x8xf32> -> vector<4x128x8xf32>
    %cst_14 = arith.constant dense<0.000000e+00> : vector<4x128x8xf32>
    %9 = tpu.matmul %7, %1, %cst_14 {dimension_numbers = #tpu.dot_dimension_numbers<[2], [2], [1], [1], [0, 0, 0, 1, 1, 1], [0], [0]>} : vector<4x128x32xf32>, vector<4x8x32xf32>, vector<4x128x8xf32> -> vector<4x128x8xf32>
    %cst_15 = arith.constant dense<0.000000e+00> : vector<4x128x8xf32>
    %10 = tpu.matmul %7, %2, %cst_15 {dimension_numbers = #tpu.dot_dimension_numbers<[2], [2], [1], [1], [0, 0, 0, 1, 1, 1], [0], [0]>} : vector<4x128x32xf32>, vector<4x8x32xf32>, vector<4x128x8xf32> -> vector<4x128x8xf32>
    "tpu.trace_stop"() : () -> ()
    "tpu.trace_start"() <{level = 10 : i32, message = "hne,hme->hnm"}> : () -> ()
    %cst_16 = arith.constant dense<0.000000e+00> : vector<4x128x128xf32>
    %11 = tpu.matmul %8, %9, %cst_16 {dimension_numbers = #tpu.dot_dimension_numbers<[2], [2], [1], [1], [0, 0, 0, 1, 1, 1], [0], [0]>} : vector<4x128x8xf32>, vector<4x128x8xf32>, vector<4x128x128xf32> -> vector<4x128x128xf32>
    "tpu.trace_stop"() : () -> ()
    %12 = tpu.iota {dimensions = array<i32: 2>} : vector<4x128x128xi32>
    %c8_i32 = arith.constant 8 : i32
    %13 = vector.broadcast %c8_i32 : i32 to vector<4x128x128xi32>
    %14 = arith.cmpi slt, %12, %13 : vector<4x128x128xi32>
    %cst_17 = arith.constant -1.000000e+30 : f32
    %15 = vector.broadcast %cst_17 : f32 to vector<4x128x128xf32>
    %16 = arith.select %14, %11, %15 : vector<4x128x128xi1>, vector<4x128x128xf32>
    %cst_18 = arith.constant dense<0xFF800000> : vector<4x128xf32>
    %17 = vector.multi_reduction <maximumf>, %16, %cst_18 [2] : vector<4x128x128xf32> to vector<4x128xf32>
    %18 = vector.shape_cast %17 : vector<4x128xf32> to vector<4x128x1xf32>
    %19 = vector.broadcast %18 : vector<4x128x1xf32> to vector<4x128x128xf32>
    %20 = arith.subf %16, %19 : vector<4x128x128xf32>
    %21 = math.exp %20 : vector<4x128x128xf32>
    %cst_19 = arith.constant dense<0.000000e+00> : vector<4x128xf32>
    %22 = vector.multi_reduction <add>, %21, %cst_19 [2] : vector<4x128x128xf32> to vector<4x128xf32>
    %23 = vector.shape_cast %22 : vector<4x128xf32> to vector<4x128x1xf32>
    "tpu.trace_start"() <{level = 10 : i32, message = "hnm,hme->hne"}> : () -> ()
    %cst_20 = arith.constant dense<0.000000e+00> : vector<4x128x8xf32>
    %24 = tpu.matmul %21, %10, %cst_20 {dimension_numbers = #tpu.dot_dimension_numbers<[2], [1], [1], [2], [0, 0, 0, 1, 1, 2], [0], [0]>} : vector<4x128x128xf32>, vector<4x128x8xf32>, vector<4x128x8xf32> -> vector<4x128x8xf32>
    "tpu.trace_stop"() : () -> ()
    %25 = tpu.reciprocal %23 : vector<4x128x1xf32> -> vector<4x128x1xf32>
    %26 = vector.broadcast %25 : vector<4x128x1xf32> to vector<4x128x8xf32>
    %27 = arith.mulf %24, %26 : vector<4x128x8xf32>
    "tpu.trace_start"() <{level = 10 : i32, message = "hne,hed->hnd"}> : () -> ()
    %cst_21 = arith.constant dense<0.000000e+00> : vector<4x128x32xf32>
    %28 = tpu.matmul %27, %3, %cst_21 {dimension_numbers = #tpu.dot_dimension_numbers<[2], [1], [1], [2], [0, 0, 0, 1, 1, 2], [0], [0]>} : vector<4x128x8xf32>, vector<4x8x32xf32>, vector<4x128x32xf32> -> vector<4x128x32xf32>
    "tpu.trace_stop"() : () -> ()
    %cst_22 = arith.constant dense<0.000000e+00> : vector<128x32xf32>
    %29 = vector.multi_reduction <add>, %28, %cst_22 [0] : vector<4x128x32xf32> to vector<128x32xf32>
    %c0_23 = arith.constant 0 : index
    %c0_24 = arith.constant 0 : index
    %c0_25 = arith.constant 0 : index
    %30 = vector.load %arg6[%c0_23, %c0_24, %c0_25] : memref<1x128x32xf32, #tpu.memory_space<vmem>>, vector<1x128x32xf32>
    %31 = vector.shape_cast %30 : vector<1x128x32xf32> to vector<128x32xf32>
    %32 = vector.shape_cast %29 : vector<128x32xf32> to vector<1x128x32xf32>
    tpu.vector_store %arg6[%c0_23, %c0_24, %c0_25], %32 {strides = array<i32>} : memref<1x128x32xf32, #tpu.memory_space<vmem>>, vector<1x128x32xf32>,
    return
  }
  func.func @transform_0(%arg0: i32) -> (i32, i32, i32) {
    %c0_i32 = arith.constant 0 : i32
    %c0_i32_0 = arith.constant 0 : i32
    %c0_i32_1 = arith.constant 0 : i32
    return %arg0, %c0_i32, %c0_i32_0 : i32, i32, i32
  }
  func.func @transform_1(%arg0: i32) -> (i32, i32, i32) {
    %c0_i32 = arith.constant 0 : i32
    %c0_i32_0 = arith.constant 0 : i32
    %c0_i32_1 = arith.constant 0 : i32
    %c0_i32_2 = arith.constant 0 : i32
    return %c0_i32, %c0_i32_0, %c0_i32_1 : i32, i32, i32
  }
  func.func @transform_2(%arg0: i32) -> (i32, i32, i32) {
    %c0_i32 = arith.constant 0 : i32
    %c0_i32_0 = arith.constant 0 : i32
    %c0_i32_1 = arith.constant 0 : i32
    %c0_i32_2 = arith.constant 0 : i32
    return %c0_i32, %c0_i32_0, %c0_i32_1 : i32, i32, i32
  }
  func.func @transform_3(%arg0: i32) -> (i32, i32, i32) {
    %c0_i32 = arith.constant 0 : i32
    %c0_i32_0 = arith.constant 0 : i32
    %c0_i32_1 = arith.constant 0 : i32
    %c0_i32_2 = arith.constant 0 : i32
    return %c0_i32, %c0_i32_0, %c0_i32_1 : i32, i32, i32
  }
  func.func @transform_4(%arg0: i32) -> (i32, i32, i32) {
    %c0_i32 = arith.constant 0 : i32
    %c0_i32_0 = arith.constant 0 : i32
    %c0_i32_1 = arith.constant 0 : i32
    %c0_i32_2 = arith.constant 0 : i32
    return %c0_i32, %c0_i32_0, %c0_i32_1 : i32, i32, i32
  }
  func.func @transform_5(%arg0: i32) -> (i32, i32, i32) {
    %c0_i32 = arith.constant 0 : i32
    %c0_i32_0 = arith.constant 0 : i32
    %c0_i32_1 = arith.constant 0 : i32
    return %arg0, %c0_i32, %c0_i32_0 : i32, i32, i32
  }
}

</mosaic_0001>

<llo_original>
// kernel: tpu_custom_call.1
$region0: #{tpu_custom_call.1}
  #allocation0 [shape = 'u32[]', space=smem, size = 0x4, offset = 0x4, fixed_abs, tag = 'smem constant byte address 0x4 - core index']
  #allocation1 [shape = 'u32[72,128]{1,0:T(1,128)}', space=vmem, size = 0x9000, scoped, tag = 'internal scratch']
  %s0 = inlined_call_operand.vmem [shape: f32[2,128,32], index: 0, kind: input, shape index: {}]
  %s1 = inlined_call_operand.vmem [shape: f32[4,8,32], index: 1, kind: input, shape index: {}]
  %s2 = inlined_call_operand.vmem [shape: f32[4,8,32], index: 2, kind: input, shape index: {}]
  %s3 = inlined_call_operand.vmem [shape: f32[4,8,32], index: 3, kind: input, shape index: {}]
  %s4 = inlined_call_operand.vmem [shape: f32[4,8,32], index: 4, kind: input, shape index: {}]
  %s5 = inlined_call_operand.vmem [shape: f32[2,128,32], index: 5, kind: output, shape index: {}]
  %s6 = sld [smem:[#allocation0]]
  $region53: #{tpu_custom_call.1} parent=0
    _
  %s8 = ssub.s32 1, %s6
  %s9 = scalar_select 0, %s8, %s6
  loop: start=0, step=1, limit=4
  $region2: #{tpu_custom_call.1} parent=0 // loop_pre_header
    _
  $region3: #{tpu_custom_call.1} parent=0 // loop_header
    %s11 = sphi 0, %s15
    %p12 = scmp.ge.s32.totalorder %s11, 4
    %s21 = sphi 0, %s23
    %s24 = sphi 0, %s21
    %s25 = sphi 0, %s24
    %s41 = sphi 0, %s25
    %s45 = sphi 0, %s45
    %s47 = sphi 0, %s45
    %s48 = sphi 0, %s47
    %s62 = sphi 0, %s48
    %s66 = sphi 0, %s66
    %s68 = sphi 0, %s66
    %s69 = sphi 0, %s68
    %s83 = sphi 0, %s69
    %s87 = sphi 0, %s87
    %s89 = sphi 0, %s87
    %s90 = sphi 0, %s89
    %s104 = sphi 0, %s90
    %s108 = sphi 0, %s108
    %s110 = sphi 0, %s108
    %s111 = sphi 0, %s110
    %s125 = sphi 0, %s111
    %s131 = sphi 0, %s133
    %s134 = sphi 0, %s131
    %s135 = sphi 0, %s134
    %s151 = sphi 0, %s135
  $region4: #{tpu_custom_call.1} parent=0 // loop_header_branch
    %14 = sbr.rel (%p12) target = $region8
  $region5: #{tpu_custom_call.1} parent=0 // loop_body
    %s16 = ssub.s32 %s11, 1
    %s17 = ssub.s32 %s11, 2
    %s18 = sadd.s32 %s11, 1
    %s19 = ssub.s32 %s11, %s18
    %p20 = scmp.eq.s32.totalorder %s19, 0
    %s22 = sadd.s32 %s21, 1
    %s23 = scalar_select %p20, %s21, %s22
    %p26 = pneg %p20
    %p27 = scmp.eq.s32.totalorder %s11, 1
    %p28 = por %p26, %p27
    %p29 = scmp.ne.s32.totalorder %s21, %s24
    %p30 = scmp.eq.s32.totalorder %s11, 0
    %p31 = por %p29, %p30
    %p32 = scmp.ne.s32.totalorder %s21, %s24
    %p33 = scmp.eq.s32.totalorder %s16, 1
    %p34 = por %p32, %p33
    %p35 = scmp.ne.s32.totalorder %s24, %s25
    %p36 = scmp.eq.s32.totalorder %s16, 0
    %p37 = por %p35, %p36
    %p38 = scmp.ne.s32.totalorder %s24, %s25
    %p39 = scmp.eq.s32.totalorder %s17, 1
    %p40 = por %p38, %p39
    %p42 = scmp.ne.s32.totalorder %s25, %s41
    %p43 = scmp.eq.s32.totalorder %s17, 0
    %p44 = por %p42, %p43
    %s46 = sadd.s32 %s45, 1
    %p49 = scmp.eq.s32.totalorder %s11, 1
    %p50 = scmp.ne.s32.totalorder %s45, %s47
    %p51 = scmp.eq.s32.totalorder %s11, 0
    %p52 = por %p50, %p51
    %p53 = scmp.ne.s32.totalorder %s45, %s47
    %p54 = scmp.eq.s32.totalorder %s16, 1
    %p55 = por %p53, %p54
    %p56 = scmp.ne.s32.totalorder %s47, %s48
    %p57 = scmp.eq.s32.totalorder %s16, 0
    %p58 = por %p56, %p57
    %p59 = scmp.ne.s32.totalorder %s47, %s48
    %p60 = scmp.eq.s32.totalorder %s17, 1
    %p61 = por %p59, %p60
    %p63 = scmp.ne.s32.totalorder %s48, %s62
    %p64 = scmp.eq.s32.totalorder %s17, 0
    %p65 = por %p63, %p64
    %s67 = sadd.s32 %s66, 1
    %p70 = scmp.eq.s32.totalorder %s11, 1
    %p71 = scmp.ne.s32.totalorder %s66, %s68
    %p72 = scmp.eq.s32.totalorder %s11, 0
    %p73 = por %p71, %p72
    %p74 = scmp.ne.s32.totalorder %s66, %s68
    %p75 = scmp.eq.s32.totalorder %s16, 1
    %p76 = por %p74, %p75
    %p77 = scmp.ne.s32.totalorder %s68, %s69
    %p78 = scmp.eq.s32.totalorder %s16, 0
    %p79 = por %p77, %p78
    %p80 = scmp.ne.s32.totalorder %s68, %s69
    %p81 = scmp.eq.s32.totalorder %s17, 1
    %p82 = por %p80, %p81
    %p84 = scmp.ne.s32.totalorder %s69, %s83
    %p85 = scmp.eq.s32.totalorder %s17, 0
    %p86 = por %p84, %p85
    %s88 = sadd.s32 %s87, 1
    %p91 = scmp.eq.s32.totalorder %s11, 1
    %p92 = scmp.ne.s32.totalorder %s87, %s89
    %p93 = scmp.eq.s32.totalorder %s11, 0
    %p94 = por %p92, %p93
    %p95 = scmp.ne.s32.totalorder %s87, %s89
    %p96 = scmp.eq.s32.totalorder %s16, 1
    %p97 = por %p95, %p96
    %p98 = scmp.ne.s32.totalorder %s89, %s90
    %p99 = scmp.eq.s32.totalorder %s16, 0
    %p100 = por %p98, %p99
    %p101 = scmp.ne.s32.totalorder %s89, %s90
    %p102 = scmp.eq.s32.totalorder %s17, 1
    %p103 = por %p101, %p102
    %p105 = scmp.ne.s32.totalorder %s90, %s104
    %p106 = scmp.eq.s32.totalorder %s17, 0
    %p107 = por %p105, %p106
    %s109 = sadd.s32 %s108, 1
    %p112 = scmp.eq.s32.totalorder %s11, 1
    %p113 = scmp.ne.s32.totalorder %s108, %s110
    %p114 = scmp.eq.s32.totalorder %s11, 0
    %p115 = por %p113, %p114
    %p116 = scmp.ne.s32.totalorder %s108, %s110
    %p117 = scmp.eq.s32.totalorder %s16, 1
    %p118 = por %p116, %p117
    %p119 = scmp.ne.s32.totalorder %s110, %s111
    %p120 = scmp.eq.s32.totalorder %s16, 0
    %p121 = por %p119, %p120
    %p122 = scmp.ne.s32.totalorder %s110, %s111
    %p123 = scmp.eq.s32.totalorder %s17, 1
    %p124 = por %p122, %p123
    %p126 = scmp.ne.s32.totalorder %s111, %s125
    %p127 = scmp.eq.s32.totalorder %s17, 0
    %p128 = por %p126, %p127
    %s129 = ssub.s32 %s11, %s18
    %p130 = scmp.eq.s32.totalorder %s129, 0
    %s132 = sadd.s32 %s131, 1
    %s133 = scalar_select %p130, %s131, %s132
    %p136 = pneg %p130
    %p137 = scmp.eq.s32.totalorder %s11, 1
    %p138 = por %p136, %p137
    %p139 = scmp.ne.s32.totalorder %s131, %s134
    %p140 = scmp.eq.s32.totalorder %s11, 0
    %p141 = por %p139, %p140
    %p142 = scmp.ne.s32.totalorder %s131, %s134
    %p143 = scmp.eq.s32.totalorder %s16, 1
    %p144 = por %p142, %p143
    %p145 = scmp.ne.s32.totalorder %s134, %s135
    %p146 = scmp.eq.s32.totalorder %s16, 0
    %p147 = por %p145, %p146
    %p148 = scmp.ne.s32.totalorder %s134, %s135
    %p149 = scmp.eq.s32.totalorder %s17, 1
    %p150 = por %p148, %p149
    %p152 = scmp.ne.s32.totalorder %s135, %s151
    %p153 = scmp.eq.s32.totalorder %s17, 0
    %p154 = por %p152, %p153
    %p155 = scmp.le.s32.totalorder 1, %s11
    %p156 = scmp.lt.s32.totalorder %s11, 3
    %p157 = pnand %p155, %p156
    %p158 = pneg %p157
    // Predicated region
    $region9: #{tpu_custom_call.1} parent=5 // pred_check
      _
    $region10: #{tpu_custom_call.1} parent=5 // pred_check_branch
      %160 = sbr.rel (%p157) target = $region12
    $region11: #{tpu_custom_call.1} parent=5 // pred_region
      %s161 = ssub.s32 %s11, 1
      // Predicated region
      $region13: #{tpu_custom_call.1} parent=11 // pred_check
        %p162 = pneg %p58
      $region14: #{tpu_custom_call.1} parent=11 // pred_check_branch
        %164 = sbr.rel (%p162) target = $region16
      $region15: #{tpu_custom_call.1} parent=11 // pred_region
        _
      $region16: #{tpu_custom_call.1} parent=11 // pred_fallthru
        _
      // Predicated region
      $region17: #{tpu_custom_call.1} parent=11 // pred_check
        %p165 = pneg %p79
      $region18: #{tpu_custom_call.1} parent=11 // pred_check_branch
        %167 = sbr.rel (%p165) target = $region20
      $region19: #{tpu_custom_call.1} parent=11 // pred_region
        _
      $region20: #{tpu_custom_call.1} parent=11 // pred_fallthru
        _
      // Predicated region
      $region21: #{tpu_custom_call.1} parent=11 // pred_check
        %p168 = pneg %p100
      $region22: #{tpu_custom_call.1} parent=11 // pred_check_branch
        %170 = sbr.rel (%p168) target = $region24
      $region23: #{tpu_custom_call.1} parent=11 // pred_region
        _
      $region24: #{tpu_custom_call.1} parent=11 // pred_fallthru
        _
      // Predicated region
      $region25: #{tpu_custom_call.1} parent=11 // pred_check
        %p171 = pneg %p121
      $region26: #{tpu_custom_call.1} parent=11 // pred_check_branch
        %173 = sbr.rel (%p171) target = $region28
      $region27: #{tpu_custom_call.1} parent=11 // pred_region
        _
      $region28: #{tpu_custom_call.1} parent=11 // pred_fallthru
        _
    $region12: #{tpu_custom_call.1} parent=5 // pred_fallthru
      _
    %p174 = scmp.lt.s32.totalorder %s11, 2
    // Predicated region
    $region29: #{tpu_custom_call.1} parent=5 // pred_check
      %p175 = pneg %p174
    $region30: #{tpu_custom_call.1} parent=5 // pred_check_branch
      %177 = sbr.rel (%p175) target = $region32
    $region31: #{tpu_custom_call.1} parent=5 // pred_region
      // Predicated region
      $region33: #{tpu_custom_call.1} parent=31 // pred_check
        %p178 = pneg %p31
      $region34: #{tpu_custom_call.1} parent=31 // pred_check_branch
        %180 = sbr.rel (%p178) target = $region36
      $region35: #{tpu_custom_call.1} parent=31 // pred_region
        %p181 = scmp.lt.s32.totalorder %s11, 1
        %s182 = scalar_select %p181, %s11, 1
        %s183 = smul.addr %s182, 16
        %s184 = smul.addr %s183, 8
        %s185 = scalar_lea.vmem %s0, %s184
      $region36: #{tpu_custom_call.1} parent=31 // pred_fallthru
        _
    $region32: #{tpu_custom_call.1} parent=5 // pred_fallthru
      _
    %p186 = scmp.le.s32.totalorder 1, %s11
    %p187 = scmp.lt.s32.totalorder %s11, 3
    %p188 = pnand %p186, %p187
    %p189 = pneg %p188
    // Predicated region
    $region37: #{tpu_custom_call.1} parent=5 // pred_check
      _
    $region38: #{tpu_custom_call.1} parent=5 // pred_check_branch
      %191 = sbr.rel (%p188) target = $region40
    $region39: #{tpu_custom_call.1} parent=5 // pred_region
      %s192 = ssub.s32 %s11, 1
      %p193 = scmp.lt.s32.totalorder %s16, 1
      %s194 = scalar_select %p193, %s16, 1
      %s195 = smul.addr %s194, 16
      %s196 = smul.addr %s195, 8
      %s197 = scalar_lea.vmem %s0, %s196
      %p198 = pneg %p37
      %p199 = pneg %p34
      %p200 = pneg %p58
      %p201 = pneg %p55
      %p202 = pneg %p79
      %p203 = pneg %p76
      %p204 = pneg %p100
      %p205 = pneg %p97
      %p206 = pneg %p121
      %p207 = pneg %p118
      %p208 = pneg %p147
      %p209 = pneg %p144
      %p210 = scmp.lt.s32.totalorder %s16, 1
      %s211 = scalar_select %p210, %s16, 1
      %s212 = smul.addr %s211, 16
      %s213 = smul.addr %s212, 8
      %s214 = scalar_lea.vmem %s5, %s213
      %p215 = scmp.lt.s32.totalorder %s16, 1
      %s216 = scalar_select %p215, %s16, 1
      %s217 = smul.addr %s216, 16
      %s218 = smul.addr %s217, 8
      %s219 = scalar_lea.vmem %s0, %s218
      %p220 = scmp.lt.s32.totalorder %s16, 1
      %s221 = scalar_select %p220, %s16, 1
      %s222 = smul.addr %s221, 16
      %s223 = smul.addr %s222, 8
      %s224 = scalar_lea.vmem %s5, %s223
      %v225 = vld [vmem:[%s1] sm:$0xff]
      %v226 = vld [vmem:[%s1 + $0x8] sm:$0xff]
      %v227 = vld [vmem:[%s1 + $0x10] sm:$0xff]
      %v228 = vld [vmem:[%s1 + $0x18] sm:$0xff]
      %v229 = vld [vmem:[%s2] sm:$0xff]
      %v230 = vld [vmem:[%s2 + $0x8] sm:$0xff]
      %v231 = vld [vmem:[%s2 + $0x10] sm:$0xff]
      %v232 = vld [vmem:[%s2 + $0x18] sm:$0xff]
      %v233 = vld [vmem:[%s3] sm:$0xff]
      %v234 = vld [vmem:[%s3 + $0x8] sm:$0xff]
      %v235 = vld [vmem:[%s3 + $0x10] sm:$0xff]
      %v236 = vld [vmem:[%s3 + $0x18] sm:$0xff]
      %v237 = vld [vmem:[%s4] sm:$0xff]
      %v238 = vld [vmem:[%s4 + $0x8] sm:$0xff]
      %v239 = vld [vmem:[%s4 + $0x10] sm:$0xff]
      %v240 = vld [vmem:[%s4 + $0x18] sm:$0xff]
      %v241 = vld [vmem:[%s219] sm:$0xff]
      %v242 = vld [vmem:[%s219 + $0x8] sm:$0xff]
      %v243 = vld [vmem:[%s219 + $0x10] sm:$0xff]
      %v244 = vld [vmem:[%s219 + $0x18] sm:$0xff]
      %v245 = vld [vmem:[%s219 + $0x20] sm:$0xff]
      %v246 = vld [vmem:[%s219 + $0x28] sm:$0xff]
      %v247 = vld [vmem:[%s219 + $0x30] sm:$0xff]
      %v248 = vld [vmem:[%s219 + $0x38] sm:$0xff]
      %v249 = vld [vmem:[%s219 + $0x40] sm:$0xff]
      %v250 = vld [vmem:[%s219 + $0x48] sm:$0xff]
      %v251 = vld [vmem:[%s219 + $0x50] sm:$0xff]
      %v252 = vld [vmem:[%s219 + $0x58] sm:$0xff]
      %v253 = vld [vmem:[%s219 + $0x60] sm:$0xff]
      %v254 = vld [vmem:[%s219 + $0x68] sm:$0xff]
      %v255 = vld [vmem:[%s219 + $0x70] sm:$0xff]
      %v256 = vld [vmem:[%s219 + $0x78] sm:$0xff]
      %vm257 = vcmask 261120
      %v259 = vsel %vm257, %v241, 0
      %v262 = vsel %vm257, %v242, 0
      %v265 = vsel %vm257, %v243, 0
      %v268 = vsel %vm257, %v244, 0
      %v271 = vsel %vm257, %v245, 0
      %v274 = vsel %vm257, %v246, 0
      %v277 = vsel %vm257, %v247, 0
      %v280 = vsel %vm257, %v248, 0
      %v283 = vsel %vm257, %v249, 0
      %v286 = vsel %vm257, %v250, 0
      %v289 = vsel %vm257, %v251, 0
      %v292 = vsel %vm257, %v252, 0
      %v295 = vsel %vm257, %v253, 0
      %v298 = vsel %vm257, %v254, 0
      %v301 = vsel %vm257, %v255, 0
      %v304 = vsel %vm257, %v256, 0
      %v307 = vsel %vm257, %v225, 0
      %309 = vmatpush.xpose.msra.mxu0 0.0
      %310 = vmatpush.xpose.msra.mxu0 0.0
      %311 = vmatpush.xpose.msra.mxu0 0.0
      %312 = vmatpush.xpose.msra.mxu0 0.0
      %313 = vmatpush.xpose.msra.mxu0 0.0
      %314 = vmatpush.xpose.msra.mxu0 0.0
      %315 = vmatpush.xpose.msra.mxu0 0.0
      %316 = vmatpush.xpose.msra.mxu0 0.0
      %317 = vmatpush.xpose.msra.mxu0 0.0
      %318 = vmatpush.xpose.msra.mxu0 0.0
      %319 = vmatpush.xpose.msra.mxu0 0.0
      %320 = vmatpush.xpose.msra.mxu0 0.0
      %321 = vmatpush.xpose.msra.mxu0 0.0
      %322 = vmatpush.xpose.msra.mxu0 0.0
      %323 = vmatpush.xpose.msra.mxu0 0.0
      %324 = vmatpush.xpose.msra.mxu0 %v307
      %325 = vmatmul.f32.gmra.mxu0 %v259
      %v326 = vpop.f32.mrf.mxu0
      %v327 = vadd.f32 0.0, %v326
      %328 = vmatmul.f32.gmra.mxu0 %v262
      %v329 = vpop.f32.mrf.mxu0
      %v330 = vadd.f32 0.0, %v329
      %331 = vmatmul.f32.gmra.mxu0 %v265
      %v332 = vpop.f32.mrf.mxu0
      %v333 = vadd.f32 0.0, %v332
      %334 = vmatmul.f32.gmra.mxu0 %v268
      %v335 = vpop.f32.mrf.mxu0
      %v336 = vadd.f32 0.0, %v335
      %337 = vmatmul.f32.gmra.mxu0 %v271
      %v338 = vpop.f32.mrf.mxu0
      %v339 = vadd.f32 0.0, %v338
      %340 = vmatmul.f32.gmra.mxu0 %v274
      %v341 = vpop.f32.mrf.mxu0
      %v342 = vadd.f32 0.0, %v341
      %343 = vmatmul.f32.gmra.mxu0 %v277
      %v344 = vpop.f32.mrf.mxu0
      %v345 = vadd.f32 0.0, %v344
      %346 = vmatmul.f32.gmra.mxu0 %v280
      %v347 = vpop.f32.mrf.mxu0
      %v348 = vadd.f32 0.0, %v347
      %349 = vmatmul.f32.gmra.mxu0 %v283
      %v350 = vpop.f32.mrf.mxu0
      %v351 = vadd.f32 0.0, %v350
      %352 = vmatmul.f32.gmra.mxu0 %v286
      %v353 = vpop.f32.mrf.mxu0
      %v354 = vadd.f32 0.0, %v353
      %355 = vmatmul.f32.gmra.mxu0 %v289
      %v356 = vpop.f32.mrf.mxu0
      %v357 = vadd.f32 0.0, %v356
      %358 = vmatmul.f32.gmra.mxu0 %v292
      %v359 = vpop.f32.mrf.mxu0
      %v360 = vadd.f32 0.0, %v359
      %361 = vmatmul.f32.gmra.mxu0 %v295
      %v362 = vpop.f32.mrf.mxu0
      %v363 = vadd.f32 0.0, %v362
      %364 = vmatmul.f32.gmra.mxu0 %v298
      %v365 = vpop.f32.mrf.mxu0
      %v366 = vadd.f32 0.0, %v365
      %367 = vmatmul.f32.gmra.mxu0 %v301
      %v368 = vpop.f32.mrf.mxu0
      %v369 = vadd.f32 0.0, %v368
      %370 = vmatmul.f32.gmra.mxu0 %v304
      %v371 = vpop.f32.mrf.mxu0
      %v372 = vadd.f32 0.0, %v371
      %373 = vdwg.mxu0
      %v375 = vsel %vm257, %v226, 0
      %377 = vmatpush.xpose.msra.mxu0 0.0
      %378 = vmatpush.xpose.msra.mxu0 0.0
      %379 = vmatpush.xpose.msra.mxu0 0.0
      %380 = vmatpush.xpose.msra.mxu0 0.0
      %381 = vmatpush.xpose.msra.mxu0 0.0
      %382 = vmatpush.xpose.msra.mxu0 0.0
      %383 = vmatpush.xpose.msra.mxu0 0.0
      %384 = vmatpush.xpose.msra.mxu0 0.0
      %385 = vmatpush.xpose.msra.mxu0 0.0
      %386 = vmatpush.xpose.msra.mxu0 0.0
      %387 = vmatpush.xpose.msra.mxu0 0.0
      %388 = vmatpush.xpose.msra.mxu0 0.0
      %389 = vmatpush.xpose.msra.mxu0 0.0
      %390 = vmatpush.xpose.msra.mxu0 0.0
      %391 = vmatpush.xpose.msra.mxu0 0.0
      %392 = vmatpush.xpose.msra.mxu0 %v375
      %393 = vmatmul.f32.gmra.mxu0 %v259
      %v394 = vpop.f32.mrf.mxu0
      %v395 = vadd.f32 0.0, %v394
      %396 = vmatmul.f32.gmra.mxu0 %v262
      %v397 = vpop.f32.mrf.mxu0
      %v398 = vadd.f32 0.0, %v397
      %399 = vmatmul.f32.gmra.mxu0 %v265
      %v400 = vpop.f32.mrf.mxu0
      %v401 = vadd.f32 0.0, %v400
      %402 = vmatmul.f32.gmra.mxu0 %v268
      %v403 = vpop.f32.mrf.mxu0
      %v404 = vadd.f32 0.0, %v403
      %405 = vmatmul.f32.gmra.mxu0 %v271
      %v406 = vpop.f32.mrf.mxu0
      %v407 = vadd.f32 0.0, %v406
      %408 = vmatmul.f32.gmra.mxu0 %v274
      %v409 = vpop.f32.mrf.mxu0
      %v410 = vadd.f32 0.0, %v409
      %411 = vmatmul.f32.gmra.mxu0 %v277
      %v412 = vpop.f32.mrf.mxu0
      %v413 = vadd.f32 0.0, %v412
      %414 = vmatmul.f32.gmra.mxu0 %v280
      %v415 = vpop.f32.mrf.mxu0
      %v416 = vadd.f32 0.0, %v415
      %417 = vmatmul.f32.gmra.mxu0 %v283
      %v418 = vpop.f32.mrf.mxu0
      %v419 = vadd.f32 0.0, %v418
      %420 = vmatmul.f32.gmra.mxu0 %v286
      %v421 = vpop.f32.mrf.mxu0
      %v422 = vadd.f32 0.0, %v421
      %423 = vmatmul.f32.gmra.mxu0 %v289
      %v424 = vpop.f32.mrf.mxu0
      %v425 = vadd.f32 0.0, %v424
      %426 = vmatmul.f32.gmra.mxu0 %v292
      %v427 = vpop.f32.mrf.mxu0
      %v428 = vadd.f32 0.0, %v427
      %429 = vmatmul.f32.gmra.mxu0 %v295
      %v430 = vpop.f32.mrf.mxu0
      %v431 = vadd.f32 0.0, %v430
      %432 = vmatmul.f32.gmra.mxu0 %v298
      %v433 = vpop.f32.mrf.mxu0
      %v434 = vadd.f32 0.0, %v433
      %435 = vmatmul.f32.gmra.mxu0 %v301
      %v436 = vpop.f32.mrf.mxu0
      %v437 = vadd.f32 0.0, %v436
      %438 = vmatmul.f32.gmra.mxu0 %v304
      %v439 = vpop.f32.mrf.mxu0
      %v440 = vadd.f32 0.0, %v439
      %441 = vdwg.mxu0
      %v443 = vsel %vm257, %v227, 0
      %445 = vmatpush.xpose.msra.mxu0 0.0
      %446 = vmatpush.xpose.msra.mxu0 0.0
      %447 = vmatpush.xpose.msra.mxu0 0.0
      %448 = vmatpush.xpose.msra.mxu0 0.0
      %449 = vmatpush.xpose.msra.mxu0 0.0
      %450 = vmatpush.xpose.msra.mxu0 0.0
      %451 = vmatpush.xpose.msra.mxu0 0.0
      %452 = vmatpush.xpose.msra.mxu0 0.0
      %453 = vmatpush.xpose.msra.mxu0 0.0
      %454 = vmatpush.xpose.msra.mxu0 0.0
      %455 = vmatpush.xpose.msra.mxu0 0.0
      %456 = vmatpush.xpose.msra.mxu0 0.0
      %457 = vmatpush.xpose.msra.mxu0 0.0
      %458 = vmatpush.xpose.msra.mxu0 0.0
      %459 = vmatpush.xpose.msra.mxu0 0.0
      %460 = vmatpush.xpose.msra.mxu0 %v443
      %461 = vmatmul.f32.gmra.mxu0 %v259
      %v462 = vpop.f32.mrf.mxu0
      %v463 = vadd.f32 0.0, %v462
      %464 = vmatmul.f32.gmra.mxu0 %v262
      %v465 = vpop.f32.mrf.mxu0
      %v466 = vadd.f32 0.0, %v465
      %467 = vmatmul.f32.gmra.mxu0 %v265
      %v468 = vpop.f32.mrf.mxu0
      %v469 = vadd.f32 0.0, %v468
      %470 = vmatmul.f32.gmra.mxu0 %v268
      %v471 = vpop.f32.mrf.mxu0
      %v472 = vadd.f32 0.0, %v471
      %473 = vmatmul.f32.gmra.mxu0 %v271
      %v474 = vpop.f32.mrf.mxu0
      %v475 = vadd.f32 0.0, %v474
      %476 = vmatmul.f32.gmra.mxu0 %v274
      %v477 = vpop.f32.mrf.mxu0
      %v478 = vadd.f32 0.0, %v477
      %479 = vmatmul.f32.gmra.mxu0 %v277
      %v480 = vpop.f32.mrf.mxu0
      %v481 = vadd.f32 0.0, %v480
      %482 = vmatmul.f32.gmra.mxu0 %v280
      %v483 = vpop.f32.mrf.mxu0
      %v484 = vadd.f32 0.0, %v483
      %485 = vmatmul.f32.gmra.mxu0 %v283
      %v486 = vpop.f32.mrf.mxu0
      %v487 = vadd.f32 0.0, %v486
      %488 = vmatmul.f32.gmra.mxu0 %v286
      %v489 = vpop.f32.mrf.mxu0
      %v490 = vadd.f32 0.0, %v489
      %491 = vmatmul.f32.gmra.mxu0 %v289
      %v492 = vpop.f32.mrf.mxu0
      %v493 = vadd.f32 0.0, %v492
      %494 = vmatmul.f32.gmra.mxu0 %v292
      %v495 = vpop.f32.mrf.mxu0
      %v496 = vadd.f32 0.0, %v495
      %497 = vmatmul.f32.gmra.mxu0 %v295
      %v498 = vpop.f32.mrf.mxu0
      %v499 = vadd.f32 0.0, %v498
      %500 = vmatmul.f32.gmra.mxu0 %v298
      %v501 = vpop.f32.mrf.mxu0
      %v502 = vadd.f32 0.0, %v501
      %503 = vmatmul.f32.gmra.mxu0 %v301
      %v504 = vpop.f32.mrf.mxu0
      %v505 = vadd.f32 0.0, %v504
      %506 = vmatmul.f32.gmra.mxu0 %v304
      %v507 = vpop.f32.mrf.mxu0
      %v508 = vadd.f32 0.0, %v507
      %509 = vdwg.mxu0
      %v511 = vsel %vm257, %v228, 0
      %513 = vmatpush.xpose.msra.mxu0 0.0
      %514 = vmatpush.xpose.msra.mxu0 0.0
      %515 = vmatpush.xpose.msra.mxu0 0.0
      %516 = vmatpush.xpose.msra.mxu0 0.0
      %517 = vmatpush.xpose.msra.mxu0 0.0
      %518 = vmatpush.xpose.msra.mxu0 0.0
      %519 = vmatpush.xpose.msra.mxu0 0.0
      %520 = vmatpush.xpose.msra.mxu0 0.0
      %521 = vmatpush.xpose.msra.mxu0 0.0
      %522 = vmatpush.xpose.msra.mxu0 0.0
      %523 = vmatpush.xpose.msra.mxu0 0.0
      %524 = vmatpush.xpose.msra.mxu0 0.0
      %525 = vmatpush.xpose.msra.mxu0 0.0
      %526 = vmatpush.xpose.msra.mxu0 0.0
      %527 = vmatpush.xpose.msra.mxu0 0.0
      %528 = vmatpush.xpose.msra.mxu0 %v511
      %529 = vmatmul.f32.gmra.mxu0 %v259
      %v530 = vpop.f32.mrf.mxu0
      %v531 = vadd.f32 0.0, %v530
      %532 = vmatmul.f32.gmra.mxu0 %v262
      %v533 = vpop.f32.mrf.mxu0
      %v534 = vadd.f32 0.0, %v533
      %535 = vmatmul.f32.gmra.mxu0 %v265
      %v536 = vpop.f32.mrf.mxu0
      %v537 = vadd.f32 0.0, %v536
      %538 = vmatmul.f32.gmra.mxu0 %v268
      %v539 = vpop.f32.mrf.mxu0
      %v540 = vadd.f32 0.0, %v539
      %541 = vmatmul.f32.gmra.mxu0 %v271
      %v542 = vpop.f32.mrf.mxu0
      %v543 = vadd.f32 0.0, %v542
      %544 = vmatmul.f32.gmra.mxu0 %v274
      %v545 = vpop.f32.mrf.mxu0
      %v546 = vadd.f32 0.0, %v545
      %547 = vmatmul.f32.gmra.mxu0 %v277
      %v548 = vpop.f32.mrf.mxu0
      %v549 = vadd.f32 0.0, %v548
      %550 = vmatmul.f32.gmra.mxu0 %v280
      %v551 = vpop.f32.mrf.mxu0
      %v552 = vadd.f32 0.0, %v551
      %553 = vmatmul.f32.gmra.mxu0 %v283
      %v554 = vpop.f32.mrf.mxu0
      %v555 = vadd.f32 0.0, %v554
      %556 = vmatmul.f32.gmra.mxu0 %v286
      %v557 = vpop.f32.mrf.mxu0
      %v558 = vadd.f32 0.0, %v557
      %559 = vmatmul.f32.gmra.mxu0 %v289
      %v560 = vpop.f32.mrf.mxu0
      %v561 = vadd.f32 0.0, %v560
      %562 = vmatmul.f32.gmra.mxu0 %v292
      %v563 = vpop.f32.mrf.mxu0
      %v564 = vadd.f32 0.0, %v563
      %565 = vmatmul.f32.gmra.mxu0 %v295
      %v566 = vpop.f32.mrf.mxu0
      %v567 = vadd.f32 0.0, %v566
      %568 = vmatmul.f32.gmra.mxu0 %v298
      %v569 = vpop.f32.mrf.mxu0
      %v570 = vadd.f32 0.0, %v569
      %571 = vmatmul.f32.gmra.mxu0 %v301
      %v572 = vpop.f32.mrf.mxu0
      %v573 = vadd.f32 0.0, %v572
      %574 = vmatmul.f32.gmra.mxu0 %v304
      %v575 = vpop.f32.mrf.mxu0
      %v576 = vadd.f32 0.0, %v575
      %577 = vdwg.mxu0
      %v579 = vsel %vm257, %v229, 0
      %581 = vmatpush.xpose.msra.mxu0 0.0
      %582 = vmatpush.xpose.msra.mxu0 0.0
      %583 = vmatpush.xpose.msra.mxu0 0.0
      %584 = vmatpush.xpose.msra.mxu0 0.0
      %585 = vmatpush.xpose.msra.mxu0 0.0
      %586 = vmatpush.xpose.msra.mxu0 0.0
      %587 = vmatpush.xpose.msra.mxu0 0.0
      %588 = vmatpush.xpose.msra.mxu0 0.0
      %589 = vmatpush.xpose.msra.mxu0 0.0
      %590 = vmatpush.xpose.msra.mxu0 0.0
      %591 = vmatpush.xpose.msra.mxu0 0.0
      %592 = vmatpush.xpose.msra.mxu0 0.0
      %593 = vmatpush.xpose.msra.mxu0 0.0
      %594 = vmatpush.xpose.msra.mxu0 0.0
      %595 = vmatpush.xpose.msra.mxu0 0.0
      %596 = vmatpush.xpose.msra.mxu0 %v579
      %597 = vmatmul.f32.gmra.mxu0 %v259
      %v598 = vpop.f32.mrf.mxu0
      %v599 = vadd.f32 0.0, %v598
      %600 = vmatmul.f32.gmra.mxu0 %v262
      %v601 = vpop.f32.mrf.mxu0
      %v602 = vadd.f32 0.0, %v601
      %603 = vmatmul.f32.gmra.mxu0 %v265
      %v604 = vpop.f32.mrf.mxu0
      %v605 = vadd.f32 0.0, %v604
      %606 = vmatmul.f32.gmra.mxu0 %v268
      %v607 = vpop.f32.mrf.mxu0
      %v608 = vadd.f32 0.0, %v607
      %609 = vmatmul.f32.gmra.mxu0 %v271
      %v610 = vpop.f32.mrf.mxu0
      %v611 = vadd.f32 0.0, %v610
      %612 = vmatmul.f32.gmra.mxu0 %v274
      %v613 = vpop.f32.mrf.mxu0
      %v614 = vadd.f32 0.0, %v613
      %615 = vmatmul.f32.gmra.mxu0 %v277
      %v616 = vpop.f32.mrf.mxu0
      %v617 = vadd.f32 0.0, %v616
      %618 = vmatmul.f32.gmra.mxu0 %v280
      %v619 = vpop.f32.mrf.mxu0
      %v620 = vadd.f32 0.0, %v619
      %621 = vmatmul.f32.gmra.mxu0 %v283
      %v622 = vpop.f32.mrf.mxu0
      %v623 = vadd.f32 0.0, %v622
      %624 = vmatmul.f32.gmra.mxu0 %v286
      %v625 = vpop.f32.mrf.mxu0
      %v626 = vadd.f32 0.0, %v625
      %627 = vmatmul.f32.gmra.mxu0 %v289
      %v628 = vpop.f32.mrf.mxu0
      %v629 = vadd.f32 0.0, %v628
      %630 = vmatmul.f32.gmra.mxu0 %v292
      %v631 = vpop.f32.mrf.mxu0
      %v632 = vadd.f32 0.0, %v631
      %633 = vmatmul.f32.gmra.mxu0 %v295
      %v634 = vpop.f32.mrf.mxu0
      %v635 = vadd.f32 0.0, %v634
      %636 = vmatmul.f32.gmra.mxu0 %v298
      %v637 = vpop.f32.mrf.mxu0
      %v638 = vadd.f32 0.0, %v637
      %639 = vmatmul.f32.gmra.mxu0 %v301
      %v640 = vpop.f32.mrf.mxu0
      %v641 = vadd.f32 0.0, %v640
      %642 = vmatmul.f32.gmra.mxu0 %v304
      %v643 = vpop.f32.mrf.mxu0
      %v644 = vadd.f32 0.0, %v643
      %645 = vdwg.mxu0
      %v647 = vsel %vm257, %v230, 0
      %649 = vmatpush.xpose.msra.mxu0 0.0
      %650 = vmatpush.xpose.msra.mxu0 0.0
      %651 = vmatpush.xpose.msra.mxu0 0.0
      %652 = vmatpush.xpose.msra.mxu0 0.0
      %653 = vmatpush.xpose.msra.mxu0 0.0
      %654 = vmatpush.xpose.msra.mxu0 0.0
      %655 = vmatpush.xpose.msra.mxu0 0.0
      %656 = vmatpush.xpose.msra.mxu0 0.0
      %657 = vmatpush.xpose.msra.mxu0 0.0
      %658 = vmatpush.xpose.msra.mxu0 0.0
      %659 = vmatpush.xpose.msra.mxu0 0.0
      %660 = vmatpush.xpose.msra.mxu0 0.0
      %661 = vmatpush.xpose.msra.mxu0 0.0
      %662 = vmatpush.xpose.msra.mxu0 0.0
      %663 = vmatpush.xpose.msra.mxu0 0.0
      %664 = vmatpush.xpose.msra.mxu0 %v647
      %665 = vmatmul.f32.gmra.mxu0 %v259
      %v666 = vpop.f32.mrf.mxu0
      %v667 = vadd.f32 0.0, %v666
      %668 = vmatmul.f32.gmra.mxu0 %v262
      %v669 = vpop.f32.mrf.mxu0
      %v670 = vadd.f32 0.0, %v669
      %671 = vmatmul.f32.gmra.mxu0 %v265
      %v672 = vpop.f32.mrf.mxu0
      %v673 = vadd.f32 0.0, %v672
      %674 = vmatmul.f32.gmra.mxu0 %v268
      %v675 = vpop.f32.mrf.mxu0
      %v676 = vadd.f32 0.0, %v675
      %677 = vmatmul.f32.gmra.mxu0 %v271
      %v678 = vpop.f32.mrf.mxu0
      %v679 = vadd.f32 0.0, %v678
      %680 = vmatmul.f32.gmra.mxu0 %v274
      %v681 = vpop.f32.mrf.mxu0
      %v682 = vadd.f32 0.0, %v681
      %683 = vmatmul.f32.gmra.mxu0 %v277
      %v684 = vpop.f32.mrf.mxu0
      %v685 = vadd.f32 0.0, %v684
      %686 = vmatmul.f32.gmra.mxu0 %v280
      %v687 = vpop.f32.mrf.mxu0
      %v688 = vadd.f32 0.0, %v687
      %689 = vmatmul.f32.gmra.mxu0 %v283
      %v690 = vpop.f32.mrf.mxu0
      %v691 = vadd.f32 0.0, %v690
      %692 = vmatmul.f32.gmra.mxu0 %v286
      %v693 = vpop.f32.mrf.mxu0
      %v694 = vadd.f32 0.0, %v693
      %695 = vmatmul.f32.gmra.mxu0 %v289
      %v696 = vpop.f32.mrf.mxu0
      %v697 = vadd.f32 0.0, %v696
      %698 = vmatmul.f32.gmra.mxu0 %v292
      %v699 = vpop.f32.mrf.mxu0
      %v700 = vadd.f32 0.0, %v699
      %701 = vmatmul.f32.gmra.mxu0 %v295
      %v702 = vpop.f32.mrf.mxu0
      %v703 = vadd.f32 0.0, %v702
      %704 = vmatmul.f32.gmra.mxu0 %v298
      %v705 = vpop.f32.mrf.mxu0
      %v706 = vadd.f32 0.0, %v705
      %707 = vmatmul.f32.gmra.mxu0 %v301
      %v708 = vpop.f32.mrf.mxu0
      %v709 = vadd.f32 0.0, %v708
      %710 = vmatmul.f32.gmra.mxu0 %v304
      %v711 = vpop.f32.mrf.mxu0
      %v712 = vadd.f32 0.0, %v711
      %713 = vdwg.mxu0
      %v715 = vsel %vm257, %v231, 0
      %717 = vmatpush.xpose.msra.mxu0 0.0
      %718 = vmatpush.xpose.msra.mxu0 0.0
      %719 = vmatpush.xpose.msra.mxu0 0.0
      %720 = vmatpush.xpose.msra.mxu0 0.0
      %721 = vmatpush.xpose.msra.mxu0 0.0
      %722 = vmatpush.xpose.msra.mxu0 0.0
      %723 = vmatpush.xpose.msra.mxu0 0.0
      %724 = vmatpush.xpose.msra.mxu0 0.0
      %725 = vmatpush.xpose.msra.mxu0 0.0
      %726 = vmatpush.xpose.msra.mxu0 0.0
      %727 = vmatpush.xpose.msra.mxu0 0.0
      %728 = vmatpush.xpose.msra.mxu0 0.0
      %729 = vmatpush.xpose.msra.mxu0 0.0
      %730 = vmatpush.xpose.msra.mxu0 0.0
      %731 = vmatpush.xpose.msra.mxu0 0.0
      %732 = vmatpush.xpose.msra.mxu0 %v715
      %733 = vmatmul.f32.gmra.mxu0 %v259
      %v734 = vpop.f32.mrf.mxu0
      %v735 = vadd.f32 0.0, %v734
      %736 = vmatmul.f32.gmra.mxu0 %v262
      %v737 = vpop.f32.mrf.mxu0
      %v738 = vadd.f32 0.0, %v737
      %739 = vmatmul.f32.gmra.mxu0 %v265
      %v740 = vpop.f32.mrf.mxu0
      %v741 = vadd.f32 0.0, %v740
      %742 = vmatmul.f32.gmra.mxu0 %v268
      %v743 = vpop.f32.mrf.mxu0
      %v744 = vadd.f32 0.0, %v743
      %745 = vmatmul.f32.gmra.mxu0 %v271
      %v746 = vpop.f32.mrf.mxu0
      %v747 = vadd.f32 0.0, %v746
      %748 = vmatmul.f32.gmra.mxu0 %v274
      %v749 = vpop.f32.mrf.mxu0
      %v750 = vadd.f32 0.0, %v749
      %751 = vmatmul.f32.gmra.mxu0 %v277
      %v752 = vpop.f32.mrf.mxu0
      %v753 = vadd.f32 0.0, %v752
      %754 = vmatmul.f32.gmra.mxu0 %v280
      %v755 = vpop.f32.mrf.mxu0
      %v756 = vadd.f32 0.0, %v755
      %757 = vmatmul.f32.gmra.mxu0 %v283
      %v758 = vpop.f32.mrf.mxu0
      %v759 = vadd.f32 0.0, %v758
      %760 = vmatmul.f32.gmra.mxu0 %v286
      %v761 = vpop.f32.mrf.mxu0
      %v762 = vadd.f32 0.0, %v761
      %763 = vmatmul.f32.gmra.mxu0 %v289
      %v764 = vpop.f32.mrf.mxu0
      %v765 = vadd.f32 0.0, %v764
      %766 = vmatmul.f32.gmra.mxu0 %v292
      %v767 = vpop.f32.mrf.mxu0
      %v768 = vadd.f32 0.0, %v767
      %769 = vmatmul.f32.gmra.mxu0 %v295
      %v770 = vpop.f32.mrf.mxu0
      %v771 = vadd.f32 0.0, %v770
      %772 = vmatmul.f32.gmra.mxu0 %v298
      %v773 = vpop.f32.mrf.mxu0
      %v774 = vadd.f32 0.0, %v773
      %775 = vmatmul.f32.gmra.mxu0 %v301
      %v776 = vpop.f32.mrf.mxu0
      %v777 = vadd.f32 0.0, %v776
      %778 = vmatmul.f32.gmra.mxu0 %v304
      %v779 = vpop.f32.mrf.mxu0
      %v780 = vadd.f32 0.0, %v779
      %781 = vdwg.mxu0
      %v783 = vsel %vm257, %v232, 0
      %785 = vmatpush.xpose.msra.mxu0 0.0
      %786 = vmatpush.xpose.msra.mxu0 0.0
      %787 = vmatpush.xpose.msra.mxu0 0.0
      %788 = vmatpush.xpose.msra.mxu0 0.0
      %789 = vmatpush.xpose.msra.mxu0 0.0
      %790 = vmatpush.xpose.msra.mxu0 0.0
      %791 = vmatpush.xpose.msra.mxu0 0.0
      %792 = vmatpush.xpose.msra.mxu0 0.0
      %793 = vmatpush.xpose.msra.mxu0 0.0
      %794 = vmatpush.xpose.msra.mxu0 0.0
      %795 = vmatpush.xpose.msra.mxu0 0.0
      %796 = vmatpush.xpose.msra.mxu0 0.0
      %797 = vmatpush.xpose.msra.mxu0 0.0
      %798 = vmatpush.xpose.msra.mxu0 0.0
      %799 = vmatpush.xpose.msra.mxu0 0.0
      %800 = vmatpush.xpose.msra.mxu0 %v783
      %801 = vmatmul.f32.gmra.mxu0 %v259
      %v802 = vpop.f32.mrf.mxu0
      %v803 = vadd.f32 0.0, %v802
      %804 = vmatmul.f32.gmra.mxu0 %v262
      %v805 = vpop.f32.mrf.mxu0
      %v806 = vadd.f32 0.0, %v805
      %807 = vmatmul.f32.gmra.mxu0 %v265
      %v808 = vpop.f32.mrf.mxu0
      %v809 = vadd.f32 0.0, %v808
      %810 = vmatmul.f32.gmra.mxu0 %v268
      %v811 = vpop.f32.mrf.mxu0
      %v812 = vadd.f32 0.0, %v811
      %813 = vmatmul.f32.gmra.mxu0 %v271
      %v814 = vpop.f32.mrf.mxu0
      %v815 = vadd.f32 0.0, %v814
      %816 = vmatmul.f32.gmra.mxu0 %v274
      %v817 = vpop.f32.mrf.mxu0
      %v818 = vadd.f32 0.0, %v817
      %819 = vmatmul.f32.gmra.mxu0 %v277
      %v820 = vpop.f32.mrf.mxu0
      %v821 = vadd.f32 0.0, %v820
      %822 = vmatmul.f32.gmra.mxu0 %v280
      %v823 = vpop.f32.mrf.mxu0
      %v824 = vadd.f32 0.0, %v823
      %825 = vmatmul.f32.gmra.mxu0 %v283
      %v826 = vpop.f32.mrf.mxu0
      %v827 = vadd.f32 0.0, %v826
      %828 = vmatmul.f32.gmra.mxu0 %v286
      %v829 = vpop.f32.mrf.mxu0
      %v830 = vadd.f32 0.0, %v829
      %831 = vmatmul.f32.gmra.mxu0 %v289
      %v832 = vpop.f32.mrf.mxu0
      %v833 = vadd.f32 0.0, %v832
      %834 = vmatmul.f32.gmra.mxu0 %v292
      %v835 = vpop.f32.mrf.mxu0
      %v836 = vadd.f32 0.0, %v835
      %837 = vmatmul.f32.gmra.mxu0 %v295
      %v838 = vpop.f32.mrf.mxu0
      %v839 = vadd.f32 0.0, %v838
      %840 = vmatmul.f32.gmra.mxu0 %v298
      %v841 = vpop.f32.mrf.mxu0
      %v842 = vadd.f32 0.0, %v841
      %843 = vmatmul.f32.gmra.mxu0 %v301
      %v844 = vpop.f32.mrf.mxu0
      %v845 = vadd.f32 0.0, %v844
      %846 = vmatmul.f32.gmra.mxu0 %v304
      %v847 = vpop.f32.mrf.mxu0
      %v848 = vadd.f32 0.0, %v847
      %849 = vdwg.mxu0
      %v851 = vsel %vm257, %v233, 0
      %853 = vmatpush.xpose.msra.mxu0 0.0
      %854 = vmatpush.xpose.msra.mxu0 0.0
      %855 = vmatpush.xpose.msra.mxu0 0.0
      %856 = vmatpush.xpose.msra.mxu0 0.0
      %857 = vmatpush.xpose.msra.mxu0 0.0
      %858 = vmatpush.xpose.msra.mxu0 0.0
      %859 = vmatpush.xpose.msra.mxu0 0.0
      %860 = vmatpush.xpose.msra.mxu0 0.0
      %861 = vmatpush.xpose.msra.mxu0 0.0
      %862 = vmatpush.xpose.msra.mxu0 0.0
      %863 = vmatpush.xpose.msra.mxu0 0.0
      %864 = vmatpush.xpose.msra.mxu0 0.0
      %865 = vmatpush.xpose.msra.mxu0 0.0
      %866 = vmatpush.xpose.msra.mxu0 0.0
      %867 = vmatpush.xpose.msra.mxu0 0.0
      %868 = vmatpush.xpose.msra.mxu0 %v851
      %869 = vmatmul.f32.gmra.mxu0 %v259
      %v870 = vpop.f32.mrf.mxu0
      %v871 = vadd.f32 0.0, %v870
      %872 = vmatmul.f32.gmra.mxu0 %v262
      %v873 = vpop.f32.mrf.mxu0
      %v874 = vadd.f32 0.0, %v873
      %875 = vmatmul.f32.gmra.mxu0 %v265
      %v876 = vpop.f32.mrf.mxu0
      %v877 = vadd.f32 0.0, %v876
      %878 = vmatmul.f32.gmra.mxu0 %v268
      %v879 = vpop.f32.mrf.mxu0
      %v880 = vadd.f32 0.0, %v879
      %881 = vmatmul.f32.gmra.mxu0 %v271
      %v882 = vpop.f32.mrf.mxu0
      %v883 = vadd.f32 0.0, %v882
      %884 = vmatmul.f32.gmra.mxu0 %v274
      %v885 = vpop.f32.mrf.mxu0
      %v886 = vadd.f32 0.0, %v885
      %887 = vmatmul.f32.gmra.mxu0 %v277
      %v888 = vpop.f32.mrf.mxu0
      %v889 = vadd.f32 0.0, %v888
      %890 = vmatmul.f32.gmra.mxu0 %v280
      %v891 = vpop.f32.mrf.mxu0
      %v892 = vadd.f32 0.0, %v891
      %893 = vmatmul.f32.gmra.mxu0 %v283
      %v894 = vpop.f32.mrf.mxu0
      %v895 = vadd.f32 0.0, %v894
      %896 = vmatmul.f32.gmra.mxu0 %v286
      %v897 = vpop.f32.mrf.mxu0
      %v898 = vadd.f32 0.0, %v897
      %899 = vmatmul.f32.gmra.mxu0 %v289
      %v900 = vpop.f32.mrf.mxu0
      %v901 = vadd.f32 0.0, %v900
      %902 = vmatmul.f32.gmra.mxu0 %v292
      %v903 = vpop.f32.mrf.mxu0
      %v904 = vadd.f32 0.0, %v903
      %905 = vmatmul.f32.gmra.mxu0 %v295
      %v906 = vpop.f32.mrf.mxu0
      %v907 = vadd.f32 0.0, %v906
      %908 = vmatmul.f32.gmra.mxu0 %v298
      %v909 = vpop.f32.mrf.mxu0
      %v910 = vadd.f32 0.0, %v909
      %911 = vmatmul.f32.gmra.mxu0 %v301
      %v912 = vpop.f32.mrf.mxu0
      %v913 = vadd.f32 0.0, %v912
      %914 = vmatmul.f32.gmra.mxu0 %v304
      %v915 = vpop.f32.mrf.mxu0
      %v916 = vadd.f32 0.0, %v915
      %917 = vdwg.mxu0
      %v919 = vsel %vm257, %v234, 0
      %921 = vmatpush.xpose.msra.mxu0 0.0
      %922 = vmatpush.xpose.msra.mxu0 0.0
      %923 = vmatpush.xpose.msra.mxu0 0.0
      %924 = vmatpush.xpose.msra.mxu0 0.0
      %925 = vmatpush.xpose.msra.mxu0 0.0
      %926 = vmatpush.xpose.msra.mxu0 0.0
      %927 = vmatpush.xpose.msra.mxu0 0.0
      %928 = vmatpush.xpose.msra.mxu0 0.0
      %929 = vmatpush.xpose.msra.mxu0 0.0
      %930 = vmatpush.xpose.msra.mxu0 0.0
      %931 = vmatpush.xpose.msra.mxu0 0.0
      %932 = vmatpush.xpose.msra.mxu0 0.0
      %933 = vmatpush.xpose.msra.mxu0 0.0
      %934 = vmatpush.xpose.msra.mxu0 0.0
      %935 = vmatpush.xpose.msra.mxu0 0.0
      %936 = vmatpush.xpose.msra.mxu0 %v919
      %937 = vmatmul.f32.gmra.mxu0 %v259
      %v938 = vpop.f32.mrf.mxu0
      %v939 = vadd.f32 0.0, %v938
      %940 = vmatmul.f32.gmra.mxu0 %v262
      %v941 = vpop.f32.mrf.mxu0
      %v942 = vadd.f32 0.0, %v941
      %943 = vmatmul.f32.gmra.mxu0 %v265
      %v944 = vpop.f32.mrf.mxu0
      %v945 = vadd.f32 0.0, %v944
      %946 = vmatmul.f32.gmra.mxu0 %v268
      %v947 = vpop.f32.mrf.mxu0
      %v948 = vadd.f32 0.0, %v947
      %949 = vmatmul.f32.gmra.mxu0 %v271
      %v950 = vpop.f32.mrf.mxu0
      %v951 = vadd.f32 0.0, %v950
      %952 = vmatmul.f32.gmra.mxu0 %v274
      %v953 = vpop.f32.mrf.mxu0
      %v954 = vadd.f32 0.0, %v953
      %955 = vmatmul.f32.gmra.mxu0 %v277
      %v956 = vpop.f32.mrf.mxu0
      %v957 = vadd.f32 0.0, %v956
      %958 = vmatmul.f32.gmra.mxu0 %v280
      %v959 = vpop.f32.mrf.mxu0
      %v960 = vadd.f32 0.0, %v959
      %961 = vmatmul.f32.gmra.mxu0 %v283
      %v962 = vpop.f32.mrf.mxu0
      %v963 = vadd.f32 0.0, %v962
      %964 = vmatmul.f32.gmra.mxu0 %v286
      %v965 = vpop.f32.mrf.mxu0
      %v966 = vadd.f32 0.0, %v965
      %967 = vmatmul.f32.gmra.mxu0 %v289
      %v968 = vpop.f32.mrf.mxu0
      %v969 = vadd.f32 0.0, %v968
      %970 = vmatmul.f32.gmra.mxu0 %v292
      %v971 = vpop.f32.mrf.mxu0
      %v972 = vadd.f32 0.0, %v971
      %973 = vmatmul.f32.gmra.mxu0 %v295
      %v974 = vpop.f32.mrf.mxu0
      %v975 = vadd.f32 0.0, %v974
      %976 = vmatmul.f32.gmra.mxu0 %v298
      %v977 = vpop.f32.mrf.mxu0
      %v978 = vadd.f32 0.0, %v977
      %979 = vmatmul.f32.gmra.mxu0 %v301
      %v980 = vpop.f32.mrf.mxu0
      %v981 = vadd.f32 0.0, %v980
      %982 = vmatmul.f32.gmra.mxu0 %v304
      %v983 = vpop.f32.mrf.mxu0
      %v984 = vadd.f32 0.0, %v983
      %985 = vdwg.mxu0
      %v987 = vsel %vm257, %v235, 0
      %989 = vmatpush.xpose.msra.mxu0 0.0
      %990 = vmatpush.xpose.msra.mxu0 0.0
      %991 = vmatpush.xpose.msra.mxu0 0.0
      %992 = vmatpush.xpose.msra.mxu0 0.0
      %993 = vmatpush.xpose.msra.mxu0 0.0
      %994 = vmatpush.xpose.msra.mxu0 0.0
      %995 = vmatpush.xpose.msra.mxu0 0.0
      %996 = vmatpush.xpose.msra.mxu0 0.0
      %997 = vmatpush.xpose.msra.mxu0 0.0
      %998 = vmatpush.xpose.msra.mxu0 0.0
      %999 = vmatpush.xpose.msra.mxu0 0.0
      %1000 = vmatpush.xpose.msra.mxu0 0.0
      %1001 = vmatpush.xpose.msra.mxu0 0.0
      %1002 = vmatpush.xpose.msra.mxu0 0.0
      %1003 = vmatpush.xpose.msra.mxu0 0.0
      %1004 = vmatpush.xpose.msra.mxu0 %v987
      %1005 = vmatmul.f32.gmra.mxu0 %v259
      %v1006 = vpop.f32.mrf.mxu0
      %v1007 = vadd.f32 0.0, %v1006
      %1008 = vmatmul.f32.gmra.mxu0 %v262
      %v1009 = vpop.f32.mrf.mxu0
      %v1010 = vadd.f32 0.0, %v1009
      %1011 = vmatmul.f32.gmra.mxu0 %v265
      %v1012 = vpop.f32.mrf.mxu0
      %v1013 = vadd.f32 0.0, %v1012
      %1014 = vmatmul.f32.gmra.mxu0 %v268
      %v1015 = vpop.f32.mrf.mxu0
      %v1016 = vadd.f32 0.0, %v1015
      %1017 = vmatmul.f32.gmra.mxu0 %v271
      %v1018 = vpop.f32.mrf.mxu0
      %v1019 = vadd.f32 0.0, %v1018
      %1020 = vmatmul.f32.gmra.mxu0 %v274
      %v1021 = vpop.f32.mrf.mxu0
      %v1022 = vadd.f32 0.0, %v1021
      %1023 = vmatmul.f32.gmra.mxu0 %v277
      %v1024 = vpop.f32.mrf.mxu0
      %v1025 = vadd.f32 0.0, %v1024
      %1026 = vmatmul.f32.gmra.mxu0 %v280
      %v1027 = vpop.f32.mrf.mxu0
      %v1028 = vadd.f32 0.0, %v1027
      %1029 = vmatmul.f32.gmra.mxu0 %v283
      %v1030 = vpop.f32.mrf.mxu0
      %v1031 = vadd.f32 0.0, %v1030
      %1032 = vmatmul.f32.gmra.mxu0 %v286
      %v1033 = vpop.f32.mrf.mxu0
      %v1034 = vadd.f32 0.0, %v1033
      %1035 = vmatmul.f32.gmra.mxu0 %v289
      %v1036 = vpop.f32.mrf.mxu0
      %v1037 = vadd.f32 0.0, %v1036
      %1038 = vmatmul.f32.gmra.mxu0 %v292
      %v1039 = vpop.f32.mrf.mxu0
      %v1040 = vadd.f32 0.0, %v1039
      %1041 = vmatmul.f32.gmra.mxu0 %v295
      %v1042 = vpop.f32.mrf.mxu0
      %v1043 = vadd.f32 0.0, %v1042
      %1044 = vmatmul.f32.gmra.mxu0 %v298
      %v1045 = vpop.f32.mrf.mxu0
      %v1046 = vadd.f32 0.0, %v1045
      %1047 = vmatmul.f32.gmra.mxu0 %v301
      %v1048 = vpop.f32.mrf.mxu0
      %v1049 = vadd.f32 0.0, %v1048
      %1050 = vmatmul.f32.gmra.mxu0 %v304
      %v1051 = vpop.f32.mrf.mxu0
      %v1052 = vadd.f32 0.0, %v1051
      %1053 = vdwg.mxu0
      %v1055 = vsel %vm257, %v236, 0
      %1057 = vmatpush.xpose.msra.mxu0 0.0
      %1058 = vmatpush.xpose.msra.mxu0 0.0
      %1059 = vmatpush.xpose.msra.mxu0 0.0
      %1060 = vmatpush.xpose.msra.mxu0 0.0
      %1061 = vmatpush.xpose.msra.mxu0 0.0
      %1062 = vmatpush.xpose.msra.mxu0 0.0
      %1063 = vmatpush.xpose.msra.mxu0 0.0
      %1064 = vmatpush.xpose.msra.mxu0 0.0
      %1065 = vmatpush.xpose.msra.mxu0 0.0
      %1066 = vmatpush.xpose.msra.mxu0 0.0
      %1067 = vmatpush.xpose.msra.mxu0 0.0
      %1068 = vmatpush.xpose.msra.mxu0 0.0
      %1069 = vmatpush.xpose.msra.mxu0 0.0
      %1070 = vmatpush.xpose.msra.mxu0 0.0
      %1071 = vmatpush.xpose.msra.mxu0 0.0
      %1072 = vmatpush.xpose.msra.mxu0 %v1055
      %1073 = vmatmul.f32.gmra.mxu0 %v259
      %v1074 = vpop.f32.mrf.mxu0
      %v1075 = vadd.f32 0.0, %v1074
      %1076 = vmatmul.f32.gmra.mxu0 %v262
      %v1077 = vpop.f32.mrf.mxu0
      %v1078 = vadd.f32 0.0, %v1077
      %1079 = vmatmul.f32.gmra.mxu0 %v265
      %v1080 = vpop.f32.mrf.mxu0
      %v1081 = vadd.f32 0.0, %v1080
      %1082 = vmatmul.f32.gmra.mxu0 %v268
      %v1083 = vpop.f32.mrf.mxu0
      %v1084 = vadd.f32 0.0, %v1083
      %1085 = vmatmul.f32.gmra.mxu0 %v271
      %v1086 = vpop.f32.mrf.mxu0
      %v1087 = vadd.f32 0.0, %v1086
      %1088 = vmatmul.f32.gmra.mxu0 %v274
      %v1089 = vpop.f32.mrf.mxu0
      %v1090 = vadd.f32 0.0, %v1089
      %1091 = vmatmul.f32.gmra.mxu0 %v277
      %v1092 = vpop.f32.mrf.mxu0
      %v1093 = vadd.f32 0.0, %v1092
      %1094 = vmatmul.f32.gmra.mxu0 %v280
      %v1095 = vpop.f32.mrf.mxu0
      %v1096 = vadd.f32 0.0, %v1095
      %1097 = vmatmul.f32.gmra.mxu0 %v283
      %v1098 = vpop.f32.mrf.mxu0
      %v1099 = vadd.f32 0.0, %v1098
      %1100 = vmatmul.f32.gmra.mxu0 %v286
      %v1101 = vpop.f32.mrf.mxu0
      %v1102 = vadd.f32 0.0, %v1101
      %1103 = vmatmul.f32.gmra.mxu0 %v289
      %v1104 = vpop.f32.mrf.mxu0
      %v1105 = vadd.f32 0.0, %v1104
      %1106 = vmatmul.f32.gmra.mxu0 %v292
      %v1107 = vpop.f32.mrf.mxu0
      %v1108 = vadd.f32 0.0, %v1107
      %1109 = vmatmul.f32.gmra.mxu0 %v295
      %v1110 = vpop.f32.mrf.mxu0
      %v1111 = vadd.f32 0.0, %v1110
      %1112 = vmatmul.f32.gmra.mxu0 %v298
      %v1113 = vpop.f32.mrf.mxu0
      %v1114 = vadd.f32 0.0, %v1113
      %1115 = vmatmul.f32.gmra.mxu0 %v301
      %v1116 = vpop.f32.mrf.mxu0
      %v1117 = vadd.f32 0.0, %v1116
      %1118 = vmatmul.f32.gmra.mxu0 %v304
      %v1119 = vpop.f32.mrf.mxu0
      %v1120 = vadd.f32 0.0, %v1119
      %1121 = vdwg.mxu0
      %vm1122 = vcmask 64512
      %v1124 = vsel %vm1122, %v327, 0
      %v1127 = vsel %vm1122, %v330, 0
      %v1130 = vsel %vm1122, %v333, 0
      %v1133 = vsel %vm1122, %v336, 0
      %v1136 = vsel %vm1122, %v339, 0
      %v1139 = vsel %vm1122, %v342, 0
      %v1142 = vsel %vm1122, %v345, 0
      %v1145 = vsel %vm1122, %v348, 0
      %v1148 = vsel %vm1122, %v351, 0
      %v1151 = vsel %vm1122, %v354, 0
      %v1154 = vsel %vm1122, %v357, 0
      %v1157 = vsel %vm1122, %v360, 0
      %v1160 = vsel %vm1122, %v363, 0
      %v1163 = vsel %vm1122, %v366, 0
      %v1166 = vsel %vm1122, %v369, 0
      %v1169 = vsel %vm1122, %v372, 0
      %v1172 = vsel %vm1122, %v599, 0
      %v1175 = vsel %vm1122, %v602, 0
      %v1178 = vsel %vm1122, %v605, 0
      %v1181 = vsel %vm1122, %v608, 0
      %v1184 = vsel %vm1122, %v611, 0
      %v1187 = vsel %vm1122, %v614, 0
      %v1190 = vsel %vm1122, %v617, 0
      %v1193 = vsel %vm1122, %v620, 0
      %v1196 = vsel %vm1122, %v623, 0
      %v1199 = vsel %vm1122, %v626, 0
      %v1202 = vsel %vm1122, %v629, 0
      %v1205 = vsel %vm1122, %v632, 0
      %v1208 = vsel %vm1122, %v635, 0
      %v1211 = vsel %vm1122, %v638, 0
      %v1214 = vsel %vm1122, %v641, 0
      %v1217 = vsel %vm1122, %v644, 0
      %1219 = vmatpush.xpose.msra.mxu0 %v1217
      %1220 = vmatpush.xpose.msra.mxu0 %v1214
      %1221 = vmatpush.xpose.msra.mxu0 %v1211
      %1222 = vmatpush.xpose.msra.mxu0 %v1208
      %1223 = vmatpush.xpose.msra.mxu0 %v1205
      %1224 = vmatpush.xpose.msra.mxu0 %v1202
      %1225 = vmatpush.xpose.msra.mxu0 %v1199
      %1226 = vmatpush.xpose.msra.mxu0 %v1196
      %1227 = vmatpush.xpose.msra.mxu0 %v1193
      %1228 = vmatpush.xpose.msra.mxu0 %v1190
      %1229 = vmatpush.xpose.msra.mxu0 %v1187
      %1230 = vmatpush.xpose.msra.mxu0 %v1184
      %1231 = vmatpush.xpose.msra.mxu0 %v1181
      %1232 = vmatpush.xpose.msra.mxu0 %v1178
      %1233 = vmatpush.xpose.msra.mxu0 %v1175
      %1234 = vmatpush.xpose.msra.mxu0 %v1172
      %1235 = vmatmul.f32.gmra.mxu0 %v1124
      %v1236 = vpop.f32.mrf.mxu0
      %v1237 = vadd.f32 0.0, %v1236
      %1238 = vmatmul.f32.gmra.mxu0 %v1127
      %v1239 = vpop.f32.mrf.mxu0
      %v1240 = vadd.f32 0.0, %v1239
      %1241 = vmatmul.f32.gmra.mxu0 %v1130
      %v1242 = vpop.f32.mrf.mxu0
      %v1243 = vadd.f32 0.0, %v1242
      %1244 = vmatmul.f32.gmra.mxu0 %v1133
      %v1245 = vpop.f32.mrf.mxu0
      %v1246 = vadd.f32 0.0, %v1245
      %1247 = vmatmul.f32.gmra.mxu0 %v1136
      %v1248 = vpop.f32.mrf.mxu0
      %v1249 = vadd.f32 0.0, %v1248
      %1250 = vmatmul.f32.gmra.mxu0 %v1139
      %v1251 = vpop.f32.mrf.mxu0
      %v1252 = vadd.f32 0.0, %v1251
      %1253 = vmatmul.f32.gmra.mxu0 %v1142
      %v1254 = vpop.f32.mrf.mxu0
      %v1255 = vadd.f32 0.0, %v1254
      %1256 = vmatmul.f32.gmra.mxu0 %v1145
      %v1257 = vpop.f32.mrf.mxu0
      %v1258 = vadd.f32 0.0, %v1257
      %1259 = vmatmul.f32.gmra.mxu0 %v1148
      %v1260 = vpop.f32.mrf.mxu0
      %v1261 = vadd.f32 0.0, %v1260
      %1262 = vmatmul.f32.gmra.mxu0 %v1151
      %v1263 = vpop.f32.mrf.mxu0
      %v1264 = vadd.f32 0.0, %v1263
      %1265 = vmatmul.f32.gmra.mxu0 %v1154
      %v1266 = vpop.f32.mrf.mxu0
      %v1267 = vadd.f32 0.0, %v1266
      %1268 = vmatmul.f32.gmra.mxu0 %v1157
      %v1269 = vpop.f32.mrf.mxu0
      %v1270 = vadd.f32 0.0, %v1269
      %1271 = vmatmul.f32.gmra.mxu0 %v1160
      %v1272 = vpop.f32.mrf.mxu0
      %v1273 = vadd.f32 0.0, %v1272
      %1274 = vmatmul.f32.gmra.mxu0 %v1163
      %v1275 = vpop.f32.mrf.mxu0
      %v1276 = vadd.f32 0.0, %v1275
      %1277 = vmatmul.f32.gmra.mxu0 %v1166
      %v1278 = vpop.f32.mrf.mxu0
      %v1279 = vadd.f32 0.0, %v1278
      %1280 = vmatmul.f32.gmra.mxu0 %v1169
      %v1281 = vpop.f32.mrf.mxu0
      %v1282 = vadd.f32 0.0, %v1281
      %1283 = vdwg.mxu0
      %v1285 = vsel %vm1122, %v395, 0
      %v1288 = vsel %vm1122, %v398, 0
      %v1291 = vsel %vm1122, %v401, 0
      %v1294 = vsel %vm1122, %v404, 0
      %v1297 = vsel %vm1122, %v407, 0
      %v1300 = vsel %vm1122, %v410, 0
      %v1303 = vsel %vm1122, %v413, 0
      %v1306 = vsel %vm1122, %v416, 0
      %v1309 = vsel %vm1122, %v419, 0
      %v1312 = vsel %vm1122, %v422, 0
      %v1315 = vsel %vm1122, %v425, 0
      %v1318 = vsel %vm1122, %v428, 0
      %v1321 = vsel %vm1122, %v431, 0
      %v1324 = vsel %vm1122, %v434, 0
      %v1327 = vsel %vm1122, %v437, 0
      %v1330 = vsel %vm1122, %v440, 0
      %v1333 = vsel %vm1122, %v667, 0
      %v1336 = vsel %vm1122, %v670, 0
      %v1339 = vsel %vm1122, %v673, 0
      %v1342 = vsel %vm1122, %v676, 0
      %v1345 = vsel %vm1122, %v679, 0
      %v1348 = vsel %vm1122, %v682, 0
      %v1351 = vsel %vm1122, %v685, 0
      %v1354 = vsel %vm1122, %v688, 0
      %v1357 = vsel %vm1122, %v691, 0
      %v1360 = vsel %vm1122, %v694, 0
      %v1363 = vsel %vm1122, %v697, 0
      %v1366 = vsel %vm1122, %v700, 0
      %v1369 = vsel %vm1122, %v703, 0
      %v1372 = vsel %vm1122, %v706, 0
      %v1375 = vsel %vm1122, %v709, 0
      %v1378 = vsel %vm1122, %v712, 0
      %1380 = vmatpush.xpose.msra.mxu0 %v1378
      %1381 = vmatpush.xpose.msra.mxu0 %v1375
      %1382 = vmatpush.xpose.msra.mxu0 %v1372
      %1383 = vmatpush.xpose.msra.mxu0 %v1369
      %1384 = vmatpush.xpose.msra.mxu0 %v1366
      %1385 = vmatpush.xpose.msra.mxu0 %v1363
      %1386 = vmatpush.xpose.msra.mxu0 %v1360
      %1387 = vmatpush.xpose.msra.mxu0 %v1357
      %1388 = vmatpush.xpose.msra.mxu0 %v1354
      %1389 = vmatpush.xpose.msra.mxu0 %v1351
      %1390 = vmatpush.xpose.msra.mxu0 %v1348
      %1391 = vmatpush.xpose.msra.mxu0 %v1345
      %1392 = vmatpush.xpose.msra.mxu0 %v1342
      %1393 = vmatpush.xpose.msra.mxu0 %v1339
      %1394 = vmatpush.xpose.msra.mxu0 %v1336
      %1395 = vmatpush.xpose.msra.mxu0 %v1333
      %1396 = vmatmul.f32.gmra.mxu0 %v1285
      %v1397 = vpop.f32.mrf.mxu0
      %v1398 = vadd.f32 0.0, %v1397
      %1399 = vmatmul.f32.gmra.mxu0 %v1288
      %v1400 = vpop.f32.mrf.mxu0
      %v1401 = vadd.f32 0.0, %v1400
      %1402 = vmatmul.f32.gmra.mxu0 %v1291
      %v1403 = vpop.f32.mrf.mxu0
      %v1404 = vadd.f32 0.0, %v1403
      %1405 = vmatmul.f32.gmra.mxu0 %v1294
      %v1406 = vpop.f32.mrf.mxu0
      %v1407 = vadd.f32 0.0, %v1406
      %1408 = vmatmul.f32.gmra.mxu0 %v1297
      %v1409 = vpop.f32.mrf.mxu0
      %v1410 = vadd.f32 0.0, %v1409
      %1411 = vmatmul.f32.gmra.mxu0 %v1300
      %v1412 = vpop.f32.mrf.mxu0
      %v1413 = vadd.f32 0.0, %v1412
      %1414 = vmatmul.f32.gmra.mxu0 %v1303
      %v1415 = vpop.f32.mrf.mxu0
      %v1416 = vadd.f32 0.0, %v1415
      %1417 = vmatmul.f32.gmra.mxu0 %v1306
      %v1418 = vpop.f32.mrf.mxu0
      %v1419 = vadd.f32 0.0, %v1418
      %1420 = vmatmul.f32.gmra.mxu0 %v1309
      %v1421 = vpop.f32.mrf.mxu0
      %v1422 = vadd.f32 0.0, %v1421
      %1423 = vmatmul.f32.gmra.mxu0 %v1312
      %v1424 = vpop.f32.mrf.mxu0
      %v1425 = vadd.f32 0.0, %v1424
      %1426 = vmatmul.f32.gmra.mxu0 %v1315
      %v1427 = vpop.f32.mrf.mxu0
      %v1428 = vadd.f32 0.0, %v1427
      %1429 = vmatmul.f32.gmra.mxu0 %v1318
      %v1430 = vpop.f32.mrf.mxu0
      %v1431 = vadd.f32 0.0, %v1430
      %1432 = vmatmul.f32.gmra.mxu0 %v1321
      %v1433 = vpop.f32.mrf.mxu0
      %v1434 = vadd.f32 0.0, %v1433
      %1435 = vmatmul.f32.gmra.mxu0 %v1324
      %v1436 = vpop.f32.mrf.mxu0
      %v1437 = vadd.f32 0.0, %v1436
      %1438 = vmatmul.f32.gmra.mxu0 %v1327
      %v1439 = vpop.f32.mrf.mxu0
      %v1440 = vadd.f32 0.0, %v1439
      %1441 = vmatmul.f32.gmra.mxu0 %v1330
      %v1442 = vpop.f32.mrf.mxu0
      %v1443 = vadd.f32 0.0, %v1442
      %1444 = vdwg.mxu0
      %v1446 = vsel %vm1122, %v463, 0
      %v1449 = vsel %vm1122, %v466, 0
      %v1452 = vsel %vm1122, %v469, 0
      %v1455 = vsel %vm1122, %v472, 0
      %v1458 = vsel %vm1122, %v475, 0
      %v1461 = vsel %vm1122, %v478, 0
      %v1464 = vsel %vm1122, %v481, 0
      %v1467 = vsel %vm1122, %v484, 0
      %v1470 = vsel %vm1122, %v487, 0
      %v1473 = vsel %vm1122, %v490, 0
      %v1476 = vsel %vm1122, %v493, 0
      %v1479 = vsel %vm1122, %v496, 0
      %v1482 = vsel %vm1122, %v499, 0
      %v1485 = vsel %vm1122, %v502, 0
      %v1488 = vsel %vm1122, %v505, 0
      %v1491 = vsel %vm1122, %v508, 0
      %v1494 = vsel %vm1122, %v735, 0
      %v1497 = vsel %vm1122, %v738, 0
      %v1500 = vsel %vm1122, %v741, 0
      %v1503 = vsel %vm1122, %v744, 0
      %v1506 = vsel %vm1122, %v747, 0
      %v1509 = vsel %vm1122, %v750, 0
      %v1512 = vsel %vm1122, %v753, 0
      %v1515 = vsel %vm1122, %v756, 0
      %v1518 = vsel %vm1122, %v759, 0
      %v1521 = vsel %vm1122, %v762, 0
      %v1524 = vsel %vm1122, %v765, 0
      %v1527 = vsel %vm1122, %v768, 0
      %v1530 = vsel %vm1122, %v771, 0
      %v1533 = vsel %vm1122, %v774, 0
      %v1536 = vsel %vm1122, %v777, 0
      %v1539 = vsel %vm1122, %v780, 0
      %1541 = vmatpush.xpose.msra.mxu0 %v1539
      %1542 = vmatpush.xpose.msra.mxu0 %v1536
      %1543 = vmatpush.xpose.msra.mxu0 %v1533
      %1544 = vmatpush.xpose.msra.mxu0 %v1530
      %1545 = vmatpush.xpose.msra.mxu0 %v1527
      %1546 = vmatpush.xpose.msra.mxu0 %v1524
      %1547 = vmatpush.xpose.msra.mxu0 %v1521
      %1548 = vmatpush.xpose.msra.mxu0 %v1518
      %1549 = vmatpush.xpose.msra.mxu0 %v1515
      %1550 = vmatpush.xpose.msra.mxu0 %v1512
      %1551 = vmatpush.xpose.msra.mxu0 %v1509
      %1552 = vmatpush.xpose.msra.mxu0 %v1506
      %1553 = vmatpush.xpose.msra.mxu0 %v1503
      %1554 = vmatpush.xpose.msra.mxu0 %v1500
      %1555 = vmatpush.xpose.msra.mxu0 %v1497
      %1556 = vmatpush.xpose.msra.mxu0 %v1494
      %1557 = vmatmul.f32.gmra.mxu0 %v1446
      %v1558 = vpop.f32.mrf.mxu0
      %v1559 = vadd.f32 0.0, %v1558
      %1560 = vmatmul.f32.gmra.mxu0 %v1449
      %v1561 = vpop.f32.mrf.mxu0
      %v1562 = vadd.f32 0.0, %v1561
      %1563 = vmatmul.f32.gmra.mxu0 %v1452
      %v1564 = vpop.f32.mrf.mxu0
      %v1565 = vadd.f32 0.0, %v1564
      %1566 = vmatmul.f32.gmra.mxu0 %v1455
      %v1567 = vpop.f32.mrf.mxu0
      %v1568 = vadd.f32 0.0, %v1567
      %1569 = vmatmul.f32.gmra.mxu0 %v1458
      %v1570 = vpop.f32.mrf.mxu0
      %v1571 = vadd.f32 0.0, %v1570
      %1572 = vmatmul.f32.gmra.mxu0 %v1461
      %v1573 = vpop.f32.mrf.mxu0
      %v1574 = vadd.f32 0.0, %v1573
      %1575 = vmatmul.f32.gmra.mxu0 %v1464
      %v1576 = vpop.f32.mrf.mxu0
      %v1577 = vadd.f32 0.0, %v1576
      %1578 = vmatmul.f32.gmra.mxu0 %v1467
      %v1579 = vpop.f32.mrf.mxu0
      %v1580 = vadd.f32 0.0, %v1579
      %1581 = vmatmul.f32.gmra.mxu0 %v1470
      %v1582 = vpop.f32.mrf.mxu0
      %v1583 = vadd.f32 0.0, %v1582
      %1584 = vmatmul.f32.gmra.mxu0 %v1473
      %v1585 = vpop.f32.mrf.mxu0
      %v1586 = vadd.f32 0.0, %v1585
      %1587 = vmatmul.f32.gmra.mxu0 %v1476
      %v1588 = vpop.f32.mrf.mxu0
      %v1589 = vadd.f32 0.0, %v1588
      %1590 = vmatmul.f32.gmra.mxu0 %v1479
      %v1591 = vpop.f32.mrf.mxu0
      %v1592 = vadd.f32 0.0, %v1591
      %1593 = vmatmul.f32.gmra.mxu0 %v1482
      %v1594 = vpop.f32.mrf.mxu0
      %v1595 = vadd.f32 0.0, %v1594
      %1596 = vmatmul.f32.gmra.mxu0 %v1485
      %v1597 = vpop.f32.mrf.mxu0
      %v1598 = vadd.f32 0.0, %v1597
      %1599 = vmatmul.f32.gmra.mxu0 %v1488
      %v1600 = vpop.f32.mrf.mxu0
      %v1601 = vadd.f32 0.0, %v1600
      %1602 = vmatmul.f32.gmra.mxu0 %v1491
      %v1603 = vpop.f32.mrf.mxu0
      %v1604 = vadd.f32 0.0, %v1603
      %1605 = vdwg.mxu0
      %v1607 = vsel %vm1122, %v531, 0
      %v1610 = vsel %vm1122, %v534, 0
      %v1613 = vsel %vm1122, %v537, 0
      %v1616 = vsel %vm1122, %v540, 0
      %v1619 = vsel %vm1122, %v543, 0
      %v1622 = vsel %vm1122, %v546, 0
      %v1625 = vsel %vm1122, %v549, 0
      %v1628 = vsel %vm1122, %v552, 0
      %v1631 = vsel %vm1122, %v555, 0
      %v1634 = vsel %vm1122, %v558, 0
      %v1637 = vsel %vm1122, %v561, 0
      %v1640 = vsel %vm1122, %v564, 0
      %v1643 = vsel %vm1122, %v567, 0
      %v1646 = vsel %vm1122, %v570, 0
      %v1649 = vsel %vm1122, %v573, 0
      %v1652 = vsel %vm1122, %v576, 0
      %v1655 = vsel %vm1122, %v803, 0
      %v1658 = vsel %vm1122, %v806, 0
      %v1661 = vsel %vm1122, %v809, 0
      %v1664 = vsel %vm1122, %v812, 0
      %v1667 = vsel %vm1122, %v815, 0
      %v1670 = vsel %vm1122, %v818, 0
      %v1673 = vsel %vm1122, %v821, 0
      %v1676 = vsel %vm1122, %v824, 0
      %v1679 = vsel %vm1122, %v827, 0
      %v1682 = vsel %vm1122, %v830, 0
      %v1685 = vsel %vm1122, %v833, 0
      %v1688 = vsel %vm1122, %v836, 0
      %v1691 = vsel %vm1122, %v839, 0
      %v1694 = vsel %vm1122, %v842, 0
      %v1697 = vsel %vm1122, %v845, 0
      %v1700 = vsel %vm1122, %v848, 0
      %1702 = vmatpush.xpose.msra.mxu0 %v1700
      %1703 = vmatpush.xpose.msra.mxu0 %v1697
      %1704 = vmatpush.xpose.msra.mxu0 %v1694
      %1705 = vmatpush.xpose.msra.mxu0 %v1691
      %1706 = vmatpush.xpose.msra.mxu0 %v1688
      %1707 = vmatpush.xpose.msra.mxu0 %v1685
      %1708 = vmatpush.xpose.msra.mxu0 %v1682
      %1709 = vmatpush.xpose.msra.mxu0 %v1679
      %1710 = vmatpush.xpose.msra.mxu0 %v1676
      %1711 = vmatpush.xpose.msra.mxu0 %v1673
      %1712 = vmatpush.xpose.msra.mxu0 %v1670
      %1713 = vmatpush.xpose.msra.mxu0 %v1667
      %1714 = vmatpush.xpose.msra.mxu0 %v1664
      %1715 = vmatpush.xpose.msra.mxu0 %v1661
      %1716 = vmatpush.xpose.msra.mxu0 %v1658
      %1717 = vmatpush.xpose.msra.mxu0 %v1655
      %1718 = vmatmul.f32.gmra.mxu0 %v1607
      %v1719 = vpop.f32.mrf.mxu0
      %v1720 = vadd.f32 0.0, %v1719
      %1721 = vmatmul.f32.gmra.mxu0 %v1610
      %v1722 = vpop.f32.mrf.mxu0
      %v1723 = vadd.f32 0.0, %v1722
      %1724 = vmatmul.f32.gmra.mxu0 %v1613
      %v1725 = vpop.f32.mrf.mxu0
      %v1726 = vadd.f32 0.0, %v1725
      %1727 = vmatmul.f32.gmra.mxu0 %v1616
      %v1728 = vpop.f32.mrf.mxu0
      %v1729 = vadd.f32 0.0, %v1728
      %1730 = vmatmul.f32.gmra.mxu0 %v1619
      %v1731 = vpop.f32.mrf.mxu0
      %v1732 = vadd.f32 0.0, %v1731
      %1733 = vmatmul.f32.gmra.mxu0 %v1622
      %v1734 = vpop.f32.mrf.mxu0
      %v1735 = vadd.f32 0.0, %v1734
      %1736 = vmatmul.f32.gmra.mxu0 %v1625
      %v1737 = vpop.f32.mrf.mxu0
      %v1738 = vadd.f32 0.0, %v1737
      %1739 = vmatmul.f32.gmra.mxu0 %v1628
      %v1740 = vpop.f32.mrf.mxu0
      %v1741 = vadd.f32 0.0, %v1740
      %1742 = vmatmul.f32.gmra.mxu0 %v1631
      %v1743 = vpop.f32.mrf.mxu0
      %v1744 = vadd.f32 0.0, %v1743
      %1745 = vmatmul.f32.gmra.mxu0 %v1634
      %v1746 = vpop.f32.mrf.mxu0
      %v1747 = vadd.f32 0.0, %v1746
      %1748 = vmatmul.f32.gmra.mxu0 %v1637
      %v1749 = vpop.f32.mrf.mxu0
      %v1750 = vadd.f32 0.0, %v1749
      %1751 = vmatmul.f32.gmra.mxu0 %v1640
      %v1752 = vpop.f32.mrf.mxu0
      %v1753 = vadd.f32 0.0, %v1752
      %1754 = vmatmul.f32.gmra.mxu0 %v1643
      %v1755 = vpop.f32.mrf.mxu0
      %v1756 = vadd.f32 0.0, %v1755
      %1757 = vmatmul.f32.gmra.mxu0 %v1646
      %v1758 = vpop.f32.mrf.mxu0
      %v1759 = vadd.f32 0.0, %v1758
      %1760 = vmatmul.f32.gmra.mxu0 %v1649
      %v1761 = vpop.f32.mrf.mxu0
      %v1762 = vadd.f32 0.0, %v1761
      %1763 = vmatmul.f32.gmra.mxu0 %v1652
      %v1764 = vpop.f32.mrf.mxu0
      %v1765 = vadd.f32 0.0, %v1764
      %1766 = vdwg.mxu0
      %v1767 = vlaneseq
      %v1768 = vand.u32 %v1767, 127
      %vm1769 = vcmp.lt.s32.totalorder %v1768, 8
      %v1770 = vsel %vm1769, %v1237, -1e+30
      %v1771 = vsel %vm1769, %v1240, -1e+30
      %v1772 = vsel %vm1769, %v1243, -1e+30
      %v1773 = vsel %vm1769, %v1246, -1e+30
      %v1774 = vsel %vm1769, %v1249, -1e+30
      %v1775 = vsel %vm1769, %v1252, -1e+30
      %v1776 = vsel %vm1769, %v1255, -1e+30
      %v1777 = vsel %vm1769, %v1258, -1e+30
      %v1778 = vsel %vm1769, %v1261, -1e+30
      %v1779 = vsel %vm1769, %v1264, -1e+30
      %v1780 = vsel %vm1769, %v1267, -1e+30
      %v1781 = vsel %vm1769, %v1270, -1e+30
      %v1782 = vsel %vm1769, %v1273, -1e+30
      %v1783 = vsel %vm1769, %v1276, -1e+30
      %v1784 = vsel %vm1769, %v1279, -1e+30
      %v1785 = vsel %vm1769, %v1282, -1e+30
      %v1786 = vsel %vm1769, %v1398, -1e+30
      %v1787 = vsel %vm1769, %v1401, -1e+30
      %v1788 = vsel %vm1769, %v1404, -1e+30
      %v1789 = vsel %vm1769, %v1407, -1e+30
      %v1790 = vsel %vm1769, %v1410, -1e+30
      %v1791 = vsel %vm1769, %v1413, -1e+30
      %v1792 = vsel %vm1769, %v1416, -1e+30
      %v1793 = vsel %vm1769, %v1419, -1e+30
      %v1794 = vsel %vm1769, %v1422, -1e+30
      %v1795 = vsel %vm1769, %v1425, -1e+30
      %v1796 = vsel %vm1769, %v1428, -1e+30
      %v1797 = vsel %vm1769, %v1431, -1e+30
      %v1798 = vsel %vm1769, %v1434, -1e+30
      %v1799 = vsel %vm1769, %v1437, -1e+30
      %v1800 = vsel %vm1769, %v1440, -1e+30
      %v1801 = vsel %vm1769, %v1443, -1e+30
      %v1802 = vsel %vm1769, %v1559, -1e+30
      %v1803 = vsel %vm1769, %v1562, -1e+30
      %v1804 = vsel %vm1769, %v1565, -1e+30
      %v1805 = vsel %vm1769, %v1568, -1e+30
      %v1806 = vsel %vm1769, %v1571, -1e+30
      %v1807 = vsel %vm1769, %v1574, -1e+30
      %v1808 = vsel %vm1769, %v1577, -1e+30
      %v1809 = vsel %vm1769, %v1580, -1e+30
      %v1810 = vsel %vm1769, %v1583, -1e+30
      %v1811 = vsel %vm1769, %v1586, -1e+30
      %v1812 = vsel %vm1769, %v1589, -1e+30
      %v1813 = vsel %vm1769, %v1592, -1e+30
      %v1814 = vsel %vm1769, %v1595, -1e+30
      %v1815 = vsel %vm1769, %v1598, -1e+30
      %v1816 = vsel %vm1769, %v1601, -1e+30
      %v1817 = vsel %vm1769, %v1604, -1e+30
      %v1818 = vsel %vm1769, %v1720, -1e+30
      %v1819 = vsel %vm1769, %v1723, -1e+30
      %v1820 = vsel %vm1769, %v1726, -1e+30
      %v1821 = vsel %vm1769, %v1729, -1e+30
      %v1822 = vsel %vm1769, %v1732, -1e+30
      %v1823 = vsel %vm1769, %v1735, -1e+30
      %v1824 = vsel %vm1769, %v1738, -1e+30
      %v1825 = vsel %vm1769, %v1741, -1e+30
      %v1826 = vsel %vm1769, %v1744, -1e+30
      %v1827 = vsel %vm1769, %v1747, -1e+30
      %v1828 = vsel %vm1769, %v1750, -1e+30
      %v1829 = vsel %vm1769, %v1753, -1e+30
      %v1830 = vsel %vm1769, %v1756, -1e+30
      %v1831 = vsel %vm1769, %v1759, -1e+30
      %v1832 = vsel %vm1769, %v1762, -1e+30
      %v1833 = vsel %vm1769, %v1765, -1e+30
      %1834 = vmax.xlane.f32.xlu0 %v1770
      %v1835 = vpop.xlane.xlu0 %1834
      %1836 = vmax.xlane.f32.xlu0 %v1771
      %v1837 = vpop.xlane.xlu0 %1836
      %1838 = vmax.xlane.f32.xlu0 %v1772
      %v1839 = vpop.xlane.xlu0 %1838
      %1840 = vmax.xlane.f32.xlu0 %v1773
      %v1841 = vpop.xlane.xlu0 %1840
      %1842 = vmax.xlane.f32.xlu0 %v1774
      %v1843 = vpop.xlane.xlu0 %1842
      %1844 = vmax.xlane.f32.xlu0 %v1775
      %v1845 = vpop.xlane.xlu0 %1844
      %1846 = vmax.xlane.f32.xlu0 %v1776
      %v1847 = vpop.xlane.xlu0 %1846
      %1848 = vmax.xlane.f32.xlu0 %v1777
      %v1849 = vpop.xlane.xlu0 %1848
      %1850 = vmax.xlane.f32.xlu0 %v1778
      %v1851 = vpop.xlane.xlu0 %1850
      %1852 = vmax.xlane.f32.xlu0 %v1779
      %v1853 = vpop.xlane.xlu0 %1852
      %1854 = vmax.xlane.f32.xlu0 %v1780
      %v1855 = vpop.xlane.xlu0 %1854
      %1856 = vmax.xlane.f32.xlu0 %v1781
      %v1857 = vpop.xlane.xlu0 %1856
      %1858 = vmax.xlane.f32.xlu0 %v1782
      %v1859 = vpop.xlane.xlu0 %1858
      %1860 = vmax.xlane.f32.xlu0 %v1783
      %v1861 = vpop.xlane.xlu0 %1860
      %1862 = vmax.xlane.f32.xlu0 %v1784
      %v1863 = vpop.xlane.xlu0 %1862
      %1864 = vmax.xlane.f32.xlu0 %v1785
      %v1865 = vpop.xlane.xlu0 %1864
      %1866 = vmax.xlane.f32.xlu0 %v1786
      %v1867 = vpop.xlane.xlu0 %1866
      %1868 = vmax.xlane.f32.xlu0 %v1787
      %v1869 = vpop.xlane.xlu0 %1868
      %1870 = vmax.xlane.f32.xlu0 %v1788
      %v1871 = vpop.xlane.xlu0 %1870
      %1872 = vmax.xlane.f32.xlu0 %v1789
      %v1873 = vpop.xlane.xlu0 %1872
      %1874 = vmax.xlane.f32.xlu0 %v1790
      %v1875 = vpop.xlane.xlu0 %1874
      %1876 = vmax.xlane.f32.xlu0 %v1791
      %v1877 = vpop.xlane.xlu0 %1876
      %1878 = vmax.xlane.f32.xlu0 %v1792
      %v1879 = vpop.xlane.xlu0 %1878
      %1880 = vmax.xlane.f32.xlu0 %v1793
      %v1881 = vpop.xlane.xlu0 %1880
      %1882 = vmax.xlane.f32.xlu0 %v1794
      %v1883 = vpop.xlane.xlu0 %1882
      %1884 = vmax.xlane.f32.xlu0 %v1795
      %v1885 = vpop.xlane.xlu0 %1884
      %1886 = vmax.xlane.f32.xlu0 %v1796
      %v1887 = vpop.xlane.xlu0 %1886
      %1888 = vmax.xlane.f32.xlu0 %v1797
      %v1889 = vpop.xlane.xlu0 %1888
      %1890 = vmax.xlane.f32.xlu0 %v1798
      %v1891 = vpop.xlane.xlu0 %1890
      %1892 = vmax.xlane.f32.xlu0 %v1799
      %v1893 = vpop.xlane.xlu0 %1892
      %1894 = vmax.xlane.f32.xlu0 %v1800
      %v1895 = vpop.xlane.xlu0 %1894
      %1896 = vmax.xlane.f32.xlu0 %v1801
      %v1897 = vpop.xlane.xlu0 %1896
      %1898 = vmax.xlane.f32.xlu0 %v1802
      %v1899 = vpop.xlane.xlu0 %1898
      %1900 = vmax.xlane.f32.xlu0 %v1803
      %v1901 = vpop.xlane.xlu0 %1900
      %1902 = vmax.xlane.f32.xlu0 %v1804
      %v1903 = vpop.xlane.xlu0 %1902
      %1904 = vmax.xlane.f32.xlu0 %v1805
      %v1905 = vpop.xlane.xlu0 %1904
      %1906 = vmax.xlane.f32.xlu0 %v1806
      %v1907 = vpop.xlane.xlu0 %1906
      %1908 = vmax.xlane.f32.xlu0 %v1807
      %v1909 = vpop.xlane.xlu0 %1908
      %1910 = vmax.xlane.f32.xlu0 %v1808
      %v1911 = vpop.xlane.xlu0 %1910
      %1912 = vmax.xlane.f32.xlu0 %v1809
      %v1913 = vpop.xlane.xlu0 %1912
      %1914 = vmax.xlane.f32.xlu0 %v1810
      %v1915 = vpop.xlane.xlu0 %1914
      %1916 = vmax.xlane.f32.xlu0 %v1811
      %v1917 = vpop.xlane.xlu0 %1916
      %1918 = vmax.xlane.f32.xlu0 %v1812
      %v1919 = vpop.xlane.xlu0 %1918
      %1920 = vmax.xlane.f32.xlu0 %v1813
      %v1921 = vpop.xlane.xlu0 %1920
      %1922 = vmax.xlane.f32.xlu0 %v1814
      %v1923 = vpop.xlane.xlu0 %1922
      %1924 = vmax.xlane.f32.xlu0 %v1815
      %v1925 = vpop.xlane.xlu0 %1924
      %1926 = vmax.xlane.f32.xlu0 %v1816
      %v1927 = vpop.xlane.xlu0 %1926
      %1928 = vmax.xlane.f32.xlu0 %v1817
      %v1929 = vpop.xlane.xlu0 %1928
      %1930 = vmax.xlane.f32.xlu0 %v1818
      %v1931 = vpop.xlane.xlu0 %1930
      %1932 = vmax.xlane.f32.xlu0 %v1819
      %v1933 = vpop.xlane.xlu0 %1932
      %1934 = vmax.xlane.f32.xlu0 %v1820
      %v1935 = vpop.xlane.xlu0 %1934
      %1936 = vmax.xlane.f32.xlu0 %v1821
      %v1937 = vpop.xlane.xlu0 %1936
      %1938 = vmax.xlane.f32.xlu0 %v1822
      %v1939 = vpop.xlane.xlu0 %1938
      %1940 = vmax.xlane.f32.xlu0 %v1823
      %v1941 = vpop.xlane.xlu0 %1940
      %1942 = vmax.xlane.f32.xlu0 %v1824
      %v1943 = vpop.xlane.xlu0 %1942
      %1944 = vmax.xlane.f32.xlu0 %v1825
      %v1945 = vpop.xlane.xlu0 %1944
      %1946 = vmax.xlane.f32.xlu0 %v1826
      %v1947 = vpop.xlane.xlu0 %1946
      %1948 = vmax.xlane.f32.xlu0 %v1827
      %v1949 = vpop.xlane.xlu0 %1948
      %1950 = vmax.xlane.f32.xlu0 %v1828
      %v1951 = vpop.xlane.xlu0 %1950
      %1952 = vmax.xlane.f32.xlu0 %v1829
      %v1953 = vpop.xlane.xlu0 %1952
      %1954 = vmax.xlane.f32.xlu0 %v1830
      %v1955 = vpop.xlane.xlu0 %1954
      %1956 = vmax.xlane.f32.xlu0 %v1831
      %v1957 = vpop.xlane.xlu0 %1956
      %1958 = vmax.xlane.f32.xlu0 %v1832
      %v1959 = vpop.xlane.xlu0 %1958
      %1960 = vmax.xlane.f32.xlu0 %v1833
      %v1961 = vpop.xlane.xlu0 %1960
      %v1962 = vsub.f32 %v1770, %v1835
      %v1963 = vsub.f32 %v1771, %v1837
      %v1964 = vsub.f32 %v1772, %v1839
      %v1965 = vsub.f32 %v1773, %v1841
      %v1966 = vsub.f32 %v1774, %v1843
      %v1967 = vsub.f32 %v1775, %v1845
      %v1968 = vsub.f32 %v1776, %v1847
      %v1969 = vsub.f32 %v1777, %v1849
      %v1970 = vsub.f32 %v1778, %v1851
      %v1971 = vsub.f32 %v1779, %v1853
      %v1972 = vsub.f32 %v1780, %v1855
      %v1973 = vsub.f32 %v1781, %v1857
      %v1974 = vsub.f32 %v1782, %v1859
      %v1975 = vsub.f32 %v1783, %v1861
      %v1976 = vsub.f32 %v1784, %v1863
      %v1977 = vsub.f32 %v1785, %v1865
      %v1978 = vsub.f32 %v1786, %v1867
      %v1979 = vsub.f32 %v1787, %v1869
      %v1980 = vsub.f32 %v1788, %v1871
      %v1981 = vsub.f32 %v1789, %v1873
      %v1982 = vsub.f32 %v1790, %v1875
      %v1983 = vsub.f32 %v1791, %v1877
      %v1984 = vsub.f32 %v1792, %v1879
      %v1985 = vsub.f32 %v1793, %v1881
      %v1986 = vsub.f32 %v1794, %v1883
      %v1987 = vsub.f32 %v1795, %v1885
      %v1988 = vsub.f32 %v1796, %v1887
      %v1989 = vsub.f32 %v1797, %v1889
      %v1990 = vsub.f32 %v1798, %v1891
      %v1991 = vsub.f32 %v1799, %v1893
      %v1992 = vsub.f32 %v1800, %v1895
      %v1993 = vsub.f32 %v1801, %v1897
      %v1994 = vsub.f32 %v1802, %v1899
      %v1995 = vsub.f32 %v1803, %v1901
      %v1996 = vsub.f32 %v1804, %v1903
      %v1997 = vsub.f32 %v1805, %v1905
      %v1998 = vsub.f32 %v1806, %v1907
      %v1999 = vsub.f32 %v1807, %v1909
      %v2000 = vsub.f32 %v1808, %v1911
      %v2001 = vsub.f32 %v1809, %v1913
      %v2002 = vsub.f32 %v1810, %v1915
      %v2003 = vsub.f32 %v1811, %v1917
      %v2004 = vsub.f32 %v1812, %v1919
      %v2005 = vsub.f32 %v1813, %v1921
      %v2006 = vsub.f32 %v1814, %v1923
      %v2007 = vsub.f32 %v1815, %v1925
      %v2008 = vsub.f32 %v1816, %v1927
      %v2009 = vsub.f32 %v1817, %v1929
      %v2010 = vsub.f32 %v1818, %v1931
      %v2011 = vsub.f32 %v1819, %v1933
      %v2012 = vsub.f32 %v1820, %v1935
      %v2013 = vsub.f32 %v1821, %v1937
      %v2014 = vsub.f32 %v1822, %v1939
      %v2015 = vsub.f32 %v1823, %v1941
      %v2016 = vsub.f32 %v1824, %v1943
      %v2017 = vsub.f32 %v1825, %v1945
      %v2018 = vsub.f32 %v1826, %v1947
      %v2019 = vsub.f32 %v1827, %v1949
      %v2020 = vsub.f32 %v1828, %v1951
      %v2021 = vsub.f32 %v1829, %v1953
      %v2022 = vsub.f32 %v1830, %v1955
      %v2023 = vsub.f32 %v1831, %v1957
      %v2024 = vsub.f32 %v1832, %v1959
      %v2025 = vsub.f32 %v1833, %v1961
      %v2026 = vmul.f32 %v1962, 1.442695
      %v2027 = vpow.pop %v2026
      %v2028 = vmul.f32 %v1963, 1.442695
      %v2029 = vpow.pop %v2028
      %v2030 = vmul.f32 %v1964, 1.442695
      %v2031 = vpow.pop %v2030
      %v2032 = vmul.f32 %v1965, 1.442695
      %v2033 = vpow.pop %v2032
      %v2034 = vmul.f32 %v1966, 1.442695
      %v2035 = vpow.pop %v2034
      %v2036 = vmul.f32 %v1967, 1.442695
      %v2037 = vpow.pop %v2036
      %v2038 = vmul.f32 %v1968, 1.442695
      %v2039 = vpow.pop %v2038
      %v2040 = vmul.f32 %v1969, 1.442695
      %v2041 = vpow.pop %v2040
      %v2042 = vmul.f32 %v1970, 1.442695
      %v2043 = vpow.pop %v2042
      %v2044 = vmul.f32 %v1971, 1.442695
      %v2045 = vpow.pop %v2044
      %v2046 = vmul.f32 %v1972, 1.442695
      %v2047 = vpow.pop %v2046
      %v2048 = vmul.f32 %v1973, 1.442695
      %v2049 = vpow.pop %v2048
      %v2050 = vmul.f32 %v1974, 1.442695
      %v2051 = vpow.pop %v2050
      %v2052 = vmul.f32 %v1975, 1.442695
      %v2053 = vpow.pop %v2052
      %v2054 = vmul.f32 %v1976, 1.442695
      %v2055 = vpow.pop %v2054
      %v2056 = vmul.f32 %v1977, 1.442695
      %v2057 = vpow.pop %v2056
      %v2058 = vmul.f32 %v1978, 1.442695
      %v2059 = vpow.pop %v2058
      %v2060 = vmul.f32 %v1979, 1.442695
      %v2061 = vpow.pop %v2060
      %v2062 = vmul.f32 %v1980, 1.442695
      %v2063 = vpow.pop %v2062
      %v2064 = vmul.f32 %v1981, 1.442695
      %v2065 = vpow.pop %v2064
      %v2066 = vmul.f32 %v1982, 1.442695
      %v2067 = vpow.pop %v2066
      %v2068 = vmul.f32 %v1983, 1.442695
      %v2069 = vpow.pop %v2068
      %v2070 = vmul.f32 %v1984, 1.442695
      %v2071 = vpow.pop %v2070
      %v2072 = vmul.f32 %v1985, 1.442695
      %v2073 = vpow.pop %v2072
      %v2074 = vmul.f32 %v1986, 1.442695
      %v2075 = vpow.pop %v2074
      %v2076 = vmul.f32 %v1987, 1.442695
      %v2077 = vpow.pop %v2076
      %v2078 = vmul.f32 %v1988, 1.442695
      %v2079 = vpow.pop %v2078
      %v2080 = vmul.f32 %v1989, 1.442695
      %v2081 = vpow.pop %v2080
      %v2082 = vmul.f32 %v1990, 1.442695
      %v2083 = vpow.pop %v2082
      %v2084 = vmul.f32 %v1991, 1.442695
      %v2085 = vpow.pop %v2084
      %v2086 = vmul.f32 %v1992, 1.442695
      %v2087 = vpow.pop %v2086
      %v2088 = vmul.f32 %v1993, 1.442695
      %v2089 = vpow.pop %v2088
      %v2090 = vmul.f32 %v1994, 1.442695
      %v2091 = vpow.pop %v2090
      %v2092 = vmul.f32 %v1995, 1.442695
      %v2093 = vpow.pop %v2092
      %v2094 = vmul.f32 %v1996, 1.442695
      %v2095 = vpow.pop %v2094
      %v2096 = vmul.f32 %v1997, 1.442695
      %v2097 = vpow.pop %v2096
      %v2098 = vmul.f32 %v1998, 1.442695
      %v2099 = vpow.pop %v2098
      %v2100 = vmul.f32 %v1999, 1.442695
      %v2101 = vpow.pop %v2100
      %v2102 = vmul.f32 %v2000, 1.442695
      %v2103 = vpow.pop %v2102
      %v2104 = vmul.f32 %v2001, 1.442695
      %v2105 = vpow.pop %v2104
      %v2106 = vmul.f32 %v2002, 1.442695
      %v2107 = vpow.pop %v2106
      %v2108 = vmul.f32 %v2003, 1.442695
      %v2109 = vpow.pop %v2108
      %v2110 = vmul.f32 %v2004, 1.442695
      %v2111 = vpow.pop %v2110
      %v2112 = vmul.f32 %v2005, 1.442695
      %v2113 = vpow.pop %v2112
      %v2114 = vmul.f32 %v2006, 1.442695
      %v2115 = vpow.pop %v2114
      %v2116 = vmul.f32 %v2007, 1.442695
      %v2117 = vpow.pop %v2116
      %v2118 = vmul.f32 %v2008, 1.442695
      %v2119 = vpow.pop %v2118
      %v2120 = vmul.f32 %v2009, 1.442695
      %v2121 = vpow.pop %v2120
      %v2122 = vmul.f32 %v2010, 1.442695
      %v2123 = vpow.pop %v2122
      %v2124 = vmul.f32 %v2011, 1.442695
      %v2125 = vpow.pop %v2124
      %v2126 = vmul.f32 %v2012, 1.442695
      %v2127 = vpow.pop %v2126
      %v2128 = vmul.f32 %v2013, 1.442695
      %v2129 = vpow.pop %v2128
      %v2130 = vmul.f32 %v2014, 1.442695
      %v2131 = vpow.pop %v2130
      %v2132 = vmul.f32 %v2015, 1.442695
      %v2133 = vpow.pop %v2132
      %v2134 = vmul.f32 %v2016, 1.442695
      %v2135 = vpow.pop %v2134
      %v2136 = vmul.f32 %v2017, 1.442695
      %v2137 = vpow.pop %v2136
      %v2138 = vmul.f32 %v2018, 1.442695
      %v2139 = vpow.pop %v2138
      %v2140 = vmul.f32 %v2019, 1.442695
      %v2141 = vpow.pop %v2140
      %v2142 = vmul.f32 %v2020, 1.442695
      %v2143 = vpow.pop %v2142
      %v2144 = vmul.f32 %v2021, 1.442695
      %v2145 = vpow.pop %v2144
      %v2146 = vmul.f32 %v2022, 1.442695
      %v2147 = vpow.pop %v2146
      %v2148 = vmul.f32 %v2023, 1.442695
      %v2149 = vpow.pop %v2148
      %v2150 = vmul.f32 %v2024, 1.442695
      %v2151 = vpow.pop %v2150
      %v2152 = vmul.f32 %v2025, 1.442695
      %v2153 = vpow.pop %v2152
      %2154 = vadd.xlane.f32.xlu0 %v2027
      %v2155 = vpop.xlane.xlu0 %2154
      %2156 = vadd.xlane.f32.xlu0 %v2029
      %v2157 = vpop.xlane.xlu0 %2156
      %2158 = vadd.xlane.f32.xlu0 %v2031
      %v2159 = vpop.xlane.xlu0 %2158
      %2160 = vadd.xlane.f32.xlu0 %v2033
      %v2161 = vpop.xlane.xlu0 %2160
      %2162 = vadd.xlane.f32.xlu0 %v2035
      %v2163 = vpop.xlane.xlu0 %2162
      %2164 = vadd.xlane.f32.xlu0 %v2037
      %v2165 = vpop.xlane.xlu0 %2164
      %2166 = vadd.xlane.f32.xlu0 %v2039
      %v2167 = vpop.xlane.xlu0 %2166
      %2168 = vadd.xlane.f32.xlu0 %v2041
      %v2169 = vpop.xlane.xlu0 %2168
      %2170 = vadd.xlane.f32.xlu0 %v2043
      %v2171 = vpop.xlane.xlu0 %2170
      %2172 = vadd.xlane.f32.xlu0 %v2045
      %v2173 = vpop.xlane.xlu0 %2172
      %2174 = vadd.xlane.f32.xlu0 %v2047
      %v2175 = vpop.xlane.xlu0 %2174
      %2176 = vadd.xlane.f32.xlu0 %v2049
      %v2177 = vpop.xlane.xlu0 %2176
      %2178 = vadd.xlane.f32.xlu0 %v2051
      %v2179 = vpop.xlane.xlu0 %2178
      %2180 = vadd.xlane.f32.xlu0 %v2053
      %v2181 = vpop.xlane.xlu0 %2180
      %2182 = vadd.xlane.f32.xlu0 %v2055
      %v2183 = vpop.xlane.xlu0 %2182
      %2184 = vadd.xlane.f32.xlu0 %v2057
      %v2185 = vpop.xlane.xlu0 %2184
      %2186 = vadd.xlane.f32.xlu0 %v2059
      %v2187 = vpop.xlane.xlu0 %2186
      %2188 = vadd.xlane.f32.xlu0 %v2061
      %v2189 = vpop.xlane.xlu0 %2188
      %2190 = vadd.xlane.f32.xlu0 %v2063
      %v2191 = vpop.xlane.xlu0 %2190
      %2192 = vadd.xlane.f32.xlu0 %v2065
      %v2193 = vpop.xlane.xlu0 %2192
      %2194 = vadd.xlane.f32.xlu0 %v2067
      %v2195 = vpop.xlane.xlu0 %2194
      %2196 = vadd.xlane.f32.xlu0 %v2069
      %v2197 = vpop.xlane.xlu0 %2196
      %2198 = vadd.xlane.f32.xlu0 %v2071
      %v2199 = vpop.xlane.xlu0 %2198
      %2200 = vadd.xlane.f32.xlu0 %v2073
      %v2201 = vpop.xlane.xlu0 %2200
      %2202 = vadd.xlane.f32.xlu0 %v2075
      %v2203 = vpop.xlane.xlu0 %2202
      %2204 = vadd.xlane.f32.xlu0 %v2077
      %v2205 = vpop.xlane.xlu0 %2204
      %2206 = vadd.xlane.f32.xlu0 %v2079
      %v2207 = vpop.xlane.xlu0 %2206
      %2208 = vadd.xlane.f32.xlu0 %v2081
      %v2209 = vpop.xlane.xlu0 %2208
      %2210 = vadd.xlane.f32.xlu0 %v2083
      %v2211 = vpop.xlane.xlu0 %2210
      %2212 = vadd.xlane.f32.xlu0 %v2085
      %v2213 = vpop.xlane.xlu0 %2212
      %2214 = vadd.xlane.f32.xlu0 %v2087
      %v2215 = vpop.xlane.xlu0 %2214
      %2216 = vadd.xlane.f32.xlu0 %v2089
      %v2217 = vpop.xlane.xlu0 %2216
      %2218 = vadd.xlane.f32.xlu0 %v2091
      %v2219 = vpop.xlane.xlu0 %2218
      %2220 = vadd.xlane.f32.xlu0 %v2093
      %v2221 = vpop.xlane.xlu0 %2220
      %2222 = vadd.xlane.f32.xlu0 %v2095
      %v2223 = vpop.xlane.xlu0 %2222
      %2224 = vadd.xlane.f32.xlu0 %v2097
      %v2225 = vpop.xlane.xlu0 %2224
      %2226 = vadd.xlane.f32.xlu0 %v2099
      %v2227 = vpop.xlane.xlu0 %2226
      %2228 = vadd.xlane.f32.xlu0 %v2101
      %v2229 = vpop.xlane.xlu0 %2228
      %2230 = vadd.xlane.f32.xlu0 %v2103
      %v2231 = vpop.xlane.xlu0 %2230
      %2232 = vadd.xlane.f32.xlu0 %v2105
      %v2233 = vpop.xlane.xlu0 %2232
      %2234 = vadd.xlane.f32.xlu0 %v2107
      %v2235 = vpop.xlane.xlu0 %2234
      %2236 = vadd.xlane.f32.xlu0 %v2109
      %v2237 = vpop.xlane.xlu0 %2236
      %2238 = vadd.xlane.f32.xlu0 %v2111
      %v2239 = vpop.xlane.xlu0 %2238
      %2240 = vadd.xlane.f32.xlu0 %v2113
      %v2241 = vpop.xlane.xlu0 %2240
      %2242 = vadd.xlane.f32.xlu0 %v2115
      %v2243 = vpop.xlane.xlu0 %2242
      %2244 = vadd.xlane.f32.xlu0 %v2117
      %v2245 = vpop.xlane.xlu0 %2244
      %2246 = vadd.xlane.f32.xlu0 %v2119
      %v2247 = vpop.xlane.xlu0 %2246
      %2248 = vadd.xlane.f32.xlu0 %v2121
      %v2249 = vpop.xlane.xlu0 %2248
      %2250 = vadd.xlane.f32.xlu0 %v2123
      %v2251 = vpop.xlane.xlu0 %2250
      %2252 = vadd.xlane.f32.xlu0 %v2125
      %v2253 = vpop.xlane.xlu0 %2252
      %2254 = vadd.xlane.f32.xlu0 %v2127
      %v2255 = vpop.xlane.xlu0 %2254
      %2256 = vadd.xlane.f32.xlu0 %v2129
      %v2257 = vpop.xlane.xlu0 %2256
      %2258 = vadd.xlane.f32.xlu0 %v2131
      %v2259 = vpop.xlane.xlu0 %2258
      %2260 = vadd.xlane.f32.xlu0 %v2133
      %v2261 = vpop.xlane.xlu0 %2260
      %2262 = vadd.xlane.f32.xlu0 %v2135
      %v2263 = vpop.xlane.xlu0 %2262
      %2264 = vadd.xlane.f32.xlu0 %v2137
      %v2265 = vpop.xlane.xlu0 %2264
      %2266 = vadd.xlane.f32.xlu0 %v2139
      %v2267 = vpop.xlane.xlu0 %2266
      %2268 = vadd.xlane.f32.xlu0 %v2141
      %v2269 = vpop.xlane.xlu0 %2268
      %2270 = vadd.xlane.f32.xlu0 %v2143
      %v2271 = vpop.xlane.xlu0 %2270
      %2272 = vadd.xlane.f32.xlu0 %v2145
      %v2273 = vpop.xlane.xlu0 %2272
      %2274 = vadd.xlane.f32.xlu0 %v2147
      %v2275 = vpop.xlane.xlu0 %2274
      %2276 = vadd.xlane.f32.xlu0 %v2149
      %v2277 = vpop.xlane.xlu0 %2276
      %2278 = vadd.xlane.f32.xlu0 %v2151
      %v2279 = vpop.xlane.xlu0 %2278
      %2280 = vadd.xlane.f32.xlu0 %v2153
      %v2281 = vpop.xlane.xlu0 %2280
      %2282 = vmatpush.msra.mxu0 %v916
      %2283 = vmatpush.msra.mxu0 %v913
      %2284 = vmatpush.msra.mxu0 %v910
      %2285 = vmatpush.msra.mxu0 %v907
      %2286 = vmatpush.msra.mxu0 %v904
      %2287 = vmatpush.msra.mxu0 %v901
      %2288 = vmatpush.msra.mxu0 %v898
      %2289 = vmatpush.msra.mxu0 %v895
      %2290 = vmatpush.msra.mxu0 %v892
      %2291 = vmatpush.msra.mxu0 %v889
      %2292 = vmatpush.msra.mxu0 %v886
      %2293 = vmatpush.msra.mxu0 %v883
      %2294 = vmatpush.msra.mxu0 %v880
      %2295 = vmatpush.msra.mxu0 %v877
      %2296 = vmatpush.msra.mxu0 %v874
      %2297 = vmatpush.msra.mxu0 %v871
      %2298 = vmatmul.f32.gmra.mxu0 %v2027
      %v2299 = vpop.f32.mrf.mxu0
      %v2300 = vadd.f32 0.0, %v2299
      %2301 = vmatmul.f32.gmra.mxu0 %v2029
      %v2302 = vpop.f32.mrf.mxu0
      %v2303 = vadd.f32 0.0, %v2302
      %2304 = vmatmul.f32.gmra.mxu0 %v2031
      %v2305 = vpop.f32.mrf.mxu0
      %v2306 = vadd.f32 0.0, %v2305
      %2307 = vmatmul.f32.gmra.mxu0 %v2033
      %v2308 = vpop.f32.mrf.mxu0
      %v2309 = vadd.f32 0.0, %v2308
      %2310 = vmatmul.f32.gmra.mxu0 %v2035
      %v2311 = vpop.f32.mrf.mxu0
      %v2312 = vadd.f32 0.0, %v2311
      %2313 = vmatmul.f32.gmra.mxu0 %v2037
      %v2314 = vpop.f32.mrf.mxu0
      %v2315 = vadd.f32 0.0, %v2314
      %2316 = vmatmul.f32.gmra.mxu0 %v2039
      %v2317 = vpop.f32.mrf.mxu0
      %v2318 = vadd.f32 0.0, %v2317
      %2319 = vmatmul.f32.gmra.mxu0 %v2041
      %v2320 = vpop.f32.mrf.mxu0
      %v2321 = vadd.f32 0.0, %v2320
      %2322 = vmatmul.f32.gmra.mxu0 %v2043
      %v2323 = vpop.f32.mrf.mxu0
      %v2324 = vadd.f32 0.0, %v2323
      %2325 = vmatmul.f32.gmra.mxu0 %v2045
      %v2326 = vpop.f32.mrf.mxu0
      %v2327 = vadd.f32 0.0, %v2326
      %2328 = vmatmul.f32.gmra.mxu0 %v2047
      %v2329 = vpop.f32.mrf.mxu0
      %v2330 = vadd.f32 0.0, %v2329
      %2331 = vmatmul.f32.gmra.mxu0 %v2049
      %v2332 = vpop.f32.mrf.mxu0
      %v2333 = vadd.f32 0.0, %v2332
      %2334 = vmatmul.f32.gmra.mxu0 %v2051
      %v2335 = vpop.f32.mrf.mxu0
      %v2336 = vadd.f32 0.0, %v2335
      %2337 = vmatmul.f32.gmra.mxu0 %v2053
      %v2338 = vpop.f32.mrf.mxu0
      %v2339 = vadd.f32 0.0, %v2338
      %2340 = vmatmul.f32.gmra.mxu0 %v2055
      %v2341 = vpop.f32.mrf.mxu0
      %v2342 = vadd.f32 0.0, %v2341
      %2343 = vmatmul.f32.gmra.mxu0 %v2057
      %v2344 = vpop.f32.mrf.mxu0
      %v2345 = vadd.f32 0.0, %v2344
      %2346 = vdwg.mxu0
      %2347 = vmatpush.msra.mxu0 %v984
      %2348 = vmatpush.msra.mxu0 %v981
      %2349 = vmatpush.msra.mxu0 %v978
      %2350 = vmatpush.msra.mxu0 %v975
      %2351 = vmatpush.msra.mxu0 %v972
      %2352 = vmatpush.msra.mxu0 %v969
      %2353 = vmatpush.msra.mxu0 %v966
      %2354 = vmatpush.msra.mxu0 %v963
      %2355 = vmatpush.msra.mxu0 %v960
      %2356 = vmatpush.msra.mxu0 %v957
      %2357 = vmatpush.msra.mxu0 %v954
      %2358 = vmatpush.msra.mxu0 %v951
      %2359 = vmatpush.msra.mxu0 %v948
      %2360 = vmatpush.msra.mxu0 %v945
      %2361 = vmatpush.msra.mxu0 %v942
      %2362 = vmatpush.msra.mxu0 %v939
      %2363 = vmatmul.f32.gmra.mxu0 %v2059
      %v2364 = vpop.f32.mrf.mxu0
      %v2365 = vadd.f32 0.0, %v2364
      %2366 = vmatmul.f32.gmra.mxu0 %v2061
      %v2367 = vpop.f32.mrf.mxu0
      %v2368 = vadd.f32 0.0, %v2367
      %2369 = vmatmul.f32.gmra.mxu0 %v2063
      %v2370 = vpop.f32.mrf.mxu0
      %v2371 = vadd.f32 0.0, %v2370
      %2372 = vmatmul.f32.gmra.mxu0 %v2065
      %v2373 = vpop.f32.mrf.mxu0
      %v2374 = vadd.f32 0.0, %v2373
      %2375 = vmatmul.f32.gmra.mxu0 %v2067
      %v2376 = vpop.f32.mrf.mxu0
      %v2377 = vadd.f32 0.0, %v2376
      %2378 = vmatmul.f32.gmra.mxu0 %v2069
      %v2379 = vpop.f32.mrf.mxu0
      %v2380 = vadd.f32 0.0, %v2379
      %2381 = vmatmul.f32.gmra.mxu0 %v2071
      %v2382 = vpop.f32.mrf.mxu0
      %v2383 = vadd.f32 0.0, %v2382
      %2384 = vmatmul.f32.gmra.mxu0 %v2073
      %v2385 = vpop.f32.mrf.mxu0
      %v2386 = vadd.f32 0.0, %v2385
      %2387 = vmatmul.f32.gmra.mxu0 %v2075
      %v2388 = vpop.f32.mrf.mxu0
      %v2389 = vadd.f32 0.0, %v2388
      %2390 = vmatmul.f32.gmra.mxu0 %v2077
      %v2391 = vpop.f32.mrf.mxu0
      %v2392 = vadd.f32 0.0, %v2391
      %2393 = vmatmul.f32.gmra.mxu0 %v2079
      %v2394 = vpop.f32.mrf.mxu0
      %v2395 = vadd.f32 0.0, %v2394
      %2396 = vmatmul.f32.gmra.mxu0 %v2081
      %v2397 = vpop.f32.mrf.mxu0
      %v2398 = vadd.f32 0.0, %v2397
      %2399 = vmatmul.f32.gmra.mxu0 %v2083
      %v2400 = vpop.f32.mrf.mxu0
      %v2401 = vadd.f32 0.0, %v2400
      %2402 = vmatmul.f32.gmra.mxu0 %v2085
      %v2403 = vpop.f32.mrf.mxu0
      %v2404 = vadd.f32 0.0, %v2403
      %2405 = vmatmul.f32.gmra.mxu0 %v2087
      %v2406 = vpop.f32.mrf.mxu0
      %v2407 = vadd.f32 0.0, %v2406
      %2408 = vmatmul.f32.gmra.mxu0 %v2089
      %v2409 = vpop.f32.mrf.mxu0
      %v2410 = vadd.f32 0.0, %v2409
      %2411 = vdwg.mxu0
      %2412 = vmatpush.msra.mxu0 %v1052
      %2413 = vmatpush.msra.mxu0 %v1049
      %2414 = vmatpush.msra.mxu0 %v1046
      %2415 = vmatpush.msra.mxu0 %v1043
      %2416 = vmatpush.msra.mxu0 %v1040
      %2417 = vmatpush.msra.mxu0 %v1037
      %2418 = vmatpush.msra.mxu0 %v1034
      %2419 = vmatpush.msra.mxu0 %v1031
      %2420 = vmatpush.msra.mxu0 %v1028
      %2421 = vmatpush.msra.mxu0 %v1025
      %2422 = vmatpush.msra.mxu0 %v1022
      %2423 = vmatpush.msra.mxu0 %v1019
      %2424 = vmatpush.msra.mxu0 %v1016
      %2425 = vmatpush.msra.mxu0 %v1013
      %2426 = vmatpush.msra.mxu0 %v1010
      %2427 = vmatpush.msra.mxu0 %v1007
      %2428 = vmatmul.f32.gmra.mxu0 %v2091
      %v2429 = vpop.f32.mrf.mxu0
      %v2430 = vadd.f32 0.0, %v2429
      %2431 = vmatmul.f32.gmra.mxu0 %v2093
      %v2432 = vpop.f32.mrf.mxu0
      %v2433 = vadd.f32 0.0, %v2432
      %2434 = vmatmul.f32.gmra.mxu0 %v2095
      %v2435 = vpop.f32.mrf.mxu0
      %v2436 = vadd.f32 0.0, %v2435
      %2437 = vmatmul.f32.gmra.mxu0 %v2097
      %v2438 = vpop.f32.mrf.mxu0
      %v2439 = vadd.f32 0.0, %v2438
      %2440 = vmatmul.f32.gmra.mxu0 %v2099
      %v2441 = vpop.f32.mrf.mxu0
      %v2442 = vadd.f32 0.0, %v2441
      %2443 = vmatmul.f32.gmra.mxu0 %v2101
      %v2444 = vpop.f32.mrf.mxu0
      %v2445 = vadd.f32 0.0, %v2444
      %2446 = vmatmul.f32.gmra.mxu0 %v2103
      %v2447 = vpop.f32.mrf.mxu0
      %v2448 = vadd.f32 0.0, %v2447
      %2449 = vmatmul.f32.gmra.mxu0 %v2105
      %v2450 = vpop.f32.mrf.mxu0
      %v2451 = vadd.f32 0.0, %v2450
      %2452 = vmatmul.f32.gmra.mxu0 %v2107
      %v2453 = vpop.f32.mrf.mxu0
      %v2454 = vadd.f32 0.0, %v2453
      %2455 = vmatmul.f32.gmra.mxu0 %v2109
      %v2456 = vpop.f32.mrf.mxu0
      %v2457 = vadd.f32 0.0, %v2456
      %2458 = vmatmul.f32.gmra.mxu0 %v2111
      %v2459 = vpop.f32.mrf.mxu0
      %v2460 = vadd.f32 0.0, %v2459
      %2461 = vmatmul.f32.gmra.mxu0 %v2113
      %v2462 = vpop.f32.mrf.mxu0
      %v2463 = vadd.f32 0.0, %v2462
      %2464 = vmatmul.f32.gmra.mxu0 %v2115
      %v2465 = vpop.f32.mrf.mxu0
      %v2466 = vadd.f32 0.0, %v2465
      %2467 = vmatmul.f32.gmra.mxu0 %v2117
      %v2468 = vpop.f32.mrf.mxu0
      %v2469 = vadd.f32 0.0, %v2468
      %2470 = vmatmul.f32.gmra.mxu0 %v2119
      %v2471 = vpop.f32.mrf.mxu0
      %v2472 = vadd.f32 0.0, %v2471
      %2473 = vmatmul.f32.gmra.mxu0 %v2121
      %v2474 = vpop.f32.mrf.mxu0
      %v2475 = vadd.f32 0.0, %v2474
      %2476 = vdwg.mxu0
      %2477 = vmatpush.msra.mxu0 %v1120
      %2478 = vmatpush.msra.mxu0 %v1117
      %2479 = vmatpush.msra.mxu0 %v1114
      %2480 = vmatpush.msra.mxu0 %v1111
      %2481 = vmatpush.msra.mxu0 %v1108
      %2482 = vmatpush.msra.mxu0 %v1105
      %2483 = vmatpush.msra.mxu0 %v1102
      %2484 = vmatpush.msra.mxu0 %v1099
      %2485 = vmatpush.msra.mxu0 %v1096
      %2486 = vmatpush.msra.mxu0 %v1093
      %2487 = vmatpush.msra.mxu0 %v1090
      %2488 = vmatpush.msra.mxu0 %v1087
      %2489 = vmatpush.msra.mxu0 %v1084
      %2490 = vmatpush.msra.mxu0 %v1081
      %2491 = vmatpush.msra.mxu0 %v1078
      %2492 = vmatpush.msra.mxu0 %v1075
      %2493 = vmatmul.f32.gmra.mxu0 %v2123
      %v2494 = vpop.f32.mrf.mxu0
      %v2495 = vadd.f32 0.0, %v2494
      %2496 = vmatmul.f32.gmra.mxu0 %v2125
      %v2497 = vpop.f32.mrf.mxu0
      %v2498 = vadd.f32 0.0, %v2497
      %2499 = vmatmul.f32.gmra.mxu0 %v2127
      %v2500 = vpop.f32.mrf.mxu0
      %v2501 = vadd.f32 0.0, %v2500
      %2502 = vmatmul.f32.gmra.mxu0 %v2129
      %v2503 = vpop.f32.mrf.mxu0
      %v2504 = vadd.f32 0.0, %v2503
      %2505 = vmatmul.f32.gmra.mxu0 %v2131
      %v2506 = vpop.f32.mrf.mxu0
      %v2507 = vadd.f32 0.0, %v2506
      %2508 = vmatmul.f32.gmra.mxu0 %v2133
      %v2509 = vpop.f32.mrf.mxu0
      %v2510 = vadd.f32 0.0, %v2509
      %2511 = vmatmul.f32.gmra.mxu0 %v2135
      %v2512 = vpop.f32.mrf.mxu0
      %v2513 = vadd.f32 0.0, %v2512
      %2514 = vmatmul.f32.gmra.mxu0 %v2137
      %v2515 = vpop.f32.mrf.mxu0
      %v2516 = vadd.f32 0.0, %v2515
      %2517 = vmatmul.f32.gmra.mxu0 %v2139
      %v2518 = vpop.f32.mrf.mxu0
      %v2519 = vadd.f32 0.0, %v2518
      %2520 = vmatmul.f32.gmra.mxu0 %v2141
      %v2521 = vpop.f32.mrf.mxu0
      %v2522 = vadd.f32 0.0, %v2521
      %2523 = vmatmul.f32.gmra.mxu0 %v2143
      %v2524 = vpop.f32.mrf.mxu0
      %v2525 = vadd.f32 0.0, %v2524
      %2526 = vmatmul.f32.gmra.mxu0 %v2145
      %v2527 = vpop.f32.mrf.mxu0
      %v2528 = vadd.f32 0.0, %v2527
      %2529 = vmatmul.f32.gmra.mxu0 %v2147
      %v2530 = vpop.f32.mrf.mxu0
      %v2531 = vadd.f32 0.0, %v2530
      %2532 = vmatmul.f32.gmra.mxu0 %v2149
      %v2533 = vpop.f32.mrf.mxu0
      %v2534 = vadd.f32 0.0, %v2533
      %2535 = vmatmul.f32.gmra.mxu0 %v2151
      %v2536 = vpop.f32.mrf.mxu0
      %v2537 = vadd.f32 0.0, %v2536
      %2538 = vmatmul.f32.gmra.mxu0 %v2153
      %v2539 = vpop.f32.mrf.mxu0
      %v2540 = vadd.f32 0.0, %v2539
      %2541 = vdwg.mxu0
      %v2542 = vrcp.pop %v2155
      %v2543 = vmul.f32 %v2155, %v2542
      %v2544 = vsub.f32 1.0, %v2543
      %v2545 = vmul.f32 %v2542, %v2544
      %v2546 = vadd.f32 %v2542, %v2545
      %vm2547 = vweird.f32 %v2155
      %vm2548 = vweird.f32 %v2542
      %vm2549 = vmor %vm2547, %vm2548
      %v2550 = vsel %vm2549, %v2542, %v2546
      %v2551 = vand.u32 2147483647, %v2155
      %vm2552 = vcmp.eq.f32.partialorder %v2551, 8.507059e+37
      %v2553 = vand.u32 %v2155, 2147483648
      %v2554 = vor.u32 1.1754944e-38, %v2553
      %v2555 = vsel %vm2552, %v2554, %v2550
      %v2556 = vrcp.pop %v2157
      %v2557 = vmul.f32 %v2157, %v2556
      %v2558 = vsub.f32 1.0, %v2557
      %v2559 = vmul.f32 %v2556, %v2558
      %v2560 = vadd.f32 %v2556, %v2559
      %vm2561 = vweird.f32 %v2157
      %vm2562 = vweird.f32 %v2556
      %vm2563 = vmor %vm2561, %vm2562
      %v2564 = vsel %vm2563, %v2556, %v2560
      %v2565 = vand.u32 2147483647, %v2157
      %vm2566 = vcmp.eq.f32.partialorder %v2565, 8.507059e+37
      %v2567 = vand.u32 %v2157, 2147483648
      %v2568 = vor.u32 1.1754944e-38, %v2567
      %v2569 = vsel %vm2566, %v2568, %v2564
      %v2570 = vrcp.pop %v2159
      %v2571 = vmul.f32 %v2159, %v2570
      %v2572 = vsub.f32 1.0, %v2571
      %v2573 = vmul.f32 %v2570, %v2572
      %v2574 = vadd.f32 %v2570, %v2573
      %vm2575 = vweird.f32 %v2159
      %vm2576 = vweird.f32 %v2570
      %vm2577 = vmor %vm2575, %vm2576
      %v2578 = vsel %vm2577, %v2570, %v2574
      %v2579 = vand.u32 2147483647, %v2159
      %vm2580 = vcmp.eq.f32.partialorder %v2579, 8.507059e+37
      %v2581 = vand.u32 %v2159, 2147483648
      %v2582 = vor.u32 1.1754944e-38, %v2581
      %v2583 = vsel %vm2580, %v2582, %v2578
      %v2584 = vrcp.pop %v2161
      %v2585 = vmul.f32 %v2161, %v2584
      %v2586 = vsub.f32 1.0, %v2585
      %v2587 = vmul.f32 %v2584, %v2586
      %v2588 = vadd.f32 %v2584, %v2587
      %vm2589 = vweird.f32 %v2161
      %vm2590 = vweird.f32 %v2584
      %vm2591 = vmor %vm2589, %vm2590
      %v2592 = vsel %vm2591, %v2584, %v2588
      %v2593 = vand.u32 2147483647, %v2161
      %vm2594 = vcmp.eq.f32.partialorder %v2593, 8.507059e+37
      %v2595 = vand.u32 %v2161, 2147483648
      %v2596 = vor.u32 1.1754944e-38, %v2595
      %v2597 = vsel %vm2594, %v2596, %v2592
      %v2598 = vrcp.pop %v2163
      %v2599 = vmul.f32 %v2163, %v2598
      %v2600 = vsub.f32 1.0, %v2599
      %v2601 = vmul.f32 %v2598, %v2600
      %v2602 = vadd.f32 %v2598, %v2601
      %vm2603 = vweird.f32 %v2163
      %vm2604 = vweird.f32 %v2598
      %vm2605 = vmor %vm2603, %vm2604
      %v2606 = vsel %vm2605, %v2598, %v2602
      %v2607 = vand.u32 2147483647, %v2163
      %vm2608 = vcmp.eq.f32.partialorder %v2607, 8.507059e+37
      %v2609 = vand.u32 %v2163, 2147483648
      %v2610 = vor.u32 1.1754944e-38, %v2609
      %v2611 = vsel %vm2608, %v2610, %v2606
      %v2612 = vrcp.pop %v2165
      %v2613 = vmul.f32 %v2165, %v2612
      %v2614 = vsub.f32 1.0, %v2613
      %v2615 = vmul.f32 %v2612, %v2614
      %v2616 = vadd.f32 %v2612, %v2615
      %vm2617 = vweird.f32 %v2165
      %vm2618 = vweird.f32 %v2612
      %vm2619 = vmor %vm2617, %vm2618
      %v2620 = vsel %vm2619, %v2612, %v2616
      %v2621 = vand.u32 2147483647, %v2165
      %vm2622 = vcmp.eq.f32.partialorder %v2621, 8.507059e+37
      %v2623 = vand.u32 %v2165, 2147483648
      %v2624 = vor.u32 1.1754944e-38, %v2623
      %v2625 = vsel %vm2622, %v2624, %v2620
      %v2626 = vrcp.pop %v2167
      %v2627 = vmul.f32 %v2167, %v2626
      %v2628 = vsub.f32 1.0, %v2627
      %v2629 = vmul.f32 %v2626, %v2628
      %v2630 = vadd.f32 %v2626, %v2629
      %vm2631 = vweird.f32 %v2167
      %vm2632 = vweird.f32 %v2626
      %vm2633 = vmor %vm2631, %vm2632
      %v2634 = vsel %vm2633, %v2626, %v2630
      %v2635 = vand.u32 2147483647, %v2167
      %vm2636 = vcmp.eq.f32.partialorder %v2635, 8.507059e+37
      %v2637 = vand.u32 %v2167, 2147483648
      %v2638 = vor.u32 1.1754944e-38, %v2637
      %v2639 = vsel %vm2636, %v2638, %v2634
      %v2640 = vrcp.pop %v2169
      %v2641 = vmul.f32 %v2169, %v2640
      %v2642 = vsub.f32 1.0, %v2641
      %v2643 = vmul.f32 %v2640, %v2642
      %v2644 = vadd.f32 %v2640, %v2643
      %vm2645 = vweird.f32 %v2169
      %vm2646 = vweird.f32 %v2640
      %vm2647 = vmor %vm2645, %vm2646
      %v2648 = vsel %vm2647, %v2640, %v2644
      %v2649 = vand.u32 2147483647, %v2169
      %vm2650 = vcmp.eq.f32.partialorder %v2649, 8.507059e+37
      %v2651 = vand.u32 %v2169, 2147483648
      %v2652 = vor.u32 1.1754944e-38, %v2651
      %v2653 = vsel %vm2650, %v2652, %v2648
      %v2654 = vrcp.pop %v2171
      %v2655 = vmul.f32 %v2171, %v2654
      %v2656 = vsub.f32 1.0, %v2655
      %v2657 = vmul.f32 %v2654, %v2656
      %v2658 = vadd.f32 %v2654, %v2657
      %vm2659 = vweird.f32 %v2171
      %vm2660 = vweird.f32 %v2654
      %vm2661 = vmor %vm2659, %vm2660
      %v2662 = vsel %vm2661, %v2654, %v2658
      %v2663 = vand.u32 2147483647, %v2171
      %vm2664 = vcmp.eq.f32.partialorder %v2663, 8.507059e+37
      %v2665 = vand.u32 %v2171, 2147483648
      %v2666 = vor.u32 1.1754944e-38, %v2665
      %v2667 = vsel %vm2664, %v2666, %v2662
      %v2668 = vrcp.pop %v2173
      %v2669 = vmul.f32 %v2173, %v2668
      %v2670 = vsub.f32 1.0, %v2669
      %v2671 = vmul.f32 %v2668, %v2670
      %v2672 = vadd.f32 %v2668, %v2671
      %vm2673 = vweird.f32 %v2173
      %vm2674 = vweird.f32 %v2668
      %vm2675 = vmor %vm2673, %vm2674
      %v2676 = vsel %vm2675, %v2668, %v2672
      %v2677 = vand.u32 2147483647, %v2173
      %vm2678 = vcmp.eq.f32.partialorder %v2677, 8.507059e+37
      %v2679 = vand.u32 %v2173, 2147483648
      %v2680 = vor.u32 1.1754944e-38, %v2679
      %v2681 = vsel %vm2678, %v2680, %v2676
      %v2682 = vrcp.pop %v2175
      %v2683 = vmul.f32 %v2175, %v2682
      %v2684 = vsub.f32 1.0, %v2683
      %v2685 = vmul.f32 %v2682, %v2684
      %v2686 = vadd.f32 %v2682, %v2685
      %vm2687 = vweird.f32 %v2175
      %vm2688 = vweird.f32 %v2682
      %vm2689 = vmor %vm2687, %vm2688
      %v2690 = vsel %vm2689, %v2682, %v2686
      %v2691 = vand.u32 2147483647, %v2175
      %vm2692 = vcmp.eq.f32.partialorder %v2691, 8.507059e+37
      %v2693 = vand.u32 %v2175, 2147483648
      %v2694 = vor.u32 1.1754944e-38, %v2693
      %v2695 = vsel %vm2692, %v2694, %v2690
      %v2696 = vrcp.pop %v2177
      %v2697 = vmul.f32 %v2177, %v2696
      %v2698 = vsub.f32 1.0, %v2697
      %v2699 = vmul.f32 %v2696, %v2698
      %v2700 = vadd.f32 %v2696, %v2699
      %vm2701 = vweird.f32 %v2177
      %vm2702 = vweird.f32 %v2696
      %vm2703 = vmor %vm2701, %vm2702
      %v2704 = vsel %vm2703, %v2696, %v2700
      %v2705 = vand.u32 2147483647, %v2177
      %vm2706 = vcmp.eq.f32.partialorder %v2705, 8.507059e+37
      %v2707 = vand.u32 %v2177, 2147483648
      %v2708 = vor.u32 1.1754944e-38, %v2707
      %v2709 = vsel %vm2706, %v2708, %v2704
      %v2710 = vrcp.pop %v2179
      %v2711 = vmul.f32 %v2179, %v2710
      %v2712 = vsub.f32 1.0, %v2711
      %v2713 = vmul.f32 %v2710, %v2712
      %v2714 = vadd.f32 %v2710, %v2713
      %vm2715 = vweird.f32 %v2179
      %vm2716 = vweird.f32 %v2710
      %vm2717 = vmor %vm2715, %vm2716
      %v2718 = vsel %vm2717, %v2710, %v2714
      %v2719 = vand.u32 2147483647, %v2179
      %vm2720 = vcmp.eq.f32.partialorder %v2719, 8.507059e+37
      %v2721 = vand.u32 %v2179, 2147483648
      %v2722 = vor.u32 1.1754944e-38, %v2721
      %v2723 = vsel %vm2720, %v2722, %v2718
      %v2724 = vrcp.pop %v2181
      %v2725 = vmul.f32 %v2181, %v2724
      %v2726 = vsub.f32 1.0, %v2725
      %v2727 = vmul.f32 %v2724, %v2726
      %v2728 = vadd.f32 %v2724, %v2727
      %vm2729 = vweird.f32 %v2181
      %vm2730 = vweird.f32 %v2724
      %vm2731 = vmor %vm2729, %vm2730
      %v2732 = vsel %vm2731, %v2724, %v2728
      %v2733 = vand.u32 2147483647, %v2181
      %vm2734 = vcmp.eq.f32.partialorder %v2733, 8.507059e+37
      %v2735 = vand.u32 %v2181, 2147483648
      %v2736 = vor.u32 1.1754944e-38, %v2735
      %v2737 = vsel %vm2734, %v2736, %v2732
      %v2738 = vrcp.pop %v2183
      %v2739 = vmul.f32 %v2183, %v2738
      %v2740 = vsub.f32 1.0, %v2739
      %v2741 = vmul.f32 %v2738, %v2740
      %v2742 = vadd.f32 %v2738, %v2741
      %vm2743 = vweird.f32 %v2183
      %vm2744 = vweird.f32 %v2738
      %vm2745 = vmor %vm2743, %vm2744
      %v2746 = vsel %vm2745, %v2738, %v2742
      %v2747 = vand.u32 2147483647, %v2183
      %vm2748 = vcmp.eq.f32.partialorder %v2747, 8.507059e+37
      %v2749 = vand.u32 %v2183, 2147483648
      %v2750 = vor.u32 1.1754944e-38, %v2749
      %v2751 = vsel %vm2748, %v2750, %v2746
      %v2752 = vrcp.pop %v2185
      %v2753 = vmul.f32 %v2185, %v2752
      %v2754 = vsub.f32 1.0, %v2753
      %v2755 = vmul.f32 %v2752, %v2754
      %v2756 = vadd.f32 %v2752, %v2755
      %vm2757 = vweird.f32 %v2185
      %vm2758 = vweird.f32 %v2752
      %vm2759 = vmor %vm2757, %vm2758
      %v2760 = vsel %vm2759, %v2752, %v2756
      %v2761 = vand.u32 2147483647, %v2185
      %vm2762 = vcmp.eq.f32.partialorder %v2761, 8.507059e+37
      %v2763 = vand.u32 %v2185, 2147483648
      %v2764 = vor.u32 1.1754944e-38, %v2763
      %v2765 = vsel %vm2762, %v2764, %v2760
      %v2766 = vrcp.pop %v2187
      %v2767 = vmul.f32 %v2187, %v2766
      %v2768 = vsub.f32 1.0, %v2767
      %v2769 = vmul.f32 %v2766, %v2768
      %v2770 = vadd.f32 %v2766, %v2769
      %vm2771 = vweird.f32 %v2187
      %vm2772 = vweird.f32 %v2766
      %vm2773 = vmor %vm2771, %vm2772
      %v2774 = vsel %vm2773, %v2766, %v2770
      %v2775 = vand.u32 2147483647, %v2187
      %vm2776 = vcmp.eq.f32.partialorder %v2775, 8.507059e+37
      %v2777 = vand.u32 %v2187, 2147483648
      %v2778 = vor.u32 1.1754944e-38, %v2777
      %v2779 = vsel %vm2776, %v2778, %v2774
      %v2780 = vrcp.pop %v2189
      %v2781 = vmul.f32 %v2189, %v2780
      %v2782 = vsub.f32 1.0, %v2781
      %v2783 = vmul.f32 %v2780, %v2782
      %v2784 = vadd.f32 %v2780, %v2783
      %vm2785 = vweird.f32 %v2189
      %vm2786 = vweird.f32 %v2780
      %vm2787 = vmor %vm2785, %vm2786
      %v2788 = vsel %vm2787, %v2780, %v2784
      %v2789 = vand.u32 2147483647, %v2189
      %vm2790 = vcmp.eq.f32.partialorder %v2789, 8.507059e+37
      %v2791 = vand.u32 %v2189, 2147483648
      %v2792 = vor.u32 1.1754944e-38, %v2791
      %v2793 = vsel %vm2790, %v2792, %v2788
      %v2794 = vrcp.pop %v2191
      %v2795 = vmul.f32 %v2191, %v2794
      %v2796 = vsub.f32 1.0, %v2795
      %v2797 = vmul.f32 %v2794, %v2796
      %v2798 = vadd.f32 %v2794, %v2797
      %vm2799 = vweird.f32 %v2191
      %vm2800 = vweird.f32 %v2794
      %vm2801 = vmor %vm2799, %vm2800
      %v2802 = vsel %vm2801, %v2794, %v2798
      %v2803 = vand.u32 2147483647, %v2191
      %vm2804 = vcmp.eq.f32.partialorder %v2803, 8.507059e+37
      %v2805 = vand.u32 %v2191, 2147483648
      %v2806 = vor.u32 1.1754944e-38, %v2805
      %v2807 = vsel %vm2804, %v2806, %v2802
      %v2808 = vrcp.pop %v2193
      %v2809 = vmul.f32 %v2193, %v2808
      %v2810 = vsub.f32 1.0, %v2809
      %v2811 = vmul.f32 %v2808, %v2810
      %v2812 = vadd.f32 %v2808, %v2811
      %vm2813 = vweird.f32 %v2193
      %vm2814 = vweird.f32 %v2808
      %vm2815 = vmor %vm2813, %vm2814
      %v2816 = vsel %vm2815, %v2808, %v2812
      %v2817 = vand.u32 2147483647, %v2193
      %vm2818 = vcmp.eq.f32.partialorder %v2817, 8.507059e+37
      %v2819 = vand.u32 %v2193, 2147483648
      %v2820 = vor.u32 1.1754944e-38, %v2819
      %v2821 = vsel %vm2818, %v2820, %v2816
      %v2822 = vrcp.pop %v2195
      %v2823 = vmul.f32 %v2195, %v2822
      %v2824 = vsub.f32 1.0, %v2823
      %v2825 = vmul.f32 %v2822, %v2824
      %v2826 = vadd.f32 %v2822, %v2825
      %vm2827 = vweird.f32 %v2195
      %vm2828 = vweird.f32 %v2822
      %vm2829 = vmor %vm2827, %vm2828
      %v2830 = vsel %vm2829, %v2822, %v2826
      %v2831 = vand.u32 2147483647, %v2195
      %vm2832 = vcmp.eq.f32.partialorder %v2831, 8.507059e+37
      %v2833 = vand.u32 %v2195, 2147483648
      %v2834 = vor.u32 1.1754944e-38, %v2833
      %v2835 = vsel %vm2832, %v2834, %v2830
      %v2836 = vrcp.pop %v2197
      %v2837 = vmul.f32 %v2197, %v2836
      %v2838 = vsub.f32 1.0, %v2837
      %v2839 = vmul.f32 %v2836, %v2838
      %v2840 = vadd.f32 %v2836, %v2839
      %vm2841 = vweird.f32 %v2197
      %vm2842 = vweird.f32 %v2836
      %vm2843 = vmor %vm2841, %vm2842
      %v2844 = vsel %vm2843, %v2836, %v2840
      %v2845 = vand.u32 2147483647, %v2197
      %vm2846 = vcmp.eq.f32.partialorder %v2845, 8.507059e+37
      %v2847 = vand.u32 %v2197, 2147483648
      %v2848 = vor.u32 1.1754944e-38, %v2847
      %v2849 = vsel %vm2846, %v2848, %v2844
      %v2850 = vrcp.pop %v2199
      %v2851 = vmul.f32 %v2199, %v2850
      %v2852 = vsub.f32 1.0, %v2851
      %v2853 = vmul.f32 %v2850, %v2852
      %v2854 = vadd.f32 %v2850, %v2853
      %vm2855 = vweird.f32 %v2199
      %vm2856 = vweird.f32 %v2850
      %vm2857 = vmor %vm2855, %vm2856
      %v2858 = vsel %vm2857, %v2850, %v2854
      %v2859 = vand.u32 2147483647, %v2199
      %vm2860 = vcmp.eq.f32.partialorder %v2859, 8.507059e+37
      %v2861 = vand.u32 %v2199, 2147483648
      %v2862 = vor.u32 1.1754944e-38, %v2861
      %v2863 = vsel %vm2860, %v2862, %v2858
      %v2864 = vrcp.pop %v2201
      %v2865 = vmul.f32 %v2201, %v2864
      %v2866 = vsub.f32 1.0, %v2865
      %v2867 = vmul.f32 %v2864, %v2866
      %v2868 = vadd.f32 %v2864, %v2867
      %vm2869 = vweird.f32 %v2201
      %vm2870 = vweird.f32 %v2864
      %vm2871 = vmor %vm2869, %vm2870
      %v2872 = vsel %vm2871, %v2864, %v2868
      %v2873 = vand.u32 2147483647, %v2201
      %vm2874 = vcmp.eq.f32.partialorder %v2873, 8.507059e+37
      %v2875 = vand.u32 %v2201, 2147483648
      %v2876 = vor.u32 1.1754944e-38, %v2875
      %v2877 = vsel %vm2874, %v2876, %v2872
      %v2878 = vrcp.pop %v2203
      %v2879 = vmul.f32 %v2203, %v2878
      %v2880 = vsub.f32 1.0, %v2879
      %v2881 = vmul.f32 %v2878, %v2880
      %v2882 = vadd.f32 %v2878, %v2881
      %vm2883 = vweird.f32 %v2203
      %vm2884 = vweird.f32 %v2878
      %vm2885 = vmor %vm2883, %vm2884
      %v2886 = vsel %vm2885, %v2878, %v2882
      %v2887 = vand.u32 2147483647, %v2203
      %vm2888 = vcmp.eq.f32.partialorder %v2887, 8.507059e+37
      %v2889 = vand.u32 %v2203, 2147483648
      %v2890 = vor.u32 1.1754944e-38, %v2889
      %v2891 = vsel %vm2888, %v2890, %v2886
      %v2892 = vrcp.pop %v2205
      %v2893 = vmul.f32 %v2205, %v2892
      %v2894 = vsub.f32 1.0, %v2893
      %v2895 = vmul.f32 %v2892, %v2894
      %v2896 = vadd.f32 %v2892, %v2895
      %vm2897 = vweird.f32 %v2205
      %vm2898 = vweird.f32 %v2892
      %vm2899 = vmor %vm2897, %vm2898
      %v2900 = vsel %vm2899, %v2892, %v2896
      %v2901 = vand.u32 2147483647, %v2205
      %vm2902 = vcmp.eq.f32.partialorder %v2901, 8.507059e+37
      %v2903 = vand.u32 %v2205, 2147483648
      %v2904 = vor.u32 1.1754944e-38, %v2903
      %v2905 = vsel %vm2902, %v2904, %v2900
      %v2906 = vrcp.pop %v2207
      %v2907 = vmul.f32 %v2207, %v2906
      %v2908 = vsub.f32 1.0, %v2907
      %v2909 = vmul.f32 %v2906, %v2908
      %v2910 = vadd.f32 %v2906, %v2909
      %vm2911 = vweird.f32 %v2207
      %vm2912 = vweird.f32 %v2906
      %vm2913 = vmor %vm2911, %vm2912
      %v2914 = vsel %vm2913, %v2906, %v2910
      %v2915 = vand.u32 2147483647, %v2207
      %vm2916 = vcmp.eq.f32.partialorder %v2915, 8.507059e+37
      %v2917 = vand.u32 %v2207, 2147483648
      %v2918 = vor.u32 1.1754944e-38, %v2917
      %v2919 = vsel %vm2916, %v2918, %v2914
      %v2920 = vrcp.pop %v2209
      %v2921 = vmul.f32 %v2209, %v2920
      %v2922 = vsub.f32 1.0, %v2921
      %v2923 = vmul.f32 %v2920, %v2922
      %v2924 = vadd.f32 %v2920, %v2923
      %vm2925 = vweird.f32 %v2209
      %vm2926 = vweird.f32 %v2920
      %vm2927 = vmor %vm2925, %vm2926
      %v2928 = vsel %vm2927, %v2920, %v2924
      %v2929 = vand.u32 2147483647, %v2209
      %vm2930 = vcmp.eq.f32.partialorder %v2929, 8.507059e+37
      %v2931 = vand.u32 %v2209, 2147483648
      %v2932 = vor.u32 1.1754944e-38, %v2931
      %v2933 = vsel %vm2930, %v2932, %v2928
      %v2934 = vrcp.pop %v2211
      %v2935 = vmul.f32 %v2211, %v2934
      %v2936 = vsub.f32 1.0, %v2935
      %v2937 = vmul.f32 %v2934, %v2936
      %v2938 = vadd.f32 %v2934, %v2937
      %vm2939 = vweird.f32 %v2211
      %vm2940 = vweird.f32 %v2934
      %vm2941 = vmor %vm2939, %vm2940
      %v2942 = vsel %vm2941, %v2934, %v2938
      %v2943 = vand.u32 2147483647, %v2211
      %vm2944 = vcmp.eq.f32.partialorder %v2943, 8.507059e+37
      %v2945 = vand.u32 %v2211, 2147483648
      %v2946 = vor.u32 1.1754944e-38, %v2945
      %v2947 = vsel %vm2944, %v2946, %v2942
      %v2948 = vrcp.pop %v2213
      %v2949 = vmul.f32 %v2213, %v2948
      %v2950 = vsub.f32 1.0, %v2949
      %v2951 = vmul.f32 %v2948, %v2950
      %v2952 = vadd.f32 %v2948, %v2951
      %vm2953 = vweird.f32 %v2213
      %vm2954 = vweird.f32 %v2948
      %vm2955 = vmor %vm2953, %vm2954
      %v2956 = vsel %vm2955, %v2948, %v2952
      %v2957 = vand.u32 2147483647, %v2213
      %vm2958 = vcmp.eq.f32.partialorder %v2957, 8.507059e+37
      %v2959 = vand.u32 %v2213, 2147483648
      %v2960 = vor.u32 1.1754944e-38, %v2959
      %v2961 = vsel %vm2958, %v2960, %v2956
      %v2962 = vrcp.pop %v2215
      %v2963 = vmul.f32 %v2215, %v2962
      %v2964 = vsub.f32 1.0, %v2963
      %v2965 = vmul.f32 %v2962, %v2964
      %v2966 = vadd.f32 %v2962, %v2965
      %vm2967 = vweird.f32 %v2215
      %vm2968 = vweird.f32 %v2962
      %vm2969 = vmor %vm2967, %vm2968
      %v2970 = vsel %vm2969, %v2962, %v2966
      %v2971 = vand.u32 2147483647, %v2215
      %vm2972 = vcmp.eq.f32.partialorder %v2971, 8.507059e+37
      %v2973 = vand.u32 %v2215, 2147483648
      %v2974 = vor.u32 1.1754944e-38, %v2973
      %v2975 = vsel %vm2972, %v2974, %v2970
      %v2976 = vrcp.pop %v2217
      %v2977 = vmul.f32 %v2217, %v2976
      %v2978 = vsub.f32 1.0, %v2977
      %v2979 = vmul.f32 %v2976, %v2978
      %v2980 = vadd.f32 %v2976, %v2979
      %vm2981 = vweird.f32 %v2217
      %vm2982 = vweird.f32 %v2976
      %vm2983 = vmor %vm2981, %vm2982
      %v2984 = vsel %vm2983, %v2976, %v2980
      %v2985 = vand.u32 2147483647, %v2217
      %vm2986 = vcmp.eq.f32.partialorder %v2985, 8.507059e+37
      %v2987 = vand.u32 %v2217, 2147483648
      %v2988 = vor.u32 1.1754944e-38, %v2987
      %v2989 = vsel %vm2986, %v2988, %v2984
      %v2990 = vrcp.pop %v2219
      %v2991 = vmul.f32 %v2219, %v2990
      %v2992 = vsub.f32 1.0, %v2991
      %v2993 = vmul.f32 %v2990, %v2992
      %v2994 = vadd.f32 %v2990, %v2993
      %vm2995 = vweird.f32 %v2219
      %vm2996 = vweird.f32 %v2990
      %vm2997 = vmor %vm2995, %vm2996
      %v2998 = vsel %vm2997, %v2990, %v2994
      %v2999 = vand.u32 2147483647, %v2219
      %vm3000 = vcmp.eq.f32.partialorder %v2999, 8.507059e+37
      %v3001 = vand.u32 %v2219, 2147483648
      %v3002 = vor.u32 1.1754944e-38, %v3001
      %v3003 = vsel %vm3000, %v3002, %v2998
      %v3004 = vrcp.pop %v2221
      %v3005 = vmul.f32 %v2221, %v3004
      %v3006 = vsub.f32 1.0, %v3005
      %v3007 = vmul.f32 %v3004, %v3006
      %v3008 = vadd.f32 %v3004, %v3007
      %vm3009 = vweird.f32 %v2221
      %vm3010 = vweird.f32 %v3004
      %vm3011 = vmor %vm3009, %vm3010
      %v3012 = vsel %vm3011, %v3004, %v3008
      %v3013 = vand.u32 2147483647, %v2221
      %vm3014 = vcmp.eq.f32.partialorder %v3013, 8.507059e+37
      %v3015 = vand.u32 %v2221, 2147483648
      %v3016 = vor.u32 1.1754944e-38, %v3015
      %v3017 = vsel %vm3014, %v3016, %v3012
      %v3018 = vrcp.pop %v2223
      %v3019 = vmul.f32 %v2223, %v3018
      %v3020 = vsub.f32 1.0, %v3019
      %v3021 = vmul.f32 %v3018, %v3020
      %v3022 = vadd.f32 %v3018, %v3021
      %vm3023 = vweird.f32 %v2223
      %vm3024 = vweird.f32 %v3018
      %vm3025 = vmor %vm3023, %vm3024
      %v3026 = vsel %vm3025, %v3018, %v3022
      %v3027 = vand.u32 2147483647, %v2223
      %vm3028 = vcmp.eq.f32.partialorder %v3027, 8.507059e+37
      %v3029 = vand.u32 %v2223, 2147483648
      %v3030 = vor.u32 1.1754944e-38, %v3029
      %v3031 = vsel %vm3028, %v3030, %v3026
      %v3032 = vrcp.pop %v2225
      %v3033 = vmul.f32 %v2225, %v3032
      %v3034 = vsub.f32 1.0, %v3033
      %v3035 = vmul.f32 %v3032, %v3034
      %v3036 = vadd.f32 %v3032, %v3035
      %vm3037 = vweird.f32 %v2225
      %vm3038 = vweird.f32 %v3032
      %vm3039 = vmor %vm3037, %vm3038
      %v3040 = vsel %vm3039, %v3032, %v3036
      %v3041 = vand.u32 2147483647, %v2225
      %vm3042 = vcmp.eq.f32.partialorder %v3041, 8.507059e+37
      %v3043 = vand.u32 %v2225, 2147483648
      %v3044 = vor.u32 1.1754944e-38, %v3043
      %v3045 = vsel %vm3042, %v3044, %v3040
      %v3046 = vrcp.pop %v2227
      %v3047 = vmul.f32 %v2227, %v3046
      %v3048 = vsub.f32 1.0, %v3047
      %v3049 = vmul.f32 %v3046, %v3048
      %v3050 = vadd.f32 %v3046, %v3049
      %vm3051 = vweird.f32 %v2227
      %vm3052 = vweird.f32 %v3046
      %vm3053 = vmor %vm3051, %vm3052
      %v3054 = vsel %vm3053, %v3046, %v3050
      %v3055 = vand.u32 2147483647, %v2227
      %vm3056 = vcmp.eq.f32.partialorder %v3055, 8.507059e+37
      %v3057 = vand.u32 %v2227, 2147483648
      %v3058 = vor.u32 1.1754944e-38, %v3057
      %v3059 = vsel %vm3056, %v3058, %v3054
      %v3060 = vrcp.pop %v2229
      %v3061 = vmul.f32 %v2229, %v3060
      %v3062 = vsub.f32 1.0, %v3061
      %v3063 = vmul.f32 %v3060, %v3062
      %v3064 = vadd.f32 %v3060, %v3063
      %vm3065 = vweird.f32 %v2229
      %vm3066 = vweird.f32 %v3060
      %vm3067 = vmor %vm3065, %vm3066
      %v3068 = vsel %vm3067, %v3060, %v3064
      %v3069 = vand.u32 2147483647, %v2229
      %vm3070 = vcmp.eq.f32.partialorder %v3069, 8.507059e+37
      %v3071 = vand.u32 %v2229, 2147483648
      %v3072 = vor.u32 1.1754944e-38, %v3071
      %v3073 = vsel %vm3070, %v3072, %v3068
      %v3074 = vrcp.pop %v2231
      %v3075 = vmul.f32 %v2231, %v3074
      %v3076 = vsub.f32 1.0, %v3075
      %v3077 = vmul.f32 %v3074, %v3076
      %v3078 = vadd.f32 %v3074, %v3077
      %vm3079 = vweird.f32 %v2231
      %vm3080 = vweird.f32 %v3074
      %vm3081 = vmor %vm3079, %vm3080
      %v3082 = vsel %vm3081, %v3074, %v3078
      %v3083 = vand.u32 2147483647, %v2231
      %vm3084 = vcmp.eq.f32.partialorder %v3083, 8.507059e+37
      %v3085 = vand.u32 %v2231, 2147483648
      %v3086 = vor.u32 1.1754944e-38, %v3085
      %v3087 = vsel %vm3084, %v3086, %v3082
      %v3088 = vrcp.pop %v2233
      %v3089 = vmul.f32 %v2233, %v3088
      %v3090 = vsub.f32 1.0, %v3089
      %v3091 = vmul.f32 %v3088, %v3090
      %v3092 = vadd.f32 %v3088, %v3091
      %vm3093 = vweird.f32 %v2233
      %vm3094 = vweird.f32 %v3088
      %vm3095 = vmor %vm3093, %vm3094
      %v3096 = vsel %vm3095, %v3088, %v3092
      %v3097 = vand.u32 2147483647, %v2233
      %vm3098 = vcmp.eq.f32.partialorder %v3097, 8.507059e+37
      %v3099 = vand.u32 %v2233, 2147483648
      %v3100 = vor.u32 1.1754944e-38, %v3099
      %v3101 = vsel %vm3098, %v3100, %v3096
      %v3102 = vrcp.pop %v2235
      %v3103 = vmul.f32 %v2235, %v3102
      %v3104 = vsub.f32 1.0, %v3103
      %v3105 = vmul.f32 %v3102, %v3104
      %v3106 = vadd.f32 %v3102, %v3105
      %vm3107 = vweird.f32 %v2235
      %vm3108 = vweird.f32 %v3102
      %vm3109 = vmor %vm3107, %vm3108
      %v3110 = vsel %vm3109, %v3102, %v3106
      %v3111 = vand.u32 2147483647, %v2235
      %vm3112 = vcmp.eq.f32.partialorder %v3111, 8.507059e+37
      %v3113 = vand.u32 %v2235, 2147483648
      %v3114 = vor.u32 1.1754944e-38, %v3113
      %v3115 = vsel %vm3112, %v3114, %v3110
      %v3116 = vrcp.pop %v2237
      %v3117 = vmul.f32 %v2237, %v3116
      %v3118 = vsub.f32 1.0, %v3117
      %v3119 = vmul.f32 %v3116, %v3118
      %v3120 = vadd.f32 %v3116, %v3119
      %vm3121 = vweird.f32 %v2237
      %vm3122 = vweird.f32 %v3116
      %vm3123 = vmor %vm3121, %vm3122
      %v3124 = vsel %vm3123, %v3116, %v3120
      %v3125 = vand.u32 2147483647, %v2237
      %vm3126 = vcmp.eq.f32.partialorder %v3125, 8.507059e+37
      %v3127 = vand.u32 %v2237, 2147483648
      %v3128 = vor.u32 1.1754944e-38, %v3127
      %v3129 = vsel %vm3126, %v3128, %v3124
      %v3130 = vrcp.pop %v2239
      %v3131 = vmul.f32 %v2239, %v3130
      %v3132 = vsub.f32 1.0, %v3131
      %v3133 = vmul.f32 %v3130, %v3132
      %v3134 = vadd.f32 %v3130, %v3133
      %vm3135 = vweird.f32 %v2239
      %vm3136 = vweird.f32 %v3130
      %vm3137 = vmor %vm3135, %vm3136
      %v3138 = vsel %vm3137, %v3130, %v3134
      %v3139 = vand.u32 2147483647, %v2239
      %vm3140 = vcmp.eq.f32.partialorder %v3139, 8.507059e+37
      %v3141 = vand.u32 %v2239, 2147483648
      %v3142 = vor.u32 1.1754944e-38, %v3141
      %v3143 = vsel %vm3140, %v3142, %v3138
      %v3144 = vrcp.pop %v2241
      %v3145 = vmul.f32 %v2241, %v3144
      %v3146 = vsub.f32 1.0, %v3145
      %v3147 = vmul.f32 %v3144, %v3146
      %v3148 = vadd.f32 %v3144, %v3147
      %vm3149 = vweird.f32 %v2241
      %vm3150 = vweird.f32 %v3144
      %vm3151 = vmor %vm3149, %vm3150
      %v3152 = vsel %vm3151, %v3144, %v3148
      %v3153 = vand.u32 2147483647, %v2241
      %vm3154 = vcmp.eq.f32.partialorder %v3153, 8.507059e+37
      %v3155 = vand.u32 %v2241, 2147483648
      %v3156 = vor.u32 1.1754944e-38, %v3155
      %v3157 = vsel %vm3154, %v3156, %v3152
      %v3158 = vrcp.pop %v2243
      %v3159 = vmul.f32 %v2243, %v3158
      %v3160 = vsub.f32 1.0, %v3159
      %v3161 = vmul.f32 %v3158, %v3160
      %v3162 = vadd.f32 %v3158, %v3161
      %vm3163 = vweird.f32 %v2243
      %vm3164 = vweird.f32 %v3158
      %vm3165 = vmor %vm3163, %vm3164
      %v3166 = vsel %vm3165, %v3158, %v3162
      %v3167 = vand.u32 2147483647, %v2243
      %vm3168 = vcmp.eq.f32.partialorder %v3167, 8.507059e+37
      %v3169 = vand.u32 %v2243, 2147483648
      %v3170 = vor.u32 1.1754944e-38, %v3169
      %v3171 = vsel %vm3168, %v3170, %v3166
      %v3172 = vrcp.pop %v2245
      %v3173 = vmul.f32 %v2245, %v3172
      %v3174 = vsub.f32 1.0, %v3173
      %v3175 = vmul.f32 %v3172, %v3174
      %v3176 = vadd.f32 %v3172, %v3175
      %vm3177 = vweird.f32 %v2245
      %vm3178 = vweird.f32 %v3172
      %vm3179 = vmor %vm3177, %vm3178
      %v3180 = vsel %vm3179, %v3172, %v3176
      %v3181 = vand.u32 2147483647, %v2245
      %vm3182 = vcmp.eq.f32.partialorder %v3181, 8.507059e+37
      %v3183 = vand.u32 %v2245, 2147483648
      %v3184 = vor.u32 1.1754944e-38, %v3183
      %v3185 = vsel %vm3182, %v3184, %v3180
      %v3186 = vrcp.pop %v2247
      %v3187 = vmul.f32 %v2247, %v3186
      %v3188 = vsub.f32 1.0, %v3187
      %v3189 = vmul.f32 %v3186, %v3188
      %v3190 = vadd.f32 %v3186, %v3189
      %vm3191 = vweird.f32 %v2247
      %vm3192 = vweird.f32 %v3186
      %vm3193 = vmor %vm3191, %vm3192
      %v3194 = vsel %vm3193, %v3186, %v3190
      %v3195 = vand.u32 2147483647, %v2247
      %vm3196 = vcmp.eq.f32.partialorder %v3195, 8.507059e+37
      %v3197 = vand.u32 %v2247, 2147483648
      %v3198 = vor.u32 1.1754944e-38, %v3197
      %v3199 = vsel %vm3196, %v3198, %v3194
      %v3200 = vrcp.pop %v2249
      %v3201 = vmul.f32 %v2249, %v3200
      %v3202 = vsub.f32 1.0, %v3201
      %v3203 = vmul.f32 %v3200, %v3202
      %v3204 = vadd.f32 %v3200, %v3203
      %vm3205 = vweird.f32 %v2249
      %vm3206 = vweird.f32 %v3200
      %vm3207 = vmor %vm3205, %vm3206
      %v3208 = vsel %vm3207, %v3200, %v3204
      %v3209 = vand.u32 2147483647, %v2249
      %vm3210 = vcmp.eq.f32.partialorder %v3209, 8.507059e+37
      %v3211 = vand.u32 %v2249, 2147483648
      %v3212 = vor.u32 1.1754944e-38, %v3211
      %v3213 = vsel %vm3210, %v3212, %v3208
      %v3214 = vrcp.pop %v2251
      %v3215 = vmul.f32 %v2251, %v3214
      %v3216 = vsub.f32 1.0, %v3215
      %v3217 = vmul.f32 %v3214, %v3216
      %v3218 = vadd.f32 %v3214, %v3217
      %vm3219 = vweird.f32 %v2251
      %vm3220 = vweird.f32 %v3214
      %vm3221 = vmor %vm3219, %vm3220
      %v3222 = vsel %vm3221, %v3214, %v3218
      %v3223 = vand.u32 2147483647, %v2251
      %vm3224 = vcmp.eq.f32.partialorder %v3223, 8.507059e+37
      %v3225 = vand.u32 %v2251, 2147483648
      %v3226 = vor.u32 1.1754944e-38, %v3225
      %v3227 = vsel %vm3224, %v3226, %v3222
      %v3228 = vrcp.pop %v2253
      %v3229 = vmul.f32 %v2253, %v3228
      %v3230 = vsub.f32 1.0, %v3229
      %v3231 = vmul.f32 %v3228, %v3230
      %v3232 = vadd.f32 %v3228, %v3231
      %vm3233 = vweird.f32 %v2253
      %vm3234 = vweird.f32 %v3228
      %vm3235 = vmor %vm3233, %vm3234
      %v3236 = vsel %vm3235, %v3228, %v3232
      %v3237 = vand.u32 2147483647, %v2253
      %vm3238 = vcmp.eq.f32.partialorder %v3237, 8.507059e+37
      %v3239 = vand.u32 %v2253, 2147483648
      %v3240 = vor.u32 1.1754944e-38, %v3239
      %v3241 = vsel %vm3238, %v3240, %v3236
      %v3242 = vrcp.pop %v2255
      %v3243 = vmul.f32 %v2255, %v3242
      %v3244 = vsub.f32 1.0, %v3243
      %v3245 = vmul.f32 %v3242, %v3244
      %v3246 = vadd.f32 %v3242, %v3245
      %vm3247 = vweird.f32 %v2255
      %vm3248 = vweird.f32 %v3242
      %vm3249 = vmor %vm3247, %vm3248
      %v3250 = vsel %vm3249, %v3242, %v3246
      %v3251 = vand.u32 2147483647, %v2255
      %vm3252 = vcmp.eq.f32.partialorder %v3251, 8.507059e+37
      %v3253 = vand.u32 %v2255, 2147483648
      %v3254 = vor.u32 1.1754944e-38, %v3253
      %v3255 = vsel %vm3252, %v3254, %v3250
      %v3256 = vrcp.pop %v2257
      %v3257 = vmul.f32 %v2257, %v3256
      %v3258 = vsub.f32 1.0, %v3257
      %v3259 = vmul.f32 %v3256, %v3258
      %v3260 = vadd.f32 %v3256, %v3259
      %vm3261 = vweird.f32 %v2257
      %vm3262 = vweird.f32 %v3256
      %vm3263 = vmor %vm3261, %vm3262
      %v3264 = vsel %vm3263, %v3256, %v3260
      %v3265 = vand.u32 2147483647, %v2257
      %vm3266 = vcmp.eq.f32.partialorder %v3265, 8.507059e+37
      %v3267 = vand.u32 %v2257, 2147483648
      %v3268 = vor.u32 1.1754944e-38, %v3267
      %v3269 = vsel %vm3266, %v3268, %v3264
      %v3270 = vrcp.pop %v2259
      %v3271 = vmul.f32 %v2259, %v3270
      %v3272 = vsub.f32 1.0, %v3271
      %v3273 = vmul.f32 %v3270, %v3272
      %v3274 = vadd.f32 %v3270, %v3273
      %vm3275 = vweird.f32 %v2259
      %vm3276 = vweird.f32 %v3270
      %vm3277 = vmor %vm3275, %vm3276
      %v3278 = vsel %vm3277, %v3270, %v3274
      %v3279 = vand.u32 2147483647, %v2259
      %vm3280 = vcmp.eq.f32.partialorder %v3279, 8.507059e+37
      %v3281 = vand.u32 %v2259, 2147483648
      %v3282 = vor.u32 1.1754944e-38, %v3281
      %v3283 = vsel %vm3280, %v3282, %v3278
      %v3284 = vrcp.pop %v2261
      %v3285 = vmul.f32 %v2261, %v3284
      %v3286 = vsub.f32 1.0, %v3285
      %v3287 = vmul.f32 %v3284, %v3286
      %v3288 = vadd.f32 %v3284, %v3287
      %vm3289 = vweird.f32 %v2261
      %vm3290 = vweird.f32 %v3284
      %vm3291 = vmor %vm3289, %vm3290
      %v3292 = vsel %vm3291, %v3284, %v3288
      %v3293 = vand.u32 2147483647, %v2261
      %vm3294 = vcmp.eq.f32.partialorder %v3293, 8.507059e+37
      %v3295 = vand.u32 %v2261, 2147483648
      %v3296 = vor.u32 1.1754944e-38, %v3295
      %v3297 = vsel %vm3294, %v3296, %v3292
      %v3298 = vrcp.pop %v2263
      %v3299 = vmul.f32 %v2263, %v3298
      %v3300 = vsub.f32 1.0, %v3299
      %v3301 = vmul.f32 %v3298, %v3300
      %v3302 = vadd.f32 %v3298, %v3301
      %vm3303 = vweird.f32 %v2263
      %vm3304 = vweird.f32 %v3298
      %vm3305 = vmor %vm3303, %vm3304
      %v3306 = vsel %vm3305, %v3298, %v3302
      %v3307 = vand.u32 2147483647, %v2263
      %vm3308 = vcmp.eq.f32.partialorder %v3307, 8.507059e+37
      %v3309 = vand.u32 %v2263, 2147483648
      %v3310 = vor.u32 1.1754944e-38, %v3309
      %v3311 = vsel %vm3308, %v3310, %v3306
      %v3312 = vrcp.pop %v2265
      %v3313 = vmul.f32 %v2265, %v3312
      %v3314 = vsub.f32 1.0, %v3313
      %v3315 = vmul.f32 %v3312, %v3314
      %v3316 = vadd.f32 %v3312, %v3315
      %vm3317 = vweird.f32 %v2265
      %vm3318 = vweird.f32 %v3312
      %vm3319 = vmor %vm3317, %vm3318
      %v3320 = vsel %vm3319, %v3312, %v3316
      %v3321 = vand.u32 2147483647, %v2265
      %vm3322 = vcmp.eq.f32.partialorder %v3321, 8.507059e+37
      %v3323 = vand.u32 %v2265, 2147483648
      %v3324 = vor.u32 1.1754944e-38, %v3323
      %v3325 = vsel %vm3322, %v3324, %v3320
      %v3326 = vrcp.pop %v2267
      %v3327 = vmul.f32 %v2267, %v3326
      %v3328 = vsub.f32 1.0, %v3327
      %v3329 = vmul.f32 %v3326, %v3328
      %v3330 = vadd.f32 %v3326, %v3329
      %vm3331 = vweird.f32 %v2267
      %vm3332 = vweird.f32 %v3326
      %vm3333 = vmor %vm3331, %vm3332
      %v3334 = vsel %vm3333, %v3326, %v3330
      %v3335 = vand.u32 2147483647, %v2267
      %vm3336 = vcmp.eq.f32.partialorder %v3335, 8.507059e+37
      %v3337 = vand.u32 %v2267, 2147483648
      %v3338 = vor.u32 1.1754944e-38, %v3337
      %v3339 = vsel %vm3336, %v3338, %v3334
      %v3340 = vrcp.pop %v2269
      %v3341 = vmul.f32 %v2269, %v3340
      %v3342 = vsub.f32 1.0, %v3341
      %v3343 = vmul.f32 %v3340, %v3342
      %v3344 = vadd.f32 %v3340, %v3343
      %vm3345 = vweird.f32 %v2269
      %vm3346 = vweird.f32 %v3340
      %vm3347 = vmor %vm3345, %vm3346
      %v3348 = vsel %vm3347, %v3340, %v3344
      %v3349 = vand.u32 2147483647, %v2269
      %vm3350 = vcmp.eq.f32.partialorder %v3349, 8.507059e+37
      %v3351 = vand.u32 %v2269, 2147483648
      %v3352 = vor.u32 1.1754944e-38, %v3351
      %v3353 = vsel %vm3350, %v3352, %v3348
      %v3354 = vrcp.pop %v2271
      %v3355 = vmul.f32 %v2271, %v3354
      %v3356 = vsub.f32 1.0, %v3355
      %v3357 = vmul.f32 %v3354, %v3356
      %v3358 = vadd.f32 %v3354, %v3357
      %vm3359 = vweird.f32 %v2271
      %vm3360 = vweird.f32 %v3354
      %vm3361 = vmor %vm3359, %vm3360
      %v3362 = vsel %vm3361, %v3354, %v3358
      %v3363 = vand.u32 2147483647, %v2271
      %vm3364 = vcmp.eq.f32.partialorder %v3363, 8.507059e+37
      %v3365 = vand.u32 %v2271, 2147483648
      %v3366 = vor.u32 1.1754944e-38, %v3365
      %v3367 = vsel %vm3364, %v3366, %v3362
      %v3368 = vrcp.pop %v2273
      %v3369 = vmul.f32 %v2273, %v3368
      %v3370 = vsub.f32 1.0, %v3369
      %v3371 = vmul.f32 %v3368, %v3370
      %v3372 = vadd.f32 %v3368, %v3371
      %vm3373 = vweird.f32 %v2273
      %vm3374 = vweird.f32 %v3368
      %vm3375 = vmor %vm3373, %vm3374
      %v3376 = vsel %vm3375, %v3368, %v3372
      %v3377 = vand.u32 2147483647, %v2273
      %vm3378 = vcmp.eq.f32.partialorder %v3377, 8.507059e+37
      %v3379 = vand.u32 %v2273, 2147483648
      %v3380 = vor.u32 1.1754944e-38, %v3379
      %v3381 = vsel %vm3378, %v3380, %v3376
      %v3382 = vrcp.pop %v2275
      %v3383 = vmul.f32 %v2275, %v3382
      %v3384 = vsub.f32 1.0, %v3383
      %v3385 = vmul.f32 %v3382, %v3384
      %v3386 = vadd.f32 %v3382, %v3385
      %vm3387 = vweird.f32 %v2275
      %vm3388 = vweird.f32 %v3382
      %vm3389 = vmor %vm3387, %vm3388
      %v3390 = vsel %vm3389, %v3382, %v3386
      %v3391 = vand.u32 2147483647, %v2275
      %vm3392 = vcmp.eq.f32.partialorder %v3391, 8.507059e+37
      %v3393 = vand.u32 %v2275, 2147483648
      %v3394 = vor.u32 1.1754944e-38, %v3393
      %v3395 = vsel %vm3392, %v3394, %v3390
      %v3396 = vrcp.pop %v2277
      %v3397 = vmul.f32 %v2277, %v3396
      %v3398 = vsub.f32 1.0, %v3397
      %v3399 = vmul.f32 %v3396, %v3398
      %v3400 = vadd.f32 %v3396, %v3399
      %vm3401 = vweird.f32 %v2277
      %vm3402 = vweird.f32 %v3396
      %vm3403 = vmor %vm3401, %vm3402
      %v3404 = vsel %vm3403, %v3396, %v3400
      %v3405 = vand.u32 2147483647, %v2277
      %vm3406 = vcmp.eq.f32.partialorder %v3405, 8.507059e+37
      %v3407 = vand.u32 %v2277, 2147483648
      %v3408 = vor.u32 1.1754944e-38, %v3407
      %v3409 = vsel %vm3406, %v3408, %v3404
      %v3410 = vrcp.pop %v2279
      %v3411 = vmul.f32 %v2279, %v3410
      %v3412 = vsub.f32 1.0, %v3411
      %v3413 = vmul.f32 %v3410, %v3412
      %v3414 = vadd.f32 %v3410, %v3413
      %vm3415 = vweird.f32 %v2279
      %vm3416 = vweird.f32 %v3410
      %vm3417 = vmor %vm3415, %vm3416
      %v3418 = vsel %vm3417, %v3410, %v3414
      %v3419 = vand.u32 2147483647, %v2279
      %vm3420 = vcmp.eq.f32.partialorder %v3419, 8.507059e+37
      %v3421 = vand.u32 %v2279, 2147483648
      %v3422 = vor.u32 1.1754944e-38, %v3421
      %v3423 = vsel %vm3420, %v3422, %v3418
      %v3424 = vrcp.pop %v2281
      %v3425 = vmul.f32 %v2281, %v3424
      %v3426 = vsub.f32 1.0, %v3425
      %v3427 = vmul.f32 %v3424, %v3426
      %v3428 = vadd.f32 %v3424, %v3427
      %vm3429 = vweird.f32 %v2281
      %vm3430 = vweird.f32 %v3424
      %vm3431 = vmor %vm3429, %vm3430
      %v3432 = vsel %vm3431, %v3424, %v3428
      %v3433 = vand.u32 2147483647, %v2281
      %vm3434 = vcmp.eq.f32.partialorder %v3433, 8.507059e+37
      %v3435 = vand.u32 %v2281, 2147483648
      %v3436 = vor.u32 1.1754944e-38, %v3435
      %v3437 = vsel %vm3434, %v3436, %v3432
      %v3438 = vmul.f32 %v2300, %v2555
      %v3439 = vmul.f32 %v2303, %v2569
      %v3440 = vmul.f32 %v2306, %v2583
      %v3441 = vmul.f32 %v2309, %v2597
      %v3442 = vmul.f32 %v2312, %v2611
      %v3443 = vmul.f32 %v2315, %v2625
      %v3444 = vmul.f32 %v2318, %v2639
      %v3445 = vmul.f32 %v2321, %v2653
      %v3446 = vmul.f32 %v2324, %v2667
      %v3447 = vmul.f32 %v2327, %v2681
      %v3448 = vmul.f32 %v2330, %v2695
      %v3449 = vmul.f32 %v2333, %v2709
      %v3450 = vmul.f32 %v2336, %v2723
      %v3451 = vmul.f32 %v2339, %v2737
      %v3452 = vmul.f32 %v2342, %v2751
      %v3453 = vmul.f32 %v2345, %v2765
      %v3454 = vmul.f32 %v2365, %v2779
      %v3455 = vmul.f32 %v2368, %v2793
      %v3456 = vmul.f32 %v2371, %v2807
      %v3457 = vmul.f32 %v2374, %v2821
      %v3458 = vmul.f32 %v2377, %v2835
      %v3459 = vmul.f32 %v2380, %v2849
      %v3460 = vmul.f32 %v2383, %v2863
      %v3461 = vmul.f32 %v2386, %v2877
      %v3462 = vmul.f32 %v2389, %v2891
      %v3463 = vmul.f32 %v2392, %v2905
      %v3464 = vmul.f32 %v2395, %v2919
      %v3465 = vmul.f32 %v2398, %v2933
      %v3466 = vmul.f32 %v2401, %v2947
      %v3467 = vmul.f32 %v2404, %v2961
      %v3468 = vmul.f32 %v2407, %v2975
      %v3469 = vmul.f32 %v2410, %v2989
      %v3470 = vmul.f32 %v2430, %v3003
      %v3471 = vmul.f32 %v2433, %v3017
      %v3472 = vmul.f32 %v2436, %v3031
      %v3473 = vmul.f32 %v2439, %v3045
      %v3474 = vmul.f32 %v2442, %v3059
      %v3475 = vmul.f32 %v2445, %v3073
      %v3476 = vmul.f32 %v2448, %v3087
      %v3477 = vmul.f32 %v2451, %v3101
      %v3478 = vmul.f32 %v2454, %v3115
      %v3479 = vmul.f32 %v2457, %v3129
      %v3480 = vmul.f32 %v2460, %v3143
      %v3481 = vmul.f32 %v2463, %v3157
      %v3482 = vmul.f32 %v2466, %v3171
      %v3483 = vmul.f32 %v2469, %v3185
      %v3484 = vmul.f32 %v2472, %v3199
      %v3485 = vmul.f32 %v2475, %v3213
      %v3486 = vmul.f32 %v2495, %v3227
      %v3487 = vmul.f32 %v2498, %v3241
      %v3488 = vmul.f32 %v2501, %v3255
      %v3489 = vmul.f32 %v2504, %v3269
      %v3490 = vmul.f32 %v2507, %v3283
      %v3491 = vmul.f32 %v2510, %v3297
      %v3492 = vmul.f32 %v2513, %v3311
      %v3493 = vmul.f32 %v2516, %v3325
      %v3494 = vmul.f32 %v2519, %v3339
      %v3495 = vmul.f32 %v2522, %v3353
      %v3496 = vmul.f32 %v2525, %v3367
      %v3497 = vmul.f32 %v2528, %v3381
      %v3498 = vmul.f32 %v2531, %v3395
      %v3499 = vmul.f32 %v2534, %v3409
      %v3500 = vmul.f32 %v2537, %v3423
      %v3501 = vmul.f32 %v2540, %v3437
      %v3503 = vsel %vm1122, %v3438, 0
      %v3506 = vsel %vm1122, %v3439, 0
      %v3509 = vsel %vm1122, %v3440, 0
      %v3512 = vsel %vm1122, %v3441, 0
      %v3515 = vsel %vm1122, %v3442, 0
      %v3518 = vsel %vm1122, %v3443, 0
      %v3521 = vsel %vm1122, %v3444, 0
      %v3524 = vsel %vm1122, %v3445, 0
      %v3527 = vsel %vm1122, %v3446, 0
      %v3530 = vsel %vm1122, %v3447, 0
      %v3533 = vsel %vm1122, %v3448, 0
      %v3536 = vsel %vm1122, %v3449, 0
      %v3539 = vsel %vm1122, %v3450, 0
      %v3542 = vsel %vm1122, %v3451, 0
      %v3545 = vsel %vm1122, %v3452, 0
      %v3548 = vsel %vm1122, %v3453, 0
      %3550 = vmatpush.msra.mxu0 0.0
      %3551 = vmatpush.msra.mxu0 0.0
      %3552 = vmatpush.msra.mxu0 0.0
      %3553 = vmatpush.msra.mxu0 0.0
      %3554 = vmatpush.msra.mxu0 0.0
      %3555 = vmatpush.msra.mxu0 0.0
      %3556 = vmatpush.msra.mxu0 0.0
      %3557 = vmatpush.msra.mxu0 0.0
      %3558 = vmatpush.msra.mxu0 0.0
      %3559 = vmatpush.msra.mxu0 0.0
      %3560 = vmatpush.msra.mxu0 0.0
      %3561 = vmatpush.msra.mxu0 0.0
      %3562 = vmatpush.msra.mxu0 0.0
      %3563 = vmatpush.msra.mxu0 0.0
      %3564 = vmatpush.msra.mxu0 0.0
      %3565 = vmatpush.msra.mxu0 %v237
      %3566 = vmatmul.f32.gmra.mxu0 %v3503
      %v3567 = vpop.f32.mrf.mxu0
      %v3568 = vadd.f32 0.0, %v3567
      %3569 = vmatmul.f32.gmra.mxu0 %v3506
      %v3570 = vpop.f32.mrf.mxu0
      %v3571 = vadd.f32 0.0, %v3570
      %3572 = vmatmul.f32.gmra.mxu0 %v3509
      %v3573 = vpop.f32.mrf.mxu0
      %v3574 = vadd.f32 0.0, %v3573
      %3575 = vmatmul.f32.gmra.mxu0 %v3512
      %v3576 = vpop.f32.mrf.mxu0
      %v3577 = vadd.f32 0.0, %v3576
      %3578 = vmatmul.f32.gmra.mxu0 %v3515
      %v3579 = vpop.f32.mrf.mxu0
      %v3580 = vadd.f32 0.0, %v3579
      %3581 = vmatmul.f32.gmra.mxu0 %v3518
      %v3582 = vpop.f32.mrf.mxu0
      %v3583 = vadd.f32 0.0, %v3582
      %3584 = vmatmul.f32.gmra.mxu0 %v3521
      %v3585 = vpop.f32.mrf.mxu0
      %v3586 = vadd.f32 0.0, %v3585
      %3587 = vmatmul.f32.gmra.mxu0 %v3524
      %v3588 = vpop.f32.mrf.mxu0
      %v3589 = vadd.f32 0.0, %v3588
      %3590 = vmatmul.f32.gmra.mxu0 %v3527
      %v3591 = vpop.f32.mrf.mxu0
      %v3592 = vadd.f32 0.0, %v3591
      %3593 = vmatmul.f32.gmra.mxu0 %v3530
      %v3594 = vpop.f32.mrf.mxu0
      %v3595 = vadd.f32 0.0, %v3594
      %3596 = vmatmul.f32.gmra.mxu0 %v3533
      %v3597 = vpop.f32.mrf.mxu0
      %v3598 = vadd.f32 0.0, %v3597
      %3599 = vmatmul.f32.gmra.mxu0 %v3536
      %v3600 = vpop.f32.mrf.mxu0
      %v3601 = vadd.f32 0.0, %v3600
      %3602 = vmatmul.f32.gmra.mxu0 %v3539
      %v3603 = vpop.f32.mrf.mxu0
      %v3604 = vadd.f32 0.0, %v3603
      %3605 = vmatmul.f32.gmra.mxu0 %v3542
      %v3606 = vpop.f32.mrf.mxu0
      %v3607 = vadd.f32 0.0, %v3606
      %3608 = vmatmul.f32.gmra.mxu0 %v3545
      %v3609 = vpop.f32.mrf.mxu0
      %v3610 = vadd.f32 0.0, %v3609
      %3611 = vmatmul.f32.gmra.mxu0 %v3548
      %v3612 = vpop.f32.mrf.mxu0
      %v3613 = vadd.f32 0.0, %v3612
      %3614 = vdwg.mxu0
      %v3616 = vsel %vm1122, %v3454, 0
      %v3619 = vsel %vm1122, %v3455, 0
      %v3622 = vsel %vm1122, %v3456, 0
      %v3625 = vsel %vm1122, %v3457, 0
      %v3628 = vsel %vm1122, %v3458, 0
      %v3631 = vsel %vm1122, %v3459, 0
      %v3634 = vsel %vm1122, %v3460, 0
      %v3637 = vsel %vm1122, %v3461, 0
      %v3640 = vsel %vm1122, %v3462, 0
      %v3643 = vsel %vm1122, %v3463, 0
      %v3646 = vsel %vm1122, %v3464, 0
      %v3649 = vsel %vm1122, %v3465, 0
      %v3652 = vsel %vm1122, %v3466, 0
      %v3655 = vsel %vm1122, %v3467, 0
      %v3658 = vsel %vm1122, %v3468, 0
      %v3661 = vsel %vm1122, %v3469, 0
      %3663 = vmatpush.msra.mxu0 0.0
      %3664 = vmatpush.msra.mxu0 0.0
      %3665 = vmatpush.msra.mxu0 0.0
      %3666 = vmatpush.msra.mxu0 0.0
      %3667 = vmatpush.msra.mxu0 0.0
      %3668 = vmatpush.msra.mxu0 0.0
      %3669 = vmatpush.msra.mxu0 0.0
      %3670 = vmatpush.msra.mxu0 0.0
      %3671 = vmatpush.msra.mxu0 0.0
      %3672 = vmatpush.msra.mxu0 0.0
      %3673 = vmatpush.msra.mxu0 0.0
      %3674 = vmatpush.msra.mxu0 0.0
      %3675 = vmatpush.msra.mxu0 0.0
      %3676 = vmatpush.msra.mxu0 0.0
      %3677 = vmatpush.msra.mxu0 0.0
      %3678 = vmatpush.msra.mxu0 %v238
      %3679 = vmatmul.f32.gmra.mxu0 %v3616
      %v3680 = vpop.f32.mrf.mxu0
      %v3681 = vadd.f32 0.0, %v3680
      %3682 = vmatmul.f32.gmra.mxu0 %v3619
      %v3683 = vpop.f32.mrf.mxu0
      %v3684 = vadd.f32 0.0, %v3683
      %3685 = vmatmul.f32.gmra.mxu0 %v3622
      %v3686 = vpop.f32.mrf.mxu0
      %v3687 = vadd.f32 0.0, %v3686
      %3688 = vmatmul.f32.gmra.mxu0 %v3625
      %v3689 = vpop.f32.mrf.mxu0
      %v3690 = vadd.f32 0.0, %v3689
      %3691 = vmatmul.f32.gmra.mxu0 %v3628
      %v3692 = vpop.f32.mrf.mxu0
      %v3693 = vadd.f32 0.0, %v3692
      %3694 = vmatmul.f32.gmra.mxu0 %v3631
      %v3695 = vpop.f32.mrf.mxu0
      %v3696 = vadd.f32 0.0, %v3695
      %3697 = vmatmul.f32.gmra.mxu0 %v3634
      %v3698 = vpop.f32.mrf.mxu0
      %v3699 = vadd.f32 0.0, %v3698
      %3700 = vmatmul.f32.gmra.mxu0 %v3637
      %v3701 = vpop.f32.mrf.mxu0
      %v3702 = vadd.f32 0.0, %v3701
      %3703 = vmatmul.f32.gmra.mxu0 %v3640
      %v3704 = vpop.f32.mrf.mxu0
      %v3705 = vadd.f32 0.0, %v3704
      %3706 = vmatmul.f32.gmra.mxu0 %v3643
      %v3707 = vpop.f32.mrf.mxu0
      %v3708 = vadd.f32 0.0, %v3707
      %3709 = vmatmul.f32.gmra.mxu0 %v3646
      %v3710 = vpop.f32.mrf.mxu0
      %v3711 = vadd.f32 0.0, %v3710
      %3712 = vmatmul.f32.gmra.mxu0 %v3649
      %v3713 = vpop.f32.mrf.mxu0
      %v3714 = vadd.f32 0.0, %v3713
      %3715 = vmatmul.f32.gmra.mxu0 %v3652
      %v3716 = vpop.f32.mrf.mxu0
      %v3717 = vadd.f32 0.0, %v3716
      %3718 = vmatmul.f32.gmra.mxu0 %v3655
      %v3719 = vpop.f32.mrf.mxu0
      %v3720 = vadd.f32 0.0, %v3719
      %3721 = vmatmul.f32.gmra.mxu0 %v3658
      %v3722 = vpop.f32.mrf.mxu0
      %v3723 = vadd.f32 0.0, %v3722
      %3724 = vmatmul.f32.gmra.mxu0 %v3661
      %v3725 = vpop.f32.mrf.mxu0
      %v3726 = vadd.f32 0.0, %v3725
      %3727 = vdwg.mxu0
      %v3729 = vsel %vm1122, %v3470, 0
      %v3732 = vsel %vm1122, %v3471, 0
      %v3735 = vsel %vm1122, %v3472, 0
      %v3738 = vsel %vm1122, %v3473, 0
      %v3741 = vsel %vm1122, %v3474, 0
      %v3744 = vsel %vm1122, %v3475, 0
      %v3747 = vsel %vm1122, %v3476, 0
      %v3750 = vsel %vm1122, %v3477, 0
      %v3753 = vsel %vm1122, %v3478, 0
      %v3756 = vsel %vm1122, %v3479, 0
      %v3759 = vsel %vm1122, %v3480, 0
      %v3762 = vsel %vm1122, %v3481, 0
      %v3765 = vsel %vm1122, %v3482, 0
      %v3768 = vsel %vm1122, %v3483, 0
      %v3771 = vsel %vm1122, %v3484, 0
      %v3774 = vsel %vm1122, %v3485, 0
      %3776 = vmatpush.msra.mxu0 0.0
      %3777 = vmatpush.msra.mxu0 0.0
      %3778 = vmatpush.msra.mxu0 0.0
      %3779 = vmatpush.msra.mxu0 0.0
      %3780 = vmatpush.msra.mxu0 0.0
      %3781 = vmatpush.msra.mxu0 0.0
      %3782 = vmatpush.msra.mxu0 0.0
      %3783 = vmatpush.msra.mxu0 0.0
      %3784 = vmatpush.msra.mxu0 0.0
      %3785 = vmatpush.msra.mxu0 0.0
      %3786 = vmatpush.msra.mxu0 0.0
      %3787 = vmatpush.msra.mxu0 0.0
      %3788 = vmatpush.msra.mxu0 0.0
      %3789 = vmatpush.msra.mxu0 0.0
      %3790 = vmatpush.msra.mxu0 0.0
      %3791 = vmatpush.msra.mxu0 %v239
      %3792 = vmatmul.f32.gmra.mxu0 %v3729
      %v3793 = vpop.f32.mrf.mxu0
      %v3794 = vadd.f32 0.0, %v3793
      %3795 = vmatmul.f32.gmra.mxu0 %v3732
      %v3796 = vpop.f32.mrf.mxu0
      %v3797 = vadd.f32 0.0, %v3796
      %3798 = vmatmul.f32.gmra.mxu0 %v3735
      %v3799 = vpop.f32.mrf.mxu0
      %v3800 = vadd.f32 0.0, %v3799
      %3801 = vmatmul.f32.gmra.mxu0 %v3738
      %v3802 = vpop.f32.mrf.mxu0
      %v3803 = vadd.f32 0.0, %v3802
      %3804 = vmatmul.f32.gmra.mxu0 %v3741
      %v3805 = vpop.f32.mrf.mxu0
      %v3806 = vadd.f32 0.0, %v3805
      %3807 = vmatmul.f32.gmra.mxu0 %v3744
      %v3808 = vpop.f32.mrf.mxu0
      %v3809 = vadd.f32 0.0, %v3808
      %3810 = vmatmul.f32.gmra.mxu0 %v3747
      %v3811 = vpop.f32.mrf.mxu0
      %v3812 = vadd.f32 0.0, %v3811
      %3813 = vmatmul.f32.gmra.mxu0 %v3750
      %v3814 = vpop.f32.mrf.mxu0
      %v3815 = vadd.f32 0.0, %v3814
      %3816 = vmatmul.f32.gmra.mxu0 %v3753
      %v3817 = vpop.f32.mrf.mxu0
      %v3818 = vadd.f32 0.0, %v3817
      %3819 = vmatmul.f32.gmra.mxu0 %v3756
      %v3820 = vpop.f32.mrf.mxu0
      %v3821 = vadd.f32 0.0, %v3820
      %3822 = vmatmul.f32.gmra.mxu0 %v3759
      %v3823 = vpop.f32.mrf.mxu0
      %v3824 = vadd.f32 0.0, %v3823
      %3825 = vmatmul.f32.gmra.mxu0 %v3762
      %v3826 = vpop.f32.mrf.mxu0
      %v3827 = vadd.f32 0.0, %v3826
      %3828 = vmatmul.f32.gmra.mxu0 %v3765
      %v3829 = vpop.f32.mrf.mxu0
      %v3830 = vadd.f32 0.0, %v3829
      %3831 = vmatmul.f32.gmra.mxu0 %v3768
      %v3832 = vpop.f32.mrf.mxu0
      %v3833 = vadd.f32 0.0, %v3832
      %3834 = vmatmul.f32.gmra.mxu0 %v3771
      %v3835 = vpop.f32.mrf.mxu0
      %v3836 = vadd.f32 0.0, %v3835
      %3837 = vmatmul.f32.gmra.mxu0 %v3774
      %v3838 = vpop.f32.mrf.mxu0
      %v3839 = vadd.f32 0.0, %v3838
      %3840 = vdwg.mxu0
      %v3842 = vsel %vm1122, %v3486, 0
      %v3845 = vsel %vm1122, %v3487, 0
      %v3848 = vsel %vm1122, %v3488, 0
      %v3851 = vsel %vm1122, %v3489, 0
      %v3854 = vsel %vm1122, %v3490, 0
      %v3857 = vsel %vm1122, %v3491, 0
      %v3860 = vsel %vm1122, %v3492, 0
      %v3863 = vsel %vm1122, %v3493, 0
      %v3866 = vsel %vm1122, %v3494, 0
      %v3869 = vsel %vm1122, %v3495, 0
      %v3872 = vsel %vm1122, %v3496, 0
      %v3875 = vsel %vm1122, %v3497, 0
      %v3878 = vsel %vm1122, %v3498, 0
      %v3881 = vsel %vm1122, %v3499, 0
      %v3884 = vsel %vm1122, %v3500, 0
      %v3887 = vsel %vm1122, %v3501, 0
      %3889 = vmatpush.msra.mxu0 0.0
      %3890 = vmatpush.msra.mxu0 0.0
      %3891 = vmatpush.msra.mxu0 0.0
      %3892 = vmatpush.msra.mxu0 0.0
      %3893 = vmatpush.msra.mxu0 0.0
      %3894 = vmatpush.msra.mxu0 0.0
      %3895 = vmatpush.msra.mxu0 0.0
      %3896 = vmatpush.msra.mxu0 0.0
      %3897 = vmatpush.msra.mxu0 0.0
      %3898 = vmatpush.msra.mxu0 0.0
      %3899 = vmatpush.msra.mxu0 0.0
      %3900 = vmatpush.msra.mxu0 0.0
      %3901 = vmatpush.msra.mxu0 0.0
      %3902 = vmatpush.msra.mxu0 0.0
      %3903 = vmatpush.msra.mxu0 0.0
      %3904 = vmatpush.msra.mxu0 %v240
      %3905 = vmatmul.f32.gmra.mxu0 %v3842
      %v3906 = vpop.f32.mrf.mxu0
      %v3907 = vadd.f32 0.0, %v3906
      %3908 = vmatmul.f32.gmra.mxu0 %v3845
      %v3909 = vpop.f32.mrf.mxu0
      %v3910 = vadd.f32 0.0, %v3909
      %3911 = vmatmul.f32.gmra.mxu0 %v3848
      %v3912 = vpop.f32.mrf.mxu0
      %v3913 = vadd.f32 0.0, %v3912
      %3914 = vmatmul.f32.gmra.mxu0 %v3851
      %v3915 = vpop.f32.mrf.mxu0
      %v3916 = vadd.f32 0.0, %v3915
      %3917 = vmatmul.f32.gmra.mxu0 %v3854
      %v3918 = vpop.f32.mrf.mxu0
      %v3919 = vadd.f32 0.0, %v3918
      %3920 = vmatmul.f32.gmra.mxu0 %v3857
      %v3921 = vpop.f32.mrf.mxu0
      %v3922 = vadd.f32 0.0, %v3921
      %3923 = vmatmul.f32.gmra.mxu0 %v3860
      %v3924 = vpop.f32.mrf.mxu0
      %v3925 = vadd.f32 0.0, %v3924
      %3926 = vmatmul.f32.gmra.mxu0 %v3863
      %v3927 = vpop.f32.mrf.mxu0
      %v3928 = vadd.f32 0.0, %v3927
      %3929 = vmatmul.f32.gmra.mxu0 %v3866
      %v3930 = vpop.f32.mrf.mxu0
      %v3931 = vadd.f32 0.0, %v3930
      %3932 = vmatmul.f32.gmra.mxu0 %v3869
      %v3933 = vpop.f32.mrf.mxu0
      %v3934 = vadd.f32 0.0, %v3933
      %3935 = vmatmul.f32.gmra.mxu0 %v3872
      %v3936 = vpop.f32.mrf.mxu0
      %v3937 = vadd.f32 0.0, %v3936
      %3938 = vmatmul.f32.gmra.mxu0 %v3875
      %v3939 = vpop.f32.mrf.mxu0
      %v3940 = vadd.f32 0.0, %v3939
      %3941 = vmatmul.f32.gmra.mxu0 %v3878
      %v3942 = vpop.f32.mrf.mxu0
      %v3943 = vadd.f32 0.0, %v3942
      %3944 = vmatmul.f32.gmra.mxu0 %v3881
      %v3945 = vpop.f32.mrf.mxu0
      %v3946 = vadd.f32 0.0, %v3945
      %3947 = vmatmul.f32.gmra.mxu0 %v3884
      %v3948 = vpop.f32.mrf.mxu0
      %v3949 = vadd.f32 0.0, %v3948
      %3950 = vmatmul.f32.gmra.mxu0 %v3887
      %v3951 = vpop.f32.mrf.mxu0
      %v3952 = vadd.f32 0.0, %v3951
      %3953 = vdwg.mxu0
      %v3954 = vsel %vm257, %v3568, 0.0
      %v3955 = vsel %vm257, %v3681, 0.0
      %v3956 = vadd.f32 %v3954, %v3955
      %v3957 = vsel %vm257, %v3794, 0.0
      %v3958 = vadd.f32 %v3956, %v3957
      %v3959 = vsel %vm257, %v3907, 0.0
      %v3960 = vadd.f32 %v3958, %v3959
      %v3961 = vsel %vm257, %v3571, 0.0
      %v3962 = vsel %vm257, %v3684, 0.0
      %v3963 = vadd.f32 %v3961, %v3962
      %v3964 = vsel %vm257, %v3797, 0.0
      %v3965 = vadd.f32 %v3963, %v3964
      %v3966 = vsel %vm257, %v3910, 0.0
      %v3967 = vadd.f32 %v3965, %v3966
      %v3968 = vsel %vm257, %v3574, 0.0
      %v3969 = vsel %vm257, %v3687, 0.0
      %v3970 = vadd.f32 %v3968, %v3969
      %v3971 = vsel %vm257, %v3800, 0.0
      %v3972 = vadd.f32 %v3970, %v3971
      %v3973 = vsel %vm257, %v3913, 0.0
      %v3974 = vadd.f32 %v3972, %v3973
      %v3975 = vsel %vm257, %v3577, 0.0
      %v3976 = vsel %vm257, %v3690, 0.0
      %v3977 = vadd.f32 %v3975, %v3976
      %v3978 = vsel %vm257, %v3803, 0.0
      %v3979 = vadd.f32 %v3977, %v3978
      %v3980 = vsel %vm257, %v3916, 0.0
      %v3981 = vadd.f32 %v3979, %v3980
      %v3982 = vsel %vm257, %v3580, 0.0
      %v3983 = vsel %vm257, %v3693, 0.0
      %v3984 = vadd.f32 %v3982, %v3983
      %v3985 = vsel %vm257, %v3806, 0.0
      %v3986 = vadd.f32 %v3984, %v3985
      %v3987 = vsel %vm257, %v3919, 0.0
      %v3988 = vadd.f32 %v3986, %v3987
      %v3989 = vsel %vm257, %v3583, 0.0
      %v3990 = vsel %vm257, %v3696, 0.0
      %v3991 = vadd.f32 %v3989, %v3990
      %v3992 = vsel %vm257, %v3809, 0.0
      %v3993 = vadd.f32 %v3991, %v3992
      %v3994 = vsel %vm257, %v3922, 0.0
      %v3995 = vadd.f32 %v3993, %v3994
      %v3996 = vsel %vm257, %v3586, 0.0
      %v3997 = vsel %vm257, %v3699, 0.0
      %v3998 = vadd.f32 %v3996, %v3997
      %v3999 = vsel %vm257, %v3812, 0.0
      %v4000 = vadd.f32 %v3998, %v3999
      %v4001 = vsel %vm257, %v3925, 0.0
      %v4002 = vadd.f32 %v4000, %v4001
      %v4003 = vsel %vm257, %v3589, 0.0
      %v4004 = vsel %vm257, %v3702, 0.0
      %v4005 = vadd.f32 %v4003, %v4004
      %v4006 = vsel %vm257, %v3815, 0.0
      %v4007 = vadd.f32 %v4005, %v4006
      %v4008 = vsel %vm257, %v3928, 0.0
      %v4009 = vadd.f32 %v4007, %v4008
      %v4010 = vsel %vm257, %v3592, 0.0
      %v4011 = vsel %vm257, %v3705, 0.0
      %v4012 = vadd.f32 %v4010, %v4011
      %v4013 = vsel %vm257, %v3818, 0.0
      %v4014 = vadd.f32 %v4012, %v4013
      %v4015 = vsel %vm257, %v3931, 0.0
      %v4016 = vadd.f32 %v4014, %v4015
      %v4017 = vsel %vm257, %v3595, 0.0
      %v4018 = vsel %vm257, %v3708, 0.0
      %v4019 = vadd.f32 %v4017, %v4018
      %v4020 = vsel %vm257, %v3821, 0.0
      %v4021 = vadd.f32 %v4019, %v4020
      %v4022 = vsel %vm257, %v3934, 0.0
      %v4023 = vadd.f32 %v4021, %v4022
      %v4024 = vsel %vm257, %v3598, 0.0
      %v4025 = vsel %vm257, %v3711, 0.0
      %v4026 = vadd.f32 %v4024, %v4025
      %v4027 = vsel %vm257, %v3824, 0.0
      %v4028 = vadd.f32 %v4026, %v4027
      %v4029 = vsel %vm257, %v3937, 0.0
      %v4030 = vadd.f32 %v4028, %v4029
      %v4031 = vsel %vm257, %v3601, 0.0
      %v4032 = vsel %vm257, %v3714, 0.0
      %v4033 = vadd.f32 %v4031, %v4032
      %v4034 = vsel %vm257, %v3827, 0.0
      %v4035 = vadd.f32 %v4033, %v4034
      %v4036 = vsel %vm257, %v3940, 0.0
      %v4037 = vadd.f32 %v4035, %v4036
      %v4038 = vsel %vm257, %v3604, 0.0
      %v4039 = vsel %vm257, %v3717, 0.0
      %v4040 = vadd.f32 %v4038, %v4039
      %v4041 = vsel %vm257, %v3830, 0.0
      %v4042 = vadd.f32 %v4040, %v4041
      %v4043 = vsel %vm257, %v3943, 0.0
      %v4044 = vadd.f32 %v4042, %v4043
      %v4045 = vsel %vm257, %v3607, 0.0
      %v4046 = vsel %vm257, %v3720, 0.0
      %v4047 = vadd.f32 %v4045, %v4046
      %v4048 = vsel %vm257, %v3833, 0.0
      %v4049 = vadd.f32 %v4047, %v4048
      %v4050 = vsel %vm257, %v3946, 0.0
      %v4051 = vadd.f32 %v4049, %v4050
      %v4052 = vsel %vm257, %v3610, 0.0
      %v4053 = vsel %vm257, %v3723, 0.0
      %v4054 = vadd.f32 %v4052, %v4053
      %v4055 = vsel %vm257, %v3836, 0.0
      %v4056 = vadd.f32 %v4054, %v4055
      %v4057 = vsel %vm257, %v3949, 0.0
      %v4058 = vadd.f32 %v4056, %v4057
      %v4059 = vsel %vm257, %v3613, 0.0
      %v4060 = vsel %vm257, %v3726, 0.0
      %v4061 = vadd.f32 %v4059, %v4060
      %v4062 = vsel %vm257, %v3839, 0.0
      %v4063 = vadd.f32 %v4061, %v4062
      %v4064 = vsel %vm257, %v3952, 0.0
      %v4065 = vadd.f32 %v4063, %v4064
      %4066 = vst.msk [vmem:[%s224] sm:$0xff] %vm257, %v3960
      %4067 = vst.msk [vmem:[%s224 + $0x8] sm:$0xff] %vm257, %v3967
      %4068 = vst.msk [vmem:[%s224 + $0x10] sm:$0xff] %vm257, %v3974
      %4069 = vst.msk [vmem:[%s224 + $0x18] sm:$0xff] %vm257, %v3981
      %4070 = vst.msk [vmem:[%s224 + $0x20] sm:$0xff] %vm257, %v3988
      %4071 = vst.msk [vmem:[%s224 + $0x28] sm:$0xff] %vm257, %v3995
      %4072 = vst.msk [vmem:[%s224 + $0x30] sm:$0xff] %vm257, %v4002
      %4073 = vst.msk [vmem:[%s224 + $0x38] sm:$0xff] %vm257, %v4009
      %4074 = vst.msk [vmem:[%s224 + $0x40] sm:$0xff] %vm257, %v4016
      %4075 = vst.msk [vmem:[%s224 + $0x48] sm:$0xff] %vm257, %v4023
      %4076 = vst.msk [vmem:[%s224 + $0x50] sm:$0xff] %vm257, %v4030
      %4077 = vst.msk [vmem:[%s224 + $0x58] sm:$0xff] %vm257, %v4037
      %4078 = vst.msk [vmem:[%s224 + $0x60] sm:$0xff] %vm257, %v4044
      %4079 = vst.msk [vmem:[%s224 + $0x68] sm:$0xff] %vm257, %v4051
      %4080 = vst.msk [vmem:[%s224 + $0x70] sm:$0xff] %vm257, %v4058
      %4081 = vst.msk [vmem:[%s224 + $0x78] sm:$0xff] %vm257, %v4065
      %p4082 = scmp.lt.s32.totalorder %s16, 1
      %s4083 = scalar_select %p4082, %s16, 1
      %s4084 = smul.addr %s4083, 16
      %s4085 = smul.addr %s4084, 8
      %s4086 = scalar_lea.vmem %s5, %s4085
      // Predicated region
      $region41: #{tpu_custom_call.1} parent=39 // pred_check
        %p4087 = pneg %p144
      $region42: #{tpu_custom_call.1} parent=39 // pred_check_branch
        %4089 = sbr.rel (%p4087) target = $region44
      $region43: #{tpu_custom_call.1} parent=39 // pred_region
        _
      $region44: #{tpu_custom_call.1} parent=39 // pred_fallthru
        _
    $region40: #{tpu_custom_call.1} parent=5 // pred_fallthru
      _
    %p4090 = scmp.le.s32.totalorder 2, %s11
    // Predicated region
    $region45: #{tpu_custom_call.1} parent=5 // pred_check
      %p4091 = pneg %p4090
    $region46: #{tpu_custom_call.1} parent=5 // pred_check_branch
      %4093 = sbr.rel (%p4091) target = $region48
    $region47: #{tpu_custom_call.1} parent=5 // pred_region
      %s4094 = ssub.s32 %s11, 2
      // Predicated region
      $region49: #{tpu_custom_call.1} parent=47 // pred_check
        %p4095 = pneg %p150
      $region50: #{tpu_custom_call.1} parent=47 // pred_check_branch
        %4097 = sbr.rel (%p4095) target = $region52
      $region51: #{tpu_custom_call.1} parent=47 // pred_region
        %p4098 = scmp.lt.s32.totalorder %s17, 1
        %s4099 = scalar_select %p4098, %s17, 1
        %s4100 = smul.addr %s4099, 16
        %s4101 = smul.addr %s4100, 8
        %s4102 = scalar_lea.vmem %s5, %s4101
      $region52: #{tpu_custom_call.1} parent=47 // pred_fallthru
        _
    $region48: #{tpu_custom_call.1} parent=5 // pred_fallthru
      _
  $region6: #{tpu_custom_call.1} parent=0 // loop_footer
    %s15 = sadd.s32 1, %s11
  $region7: #{tpu_custom_call.1} parent=0 // loop_footer_branch
    %10 = sbr.rel target = $region3
  $region8: #{tpu_custom_call.1} parent=0 // loop_exit
    _

</llo_original>
